<compile_context>
chip_gen: v7x
topology: tpu7x:2x2x1
jax: 0.10.0
libtpu: 0.0.40
codegen_flags: <defaults>
</compile_context>

<pallas_src>
import functools

import jax
import jax.numpy as jnp
from jax.experimental import pallas as pl
from jax.experimental.pallas import tpu as pltpu


def res_classifier_kernel(
    fl_ref,      # [TM, FLW]        packed rows: feat(0:fd) | label_emb(fd:fd+C) | 0, f32
    wff2_ref,    # [8, 2*FFD]       rows 0..fd-1: [wff|wff], row fd: phase (0|pi/2), f32
    wcombo_ref,  # [2*FFD+FLW, 2H]  rows: [sin|cos|feat|lab|0], cols: [layer1|resblock], bf16
    wl_ref,      # [H, H]           linearblock[0], bf16
    wout_ref,    # [H, C]           last_layer, bf16
    bias_ref,    # [8, H]           rows: b1 | (bl+blab+bres) | a1 | a2 | bout(pad) | 0..
    o_ref,       # [TM, C]          output tile, f32
    *, fdim,
):
    f32 = jnp.float32
    bf16 = jnp.bfloat16
    H = wl_ref.shape[0]
    C = o_ref.shape[1]

    fl = fl_ref[...]                                             # [TM, FLW]
    wff2 = wff2_ref[...]                                         # [8, 2*FFD]

    # Fourier projection (f32, VPU FMAs over K=fdim) with phase row: cos(x) = sin(x+pi/2).
    xp = fl[:, 0:1] * wff2[0:1, :]
    for k in range(1, fdim):
        xp = xp + fl[:, k:k + 1] * wff2[k:k + 1, :]
    xp = xp + wff2[fdim:fdim + 1, :]                             # phase row
    sc = jnp.sin(xp)                                             # [TM, 2*FFD] = [sin|cos]

    # One fused MXU matmul: [sin|cos|feat|lab|pad] @ [layer1 | resblock] weight slab.
    x_combo = jnp.concatenate([sc, fl], axis=-1).astype(bf16)    # [TM, 2*FFD+FLW]
    z = jnp.dot(x_combo, wcombo_ref[...],
                preferred_element_type=f32)                      # [TM, 2H]

    slab = bias_ref[...]
    b1, bres = slab[0:1, :], slab[1:2, :]
    a1, a2 = slab[2:3, :], slab[3:4, :]
    bout = slab[4:5, 0:C]

    # layer1 + PReLU
    h = z[:, :H] + b1
    h = jnp.where(h > 0, h, a1 * h)

    # residual block + PReLU (label + raw-feature + fourier terms already in z[:, H:])
    r = jnp.dot(h.astype(bf16), wl_ref[...], preferred_element_type=f32) + z[:, H:] + bres
    r = jnp.where(r > 0, r, a2 * r)

    # last_layer (C=4 lane-sparse output tile; negligible bytes at this width)
    o_ref[...] = (jnp.dot(r.astype(bf16), wout_ref[...], preferred_element_type=f32)
                  + bout).astype(o_ref.dtype)


@functools.partial(jax.jit, static_argnames=("block_rows",))
def res_classifier_forward(feature, source_label, params, *, block_rows=512):
    """Pallas implementation of ResClassifier.forward (fourier=True, num_layer=1)."""
    n, fdim = feature.shape
    ffd = params["wff"].shape[1]
    hdim = params["w1"].shape[1]
    num_class = params["emb"].shape[1]
    two_ffd = 2 * ffd

    # ---- one-time JAX glue ----
    lab = params["emb"][source_label].astype(jnp.float32)               # [N, C]

    # Pack feature || label_emb into one row-tiled operand (zero-padded to a 16 multiple
    # so the fused matmul's K stays a multiple of the bf16 sublane tile).
    flw = max(16, -(-(fdim + num_class) // 16) * 16)
    fl = jnp.zeros((n, flw), jnp.float32)
    fl = fl.at[:, :fdim].set(feature)
    fl = fl.at[:, fdim:fdim + num_class].set(lab)

    # wff duplicated + phase row for the cos(x)=sin(x+pi/2) trick.
    wff2 = jnp.zeros((8, two_ffd), jnp.float32)
    wff2 = wff2.at[:fdim, :ffd].set(params["wff"])
    wff2 = wff2.at[:fdim, ffd:].set(params["wff"])
    wff2 = wff2.at[fdim, ffd:].set(jnp.float32(jnp.pi / 2))

    # Combined weight slab: rows follow x_combo lanes [sin|cos|feat|lab|pad],
    # columns are [layer1 | resblock].  Label rows only feed the resblock half.
    w1, wres = params["w1"], params["wres"]                              # [fd+2*FFD, H]
    k_total = two_ffd + flw
    wcombo = jnp.zeros((k_total, 2 * hdim), jnp.float32)
    wcombo = wcombo.at[:two_ffd, :hdim].set(w1[fdim:])                   # sin|cos -> layer1
    wcombo = wcombo.at[:two_ffd, hdim:].set(wres[fdim:])                 # sin|cos -> resblock
    wcombo = wcombo.at[two_ffd:two_ffd + fdim, :hdim].set(w1[:fdim])     # feat -> layer1
    wcombo = wcombo.at[two_ffd:two_ffd + fdim, hdim:].set(wres[:fdim])   # feat -> resblock
    wcombo = wcombo.at[two_ffd + fdim:two_ffd + fdim + num_class, hdim:].set(params["wlab"])
    wcombo = wcombo.astype(jnp.bfloat16)

    wl = params["wl"].astype(jnp.bfloat16)                               # [H, H]
    wout = params["wout"].astype(jnp.bfloat16)                           # [H, C]

    bias_slab = jnp.zeros((8, hdim), jnp.float32)
    bias_slab = bias_slab.at[0].set(params["b1"])
    bias_slab = bias_slab.at[1].set(params["bl"] + params["blab"] + params["bres"])
    bias_slab = bias_slab.at[2].set(params["a1"])
    bias_slab = bias_slab.at[3].set(params["a2"])
    bias_slab = bias_slab.at[4, :num_class].set(params["bout"])

    # ---- batch tiling: big row tiles (overhead-bound); >=2 tiles when possible so both
    #      v7x TensorCores get work via dimension_semantics=("parallel",). ----
    n8 = -(-n // 8) * 8
    if n8 >= 2 * block_rows:
        tm = block_rows
    elif n8 >= 256:
        tm = -(-(n8 // 2) // 8) * 8          # exactly two tiles
    else:
        tm = n8                              # single small tile
    n_pad = -(-n8 // tm) * tm
    if n_pad != n:
        fl = jnp.pad(fl, ((0, n_pad - n), (0, 0)))
    grid = (n_pad // tm,)

    def resident(shape):  # weights/biases stay in VMEM across all grid steps
        return pl.BlockSpec(shape, lambda i: (0, 0))

    out = pl.pallas_call(
        functools.partial(res_classifier_kernel, fdim=fdim),
        out_shape=jax.ShapeDtypeStruct((n_pad, num_class), jnp.float32),
        grid=grid,
        in_specs=[
            pl.BlockSpec((tm, flw), lambda i: (i, 0)),            # packed feat||lab rows
            resident((8, two_ffd)),                               # wff2 + phase
            resident((k_total, 2 * hdim)),                        # combined weight (bf16)
            resident((hdim, hdim)),                               # wl (bf16)
            resident((hdim, num_class)),                          # wout (bf16)
            resident((8, hdim)),                                  # bias slab
        ],
        out_specs=pl.BlockSpec((tm, num_class), lambda i: (i, 0)),
        compiler_params=pltpu.CompilerParams(
            dimension_semantics=("parallel",)),
    )(fl, wff2, wcombo, wl, wout, bias_slab)
    return out[:n]


def reference_forward(feature, source_label, params):
    """Pure-JAX f32 reference mirroring the PyTorch module."""
    xp = feature @ params["wff"]
    ff = jnp.concatenate([jnp.sin(xp), jnp.cos(xp)], axis=-1)
    feat = jnp.concatenate([feature, ff], axis=-1)
    le = params["emb"][source_label]
    h = feat @ params["w1"] + params["b1"]
    h = jnp.where(h > 0, h, params["a1"] * h)
    r = (h @ params["wl"] + params["bl"]
         + le @ params["wlab"] + params["blab"]
         + feat @ params["wres"] + params["bres"])
    r = jnp.where(r > 0, r, params["a2"] * r)
    return r @ params["wout"] + params["bout"]


def init_params(key, feat_dim=2, num_class=4, hidden_dim=256, ff_dim=64,
                fourier_freq=1.0):
    """Deterministic synthetic parameter init (shapes per the module __init__)."""
    ks = jax.random.split(key, 12)
    aug_dim = feat_dim + 2 * ff_dim  # 130
    std = 0.05
    return {
        "wff":  jax.random.normal(ks[0], (feat_dim, ff_dim), jnp.float32) * fourier_freq,
        "emb":  jax.random.normal(ks[1], (num_class, num_class), jnp.float32),
        "w1":   jax.random.normal(ks[2], (aug_dim, hidden_dim), jnp.float32) * std,
        "b1":   jax.random.normal(ks[3], (hidden_dim,), jnp.float32) * std,
        "a1":   jnp.asarray(0.25, jnp.float32),   # PReLU default init
        "wl":   jax.random.normal(ks[4], (hidden_dim, hidden_dim), jnp.float32) * std,
        "bl":   jax.random.normal(ks[5], (hidden_dim,), jnp.float32) * std,
        "wlab": jax.random.normal(ks[6], (num_class, hidden_dim), jnp.float32) * std,
        "blab": jax.random.normal(ks[7], (hidden_dim,), jnp.float32) * std,
        "wres": jax.random.normal(ks[8], (aug_dim, hidden_dim), jnp.float32) * std,
        "bres": jax.random.normal(ks[9], (hidden_dim,), jnp.float32) * std,
        "a2":   jnp.asarray(0.25, jnp.float32),   # PReLU default init
        "wout": jax.random.normal(ks[10], (hidden_dim, num_class), jnp.float32) * std,
        "bout": jax.random.normal(ks[11], (num_class,), jnp.float32) * std,
    }


if __name__ == "__main__":
    # TODO(synk): num_layer > 1 would just repeat the residual-block section in the kernel.
    key = jax.random.PRNGKey(0)
    k_feat, k_lab, k_par = jax.random.split(key, 3)

    N, FEAT_DIM, NUM_CLASS, HIDDEN = 203, 2, 4, 256   # N not a multiple of 8 -> exercises padding
    feature = jax.random.normal(k_feat, (N, FEAT_DIM), jnp.float32)
    source_label = jax.random.randint(k_lab, (N,), 0, NUM_CLASS, jnp.int32)
    params = init_params(k_par, feat_dim=FEAT_DIM, num_class=NUM_CLASS,
                         hidden_dim=HIDDEN)

    out = res_classifier_forward(feature, source_label, params, block_rows=512)
    out = jax.block_until_ready(out)

    ref = reference_forward(feature, source_label, params)
    assert out.shape == (N, NUM_CLASS)
    max_err = float(jnp.max(jnp.abs(out - ref)))
    assert jnp.allclose(out, ref, rtol=2e-2, atol=2e-2), f"mismatch vs reference (max|diff|={max_err})"

    print("KERNEL_OK")
</pallas_src>

<mosaic_0001>
module attributes {stable_mosaic.version = 11 : i64} {
  func.func @res_classifier_kernel(%arg0: i32, %arg1: memref<208x16xf32, #tpu.memory_space<vmem>>, %arg2: memref<8x128xf32, #tpu.memory_space<vmem>>, %arg3: memref<144x512xbf16, #tpu.memory_space<vmem>>, %arg4: memref<256x256xbf16, #tpu.memory_space<vmem>>, %arg5: memref<256x4xbf16, #tpu.memory_space<vmem>>, %arg6: memref<8x256xf32, #tpu.memory_space<vmem>>, %arg7: memref<208x4xf32, #tpu.memory_space<vmem>>) attributes {dimension_semantics = [#tpu.dimension_semantics<parallel>], iteration_bounds = array<i64: 1>, scalar_prefetch = 0 : i64, scratch_operands = 0 : i64, tpu.core_type = #tpu.core_type<tc>, window_params = [{transform_indices = @transform_0, window_bounds = array<i64: 208, 16>}, {pipeline_mode = #tpu.pipeline_mode<synchronous>, transform_indices = @transform_1, window_bounds = array<i64: 8, 128>}, {pipeline_mode = #tpu.pipeline_mode<synchronous>, transform_indices = @transform_2, window_bounds = array<i64: 144, 512>}, {pipeline_mode = #tpu.pipeline_mode<synchronous>, transform_indices = @transform_3, window_bounds = array<i64: 256, 256>}, {pipeline_mode = #tpu.pipeline_mode<synchronous>, transform_indices = @transform_4, window_bounds = array<i64: 256, 4>}, {pipeline_mode = #tpu.pipeline_mode<synchronous>, transform_indices = @transform_5, window_bounds = array<i64: 8, 256>}, {transform_indices = @transform_6, window_bounds = array<i64: 208, 4>}]} {
    %c0 = arith.constant 0 : index
    %c0_0 = arith.constant 0 : index
    %0 = vector.load %arg1[%c0, %c0_0] : memref<208x16xf32, #tpu.memory_space<vmem>>, vector<208x16xf32>
    %c0_1 = arith.constant 0 : index
    %c0_2 = arith.constant 0 : index
    %1 = vector.load %arg2[%c0_1, %c0_2] : memref<8x128xf32, #tpu.memory_space<vmem>>, vector<8x128xf32>
    %2 = vector.extract_strided_slice %0 {offsets = [0, 0], sizes = [208, 1], strides = [1, 1]} : vector<208x16xf32> to vector<208x1xf32>
    %3 = vector.extract_strided_slice %1 {offsets = [0, 0], sizes = [1, 128], strides = [1, 1]} : vector<8x128xf32> to vector<1x128xf32>
    %4 = vector.broadcast %2 : vector<208x1xf32> to vector<208x128xf32>
    %5 = vector.broadcast %3 : vector<1x128xf32> to vector<208x128xf32>
    %6 = arith.mulf %4, %5 : vector<208x128xf32>
    %7 = vector.extract_strided_slice %0 {offsets = [0, 1], sizes = [208, 1], strides = [1, 1]} : vector<208x16xf32> to vector<208x1xf32>
    %8 = vector.extract_strided_slice %1 {offsets = [1, 0], sizes = [1, 128], strides = [1, 1]} : vector<8x128xf32> to vector<1x128xf32>
    %9 = vector.broadcast %7 : vector<208x1xf32> to vector<208x128xf32>
    %10 = vector.broadcast %8 : vector<1x128xf32> to vector<208x128xf32>
    %11 = arith.mulf %9, %10 : vector<208x128xf32>
    %12 = arith.addf %6, %11 : vector<208x128xf32>
    %13 = vector.extract_strided_slice %1 {offsets = [2, 0], sizes = [1, 128], strides = [1, 1]} : vector<8x128xf32> to vector<1x128xf32>
    %14 = vector.broadcast %13 : vector<1x128xf32> to vector<208x128xf32>
    %15 = arith.addf %12, %14 : vector<208x128xf32>
    %16 = math.sin %15 : vector<208x128xf32>
    %17 = tpu.concatenate %16, %0 in 1 : vector<208x128xf32>, vector<208x16xf32> -> vector<208x144xf32>
    %18 = arith.truncf %17 : vector<208x144xf32> to vector<208x144xbf16>
    %c0_3 = arith.constant 0 : index
    %c0_4 = arith.constant 0 : index
    %19 = vector.load %arg3[%c0_3, %c0_4] : memref<144x512xbf16, #tpu.memory_space<vmem>>, vector<144x512xbf16>
    %cst = arith.constant dense<0.000000e+00> : vector<208x512xf32>
    %20 = tpu.matmul %18, %19, %cst {dimension_numbers = #tpu.dot_dimension_numbers<[1], [0], [0], [1], [0, 0, 1, 1], [], []>} : vector<208x144xbf16>, vector<144x512xbf16>, vector<208x512xf32> -> vector<208x512xf32>
    %c0_5 = arith.constant 0 : index
    %c0_6 = arith.constant 0 : index
    %21 = vector.load %arg6[%c0_5, %c0_6] : memref<8x256xf32, #tpu.memory_space<vmem>>, vector<8x256xf32>
    %22 = vector.extract_strided_slice %21 {offsets = [0, 0], sizes = [1, 256], strides = [1, 1]} : vector<8x256xf32> to vector<1x256xf32>
    %23 = vector.extract_strided_slice %21 {offsets = [1, 0], sizes = [1, 256], strides = [1, 1]} : vector<8x256xf32> to vector<1x256xf32>
    %24 = vector.extract_strided_slice %21 {offsets = [2, 0], sizes = [1, 256], strides = [1, 1]} : vector<8x256xf32> to vector<1x256xf32>
    %25 = vector.extract_strided_slice %21 {offsets = [3, 0], sizes = [1, 256], strides = [1, 1]} : vector<8x256xf32> to vector<1x256xf32>
    %26 = vector.extract_strided_slice %21 {offsets = [4, 0], sizes = [1, 4], strides = [1, 1]} : vector<8x256xf32> to vector<1x4xf32>
    %27 = vector.extract_strided_slice %20 {offsets = [0, 0], sizes = [208, 256], strides = [1, 1]} : vector<208x512xf32> to vector<208x256xf32>
    %28 = vector.broadcast %22 : vector<1x256xf32> to vector<208x256xf32>
    %29 = arith.addf %27, %28 : vector<208x256xf32>
    %cst_7 = arith.constant 0.000000e+00 : f32
    %30 = vector.broadcast %cst_7 : f32 to vector<208x256xf32>
    %31 = arith.cmpf ogt, %29, %30 : vector<208x256xf32>
    %32 = vector.broadcast %24 : vector<1x256xf32> to vector<208x256xf32>
    %33 = arith.mulf %32, %29 : vector<208x256xf32>
    %34 = arith.select %31, %29, %33 : vector<208x256xi1>, vector<208x256xf32>
    %35 = arith.truncf %34 : vector<208x256xf32> to vector<208x256xbf16>
    %c0_8 = arith.constant 0 : index
    %c0_9 = arith.constant 0 : index
    %36 = vector.load %arg4[%c0_8, %c0_9] : memref<256x256xbf16, #tpu.memory_space<vmem>>, vector<256x256xbf16>
    %cst_10 = arith.constant dense<0.000000e+00> : vector<208x256xf32>
    %37 = tpu.matmul %35, %36, %cst_10 {dimension_numbers = #tpu.dot_dimension_numbers<[1], [0], [0], [1], [0, 0, 1, 1], [], []>} : vector<208x256xbf16>, vector<256x256xbf16>, vector<208x256xf32> -> vector<208x256xf32>
    %38 = vector.extract_strided_slice %20 {offsets = [0, 256], sizes = [208, 256], strides = [1, 1]} : vector<208x512xf32> to vector<208x256xf32>
    %39 = arith.addf %37, %38 : vector<208x256xf32>
    %40 = vector.broadcast %23 : vector<1x256xf32> to vector<208x256xf32>
    %41 = arith.addf %39, %40 : vector<208x256xf32>
    %cst_11 = arith.constant 0.000000e+00 : f32
    %42 = vector.broadcast %cst_11 : f32 to vector<208x256xf32>
    %43 = arith.cmpf ogt, %41, %42 : vector<208x256xf32>
    %44 = vector.broadcast %25 : vector<1x256xf32> to vector<208x256xf32>
    %45 = arith.mulf %44, %41 : vector<208x256xf32>
    %46 = arith.select %43, %41, %45 : vector<208x256xi1>, vector<208x256xf32>
    %47 = arith.truncf %46 : vector<208x256xf32> to vector<208x256xbf16>
    %c0_12 = arith.constant 0 : index
    %c0_13 = arith.constant 0 : index
    %48 = vector.load %arg5[%c0_12, %c0_13] : memref<256x4xbf16, #tpu.memory_space<vmem>>, vector<256x4xbf16>
    %cst_14 = arith.constant dense<0.000000e+00> : vector<208x4xf32>
    %49 = tpu.matmul %47, %48, %cst_14 {dimension_numbers = #tpu.dot_dimension_numbers<[1], [0], [0], [1], [0, 0, 1, 1], [], []>} : vector<208x256xbf16>, vector<256x4xbf16>, vector<208x4xf32> -> vector<208x4xf32>
    %50 = vector.broadcast %26 : vector<1x4xf32> to vector<208x4xf32>
    %51 = arith.addf %49, %50 : vector<208x4xf32>
    %c0_15 = arith.constant 0 : index
    %c0_16 = arith.constant 0 : index
    %52 = vector.load %arg7[%c0_15, %c0_16] : memref<208x4xf32, #tpu.memory_space<vmem>>, vector<208x4xf32>
    tpu.vector_store %arg7[%c0_15, %c0_16], %51 {strides = array<i32>} : memref<208x4xf32, #tpu.memory_space<vmem>>, vector<208x4xf32>,
    return
  }
  func.func @transform_0(%arg0: i32) -> (i32, i32) {
    %c0_i32 = arith.constant 0 : i32
    %c0_i32_0 = arith.constant 0 : i32
    return %arg0, %c0_i32 : i32, i32
  }
  func.func @transform_1(%arg0: i32) -> (i32, i32) {
    %c0_i32 = arith.constant 0 : i32
    %c0_i32_0 = arith.constant 0 : i32
    %c0_i32_1 = arith.constant 0 : i32
    return %c0_i32, %c0_i32_0 : i32, i32
  }
  func.func @transform_2(%arg0: i32) -> (i32, i32) {
    %c0_i32 = arith.constant 0 : i32
    %c0_i32_0 = arith.constant 0 : i32
    %c0_i32_1 = arith.constant 0 : i32
    return %c0_i32, %c0_i32_0 : i32, i32
  }
  func.func @transform_3(%arg0: i32) -> (i32, i32) {
    %c0_i32 = arith.constant 0 : i32
    %c0_i32_0 = arith.constant 0 : i32
    %c0_i32_1 = arith.constant 0 : i32
    return %c0_i32, %c0_i32_0 : i32, i32
  }
  func.func @transform_4(%arg0: i32) -> (i32, i32) {
    %c0_i32 = arith.constant 0 : i32
    %c0_i32_0 = arith.constant 0 : i32
    %c0_i32_1 = arith.constant 0 : i32
    return %c0_i32, %c0_i32_0 : i32, i32
  }
  func.func @transform_5(%arg0: i32) -> (i32, i32) {
    %c0_i32 = arith.constant 0 : i32
    %c0_i32_0 = arith.constant 0 : i32
    %c0_i32_1 = arith.constant 0 : i32
    return %c0_i32, %c0_i32_0 : i32, i32
  }
  func.func @transform_6(%arg0: i32) -> (i32, i32) {
    %c0_i32 = arith.constant 0 : i32
    %c0_i32_0 = arith.constant 0 : i32
    return %arg0, %c0_i32 : i32, i32
  }
}

</mosaic_0001>

<llo_original>
// kernel: res_classifier_forward.1
$region0: #{res_classifier_forward.1}
  #allocation0 [shape = 'u32[]', space=smem, size = 0x4, offset = 0x4, fixed_abs, tag = 'smem constant byte address 0x4 - core index']
  #allocation1 [shape = 'u32[144,128]{1,0:T(1,128)}', space=vmem, size = 0x12000, scoped, tag = 'internal scratch']
  %s0 = inlined_call_operand.vmem [shape: f32[208,16], index: 0, kind: input, shape index: {}]
  %s1 = inlined_call_operand.vmem [shape: f32[8,128], index: 1, kind: input, shape index: {}]
  %s2 = inlined_call_operand.vmem [shape: bf16[144,512], index: 2, kind: input, shape index: {}]
  %s3 = inlined_call_operand.vmem [shape: bf16[256,256], index: 3, kind: input, shape index: {}]
  %s4 = inlined_call_operand.vmem [shape: bf16[256,4], index: 4, kind: input, shape index: {}]
  %s5 = inlined_call_operand.vmem [shape: f32[8,256], index: 5, kind: input, shape index: {}]
  %s6 = inlined_call_operand.vmem [shape: f32[208,4], index: 6, kind: output, shape index: {}]
  %s7 = sld [smem:[#allocation0]]
  $region34: #{res_classifier_forward.1} parent=0
    _
  %s9 = ssub.s32 1, %s7
  %s10 = scalar_select 0, %s9, %s7
  // Predicated region
  $region2: #{res_classifier_forward.1} parent=0 // pred_check
    _
  $region3: #{res_classifier_forward.1} parent=0 // pred_check_branch
    %12 = sbr.rel (0) target = $region5
  $region4: #{res_classifier_forward.1} parent=0 // pred_region
    _
  $region5: #{res_classifier_forward.1} parent=0 // pred_fallthru
    _
  // Predicated region
  $region6: #{res_classifier_forward.1} parent=0 // pred_check
    _
  $region7: #{res_classifier_forward.1} parent=0 // pred_check_branch
    %14 = sbr.rel (0) target = $region9
  $region8: #{res_classifier_forward.1} parent=0 // pred_region
    _
  $region9: #{res_classifier_forward.1} parent=0 // pred_fallthru
    _
  // Predicated region
  $region10: #{res_classifier_forward.1} parent=0 // pred_check
    _
  $region11: #{res_classifier_forward.1} parent=0 // pred_check_branch
    %16 = sbr.rel (0) target = $region13
  $region12: #{res_classifier_forward.1} parent=0 // pred_region
    _
  $region13: #{res_classifier_forward.1} parent=0 // pred_fallthru
    _
  // Predicated region
  $region14: #{res_classifier_forward.1} parent=0 // pred_check
    _
  $region15: #{res_classifier_forward.1} parent=0 // pred_check_branch
    %18 = sbr.rel (0) target = $region17
  $region16: #{res_classifier_forward.1} parent=0 // pred_region
    _
  $region17: #{res_classifier_forward.1} parent=0 // pred_fallthru
    _
  // Predicated region
  $region18: #{res_classifier_forward.1} parent=0 // pred_check
    _
  $region19: #{res_classifier_forward.1} parent=0 // pred_check_branch
    %20 = sbr.rel (0) target = $region21
  $region20: #{res_classifier_forward.1} parent=0 // pred_region
    _
  $region21: #{res_classifier_forward.1} parent=0 // pred_fallthru
    _
  // Predicated region
  $region22: #{res_classifier_forward.1} parent=0 // pred_check
    _
  $region23: #{res_classifier_forward.1} parent=0 // pred_check_branch
    %22 = sbr.rel (0) target = $region25
  $region24: #{res_classifier_forward.1} parent=0 // pred_region
    _
  $region25: #{res_classifier_forward.1} parent=0 // pred_fallthru
    _
  %v24 = vld [vmem:[%s0] sm:$0xff]
  %v25 = vld [vmem:[%s0 + $0x8] sm:$0xff]
  %v26 = vld [vmem:[%s0 + $0x10] sm:$0xff]
  %v27 = vld [vmem:[%s0 + $0x18] sm:$0xff]
  %v28 = vld [vmem:[%s0 + $0x20] sm:$0xff]
  %v29 = vld [vmem:[%s0 + $0x28] sm:$0xff]
  %v30 = vld [vmem:[%s0 + $0x30] sm:$0xff]
  %v31 = vld [vmem:[%s0 + $0x38] sm:$0xff]
  %v32 = vld [vmem:[%s0 + $0x40] sm:$0xff]
  %v33 = vld [vmem:[%s0 + $0x48] sm:$0xff]
  %v34 = vld [vmem:[%s0 + $0x50] sm:$0xff]
  %v35 = vld [vmem:[%s0 + $0x58] sm:$0xff]
  %v36 = vld [vmem:[%s0 + $0x60] sm:$0xff]
  %v37 = vld [vmem:[%s0 + $0x68] sm:$0xff]
  %v38 = vld [vmem:[%s0 + $0x70] sm:$0xff]
  %v39 = vld [vmem:[%s0 + $0x78] sm:$0xff]
  %v40 = vld [vmem:[%s0 + $0x80] sm:$0xff]
  %v41 = vld [vmem:[%s0 + $0x88] sm:$0xff]
  %v42 = vld [vmem:[%s0 + $0x90] sm:$0xff]
  %v43 = vld [vmem:[%s0 + $0x98] sm:$0xff]
  %v44 = vld [vmem:[%s0 + $0xa0] sm:$0xff]
  %v45 = vld [vmem:[%s0 + $0xa8] sm:$0xff]
  %v46 = vld [vmem:[%s0 + $0xb0] sm:$0xff]
  %v47 = vld [vmem:[%s0 + $0xb8] sm:$0xff]
  %v48 = vld [vmem:[%s0 + $0xc0] sm:$0xff]
  %v49 = vld [vmem:[%s0 + $0xc8] sm:$0xff]
  %v50 = vld [vmem:[%s1] sm:$0xff]
  %52 = vset.pattern.permute.xlu0 0
  %53 = vperm.xlu0 %52, %v24
  %v54 = vpop.permute.xlu0 %53
  %57 = vset.pattern.permute.xlu0 0
  %58 = vperm.xlu0 %57, %v25
  %v59 = vpop.permute.xlu0 %58
  %62 = vset.pattern.permute.xlu0 0
  %63 = vperm.xlu0 %62, %v26
  %v64 = vpop.permute.xlu0 %63
  %67 = vset.pattern.permute.xlu0 0
  %68 = vperm.xlu0 %67, %v27
  %v69 = vpop.permute.xlu0 %68
  %72 = vset.pattern.permute.xlu0 0
  %73 = vperm.xlu0 %72, %v28
  %v74 = vpop.permute.xlu0 %73
  %77 = vset.pattern.permute.xlu0 0
  %78 = vperm.xlu0 %77, %v29
  %v79 = vpop.permute.xlu0 %78
  %82 = vset.pattern.permute.xlu0 0
  %83 = vperm.xlu0 %82, %v30
  %v84 = vpop.permute.xlu0 %83
  %87 = vset.pattern.permute.xlu0 0
  %88 = vperm.xlu0 %87, %v31
  %v89 = vpop.permute.xlu0 %88
  %92 = vset.pattern.permute.xlu0 0
  %93 = vperm.xlu0 %92, %v32
  %v94 = vpop.permute.xlu0 %93
  %97 = vset.pattern.permute.xlu0 0
  %98 = vperm.xlu0 %97, %v33
  %v99 = vpop.permute.xlu0 %98
  %102 = vset.pattern.permute.xlu0 0
  %103 = vperm.xlu0 %102, %v34
  %v104 = vpop.permute.xlu0 %103
  %107 = vset.pattern.permute.xlu0 0
  %108 = vperm.xlu0 %107, %v35
  %v109 = vpop.permute.xlu0 %108
  %112 = vset.pattern.permute.xlu0 0
  %113 = vperm.xlu0 %112, %v36
  %v114 = vpop.permute.xlu0 %113
  %117 = vset.pattern.permute.xlu0 0
  %118 = vperm.xlu0 %117, %v37
  %v119 = vpop.permute.xlu0 %118
  %122 = vset.pattern.permute.xlu0 0
  %123 = vperm.xlu0 %122, %v38
  %v124 = vpop.permute.xlu0 %123
  %127 = vset.pattern.permute.xlu0 0
  %128 = vperm.xlu0 %127, %v39
  %v129 = vpop.permute.xlu0 %128
  %132 = vset.pattern.permute.xlu0 0
  %133 = vperm.xlu0 %132, %v40
  %v134 = vpop.permute.xlu0 %133
  %137 = vset.pattern.permute.xlu0 0
  %138 = vperm.xlu0 %137, %v41
  %v139 = vpop.permute.xlu0 %138
  %142 = vset.pattern.permute.xlu0 0
  %143 = vperm.xlu0 %142, %v42
  %v144 = vpop.permute.xlu0 %143
  %147 = vset.pattern.permute.xlu0 0
  %148 = vperm.xlu0 %147, %v43
  %v149 = vpop.permute.xlu0 %148
  %152 = vset.pattern.permute.xlu0 0
  %153 = vperm.xlu0 %152, %v44
  %v154 = vpop.permute.xlu0 %153
  %157 = vset.pattern.permute.xlu0 0
  %158 = vperm.xlu0 %157, %v45
  %v159 = vpop.permute.xlu0 %158
  %162 = vset.pattern.permute.xlu0 0
  %163 = vperm.xlu0 %162, %v46
  %v164 = vpop.permute.xlu0 %163
  %167 = vset.pattern.permute.xlu0 0
  %168 = vperm.xlu0 %167, %v47
  %v169 = vpop.permute.xlu0 %168
  %172 = vset.pattern.permute.xlu0 0
  %173 = vperm.xlu0 %172, %v48
  %v174 = vpop.permute.xlu0 %173
  %177 = vset.pattern.permute.xlu0 0
  %178 = vperm.xlu0 %177, %v49
  %v179 = vpop.permute.xlu0 %178
  %v181 = vlaneseq
  %v182 = vshrl.u32 %v181, 7
  %v183 = vsub.s32 0, %v182
  %v184 = vrot.slane %v50, %v183
  %v185 = vmul.f32 %v54, %v184
  %v186 = vmul.f32 %v59, %v184
  %v187 = vmul.f32 %v64, %v184
  %v188 = vmul.f32 %v69, %v184
  %v189 = vmul.f32 %v74, %v184
  %v190 = vmul.f32 %v79, %v184
  %v191 = vmul.f32 %v84, %v184
  %v192 = vmul.f32 %v89, %v184
  %v193 = vmul.f32 %v94, %v184
  %v194 = vmul.f32 %v99, %v184
  %v195 = vmul.f32 %v104, %v184
  %v196 = vmul.f32 %v109, %v184
  %v197 = vmul.f32 %v114, %v184
  %v198 = vmul.f32 %v119, %v184
  %v199 = vmul.f32 %v124, %v184
  %v200 = vmul.f32 %v129, %v184
  %v201 = vmul.f32 %v134, %v184
  %v202 = vmul.f32 %v139, %v184
  %v203 = vmul.f32 %v144, %v184
  %v204 = vmul.f32 %v149, %v184
  %v205 = vmul.f32 %v154, %v184
  %v206 = vmul.f32 %v159, %v184
  %v207 = vmul.f32 %v164, %v184
  %v208 = vmul.f32 %v169, %v184
  %v209 = vmul.f32 %v174, %v184
  %v210 = vmul.f32 %v179, %v184
  %211 = vset.pattern.permute.xlu0 1
  %212 = vperm.xlu0 %211, %v24
  %v213 = vpop.permute.xlu0 %212
  %215 = vset.pattern.permute.xlu0 1
  %216 = vperm.xlu0 %215, %v25
  %v217 = vpop.permute.xlu0 %216
  %219 = vset.pattern.permute.xlu0 1
  %220 = vperm.xlu0 %219, %v26
  %v221 = vpop.permute.xlu0 %220
  %223 = vset.pattern.permute.xlu0 1
  %224 = vperm.xlu0 %223, %v27
  %v225 = vpop.permute.xlu0 %224
  %227 = vset.pattern.permute.xlu0 1
  %228 = vperm.xlu0 %227, %v28
  %v229 = vpop.permute.xlu0 %228
  %231 = vset.pattern.permute.xlu0 1
  %232 = vperm.xlu0 %231, %v29
  %v233 = vpop.permute.xlu0 %232
  %235 = vset.pattern.permute.xlu0 1
  %236 = vperm.xlu0 %235, %v30
  %v237 = vpop.permute.xlu0 %236
  %239 = vset.pattern.permute.xlu0 1
  %240 = vperm.xlu0 %239, %v31
  %v241 = vpop.permute.xlu0 %240
  %243 = vset.pattern.permute.xlu0 1
  %244 = vperm.xlu0 %243, %v32
  %v245 = vpop.permute.xlu0 %244
  %247 = vset.pattern.permute.xlu0 1
  %248 = vperm.xlu0 %247, %v33
  %v249 = vpop.permute.xlu0 %248
  %251 = vset.pattern.permute.xlu0 1
  %252 = vperm.xlu0 %251, %v34
  %v253 = vpop.permute.xlu0 %252
  %255 = vset.pattern.permute.xlu0 1
  %256 = vperm.xlu0 %255, %v35
  %v257 = vpop.permute.xlu0 %256
  %259 = vset.pattern.permute.xlu0 1
  %260 = vperm.xlu0 %259, %v36
  %v261 = vpop.permute.xlu0 %260
  %263 = vset.pattern.permute.xlu0 1
  %264 = vperm.xlu0 %263, %v37
  %v265 = vpop.permute.xlu0 %264
  %267 = vset.pattern.permute.xlu0 1
  %268 = vperm.xlu0 %267, %v38
  %v269 = vpop.permute.xlu0 %268
  %271 = vset.pattern.permute.xlu0 1
  %272 = vperm.xlu0 %271, %v39
  %v273 = vpop.permute.xlu0 %272
  %275 = vset.pattern.permute.xlu0 1
  %276 = vperm.xlu0 %275, %v40
  %v277 = vpop.permute.xlu0 %276
  %279 = vset.pattern.permute.xlu0 1
  %280 = vperm.xlu0 %279, %v41
  %v281 = vpop.permute.xlu0 %280
  %283 = vset.pattern.permute.xlu0 1
  %284 = vperm.xlu0 %283, %v42
  %v285 = vpop.permute.xlu0 %284
  %287 = vset.pattern.permute.xlu0 1
  %288 = vperm.xlu0 %287, %v43
  %v289 = vpop.permute.xlu0 %288
  %291 = vset.pattern.permute.xlu0 1
  %292 = vperm.xlu0 %291, %v44
  %v293 = vpop.permute.xlu0 %292
  %295 = vset.pattern.permute.xlu0 1
  %296 = vperm.xlu0 %295, %v45
  %v297 = vpop.permute.xlu0 %296
  %299 = vset.pattern.permute.xlu0 1
  %300 = vperm.xlu0 %299, %v46
  %v301 = vpop.permute.xlu0 %300
  %303 = vset.pattern.permute.xlu0 1
  %304 = vperm.xlu0 %303, %v47
  %v305 = vpop.permute.xlu0 %304
  %307 = vset.pattern.permute.xlu0 1
  %308 = vperm.xlu0 %307, %v48
  %v309 = vpop.permute.xlu0 %308
  %311 = vset.pattern.permute.xlu0 1
  %312 = vperm.xlu0 %311, %v49
  %v313 = vpop.permute.xlu0 %312
  %v315 = vlaneseq
  %v316 = vshrl.u32 %v315, 7
  %v317 = vsub.s32 1, %v316
  %v318 = vrot.slane %v50, %v317
  %v319 = vmul.f32 %v213, %v318
  %v320 = vmul.f32 %v217, %v318
  %v321 = vmul.f32 %v221, %v318
  %v322 = vmul.f32 %v225, %v318
  %v323 = vmul.f32 %v229, %v318
  %v324 = vmul.f32 %v233, %v318
  %v325 = vmul.f32 %v237, %v318
  %v326 = vmul.f32 %v241, %v318
  %v327 = vmul.f32 %v245, %v318
  %v328 = vmul.f32 %v249, %v318
  %v329 = vmul.f32 %v253, %v318
  %v330 = vmul.f32 %v257, %v318
  %v331 = vmul.f32 %v261, %v318
  %v332 = vmul.f32 %v265, %v318
  %v333 = vmul.f32 %v269, %v318
  %v334 = vmul.f32 %v273, %v318
  %v335 = vmul.f32 %v277, %v318
  %v336 = vmul.f32 %v281, %v318
  %v337 = vmul.f32 %v285, %v318
  %v338 = vmul.f32 %v289, %v318
  %v339 = vmul.f32 %v293, %v318
  %v340 = vmul.f32 %v297, %v318
  %v341 = vmul.f32 %v301, %v318
  %v342 = vmul.f32 %v305, %v318
  %v343 = vmul.f32 %v309, %v318
  %v344 = vmul.f32 %v313, %v318
  %v345 = vadd.f32 %v185, %v319
  %v346 = vadd.f32 %v186, %v320
  %v347 = vadd.f32 %v187, %v321
  %v348 = vadd.f32 %v188, %v322
  %v349 = vadd.f32 %v189, %v323
  %v350 = vadd.f32 %v190, %v324
  %v351 = vadd.f32 %v191, %v325
  %v352 = vadd.f32 %v192, %v326
  %v353 = vadd.f32 %v193, %v327
  %v354 = vadd.f32 %v194, %v328
  %v355 = vadd.f32 %v195, %v329
  %v356 = vadd.f32 %v196, %v330
  %v357 = vadd.f32 %v197, %v331
  %v358 = vadd.f32 %v198, %v332
  %v359 = vadd.f32 %v199, %v333
  %v360 = vadd.f32 %v200, %v334
  %v361 = vadd.f32 %v201, %v335
  %v362 = vadd.f32 %v202, %v336
  %v363 = vadd.f32 %v203, %v337
  %v364 = vadd.f32 %v204, %v338
  %v365 = vadd.f32 %v205, %v339
  %v366 = vadd.f32 %v206, %v340
  %v367 = vadd.f32 %v207, %v341
  %v368 = vadd.f32 %v208, %v342
  %v369 = vadd.f32 %v209, %v343
  %v370 = vadd.f32 %v210, %v344
  %v371 = vlaneseq
  %v372 = vshrl.u32 %v371, 7
  %v373 = vsub.s32 2, %v372
  %v374 = vrot.slane %v50, %v373
  %v375 = vadd.f32 %v345, %v374
  %v376 = vadd.f32 %v346, %v374
  %v377 = vadd.f32 %v347, %v374
  %v378 = vadd.f32 %v348, %v374
  %v379 = vadd.f32 %v349, %v374
  %v380 = vadd.f32 %v350, %v374
  %v381 = vadd.f32 %v351, %v374
  %v382 = vadd.f32 %v352, %v374
  %v383 = vadd.f32 %v353, %v374
  %v384 = vadd.f32 %v354, %v374
  %v385 = vadd.f32 %v355, %v374
  %v386 = vadd.f32 %v356, %v374
  %v387 = vadd.f32 %v357, %v374
  %v388 = vadd.f32 %v358, %v374
  %v389 = vadd.f32 %v359, %v374
  %v390 = vadd.f32 %v360, %v374
  %v391 = vadd.f32 %v361, %v374
  %v392 = vadd.f32 %v362, %v374
  %v393 = vadd.f32 %v363, %v374
  %v394 = vadd.f32 %v364, %v374
  %v395 = vadd.f32 %v365, %v374
  %v396 = vadd.f32 %v366, %v374
  %v397 = vadd.f32 %v367, %v374
  %v398 = vadd.f32 %v368, %v374
  %v399 = vadd.f32 %v369, %v374
  %v400 = vadd.f32 %v370, %v374
  %v401 = vand.u32 2147483647, %v375
  %vm402 = vcmp.le.f32.partialorder %v401, 0.7853982
  %vm403 = vcmp.lt.s32.totalorder %v375, 0
  %v404 = vand.u32 %v375, 2139095040
  %v405 = vshrl.u32 %v404, 23
  %v406 = vsub.s32 %v405, 127
  %v407 = vand.u32 2147483647, %v375
  %v408 = vand.u32 %v407, 8388607
  %v409 = vor.u32 %v408, 8388608
  %v410 = vsub.s32 0, %v409
  %v411 = vadd.s32 %v406, 1
  %vm412 = vcmp.gt.s32.totalorder %v411, 0
  %v413 = vsel %vm412, %v411, 0
  %v414 = vshrl.u32 %v413, 5
  %v415 = vand.u32 %v413, 31
  %v416 = vsub.s32 32, %v415
  %v417 = vshrl.u32 683565275, %v416
  %v418 = vshll.u32 683565275, %v415
  %v419 = vshrl.u32 2475754826, %v416
  %v420 = vor.u32 %v418, %v419
  %v421 = vshll.u32 2475754826, %v415
  %v422 = vshrl.u32 2131351028, %v416
  %v423 = vor.u32 %v421, %v422
  %v424 = vshll.u32 2131351028, %v415
  %v425 = vshrl.u32 2102212464, %v416
  %v426 = vor.u32 %v424, %v425
  %v427 = vshll.u32 2102212464, %v415
  %v428 = vshrl.u32 920167782, %v416
  %v429 = vor.u32 %v427, %v428
  %v430 = vshll.u32 920167782, %v415
  %v431 = vshrl.u32 1326507024, %v416
  %v432 = vor.u32 %v430, %v431
  %vm433 = vcmp.lt.s32.totalorder %v414, 1
  %vm434 = vcmp.lt.s32.totalorder %v414, 2
  %vm435 = vcmp.lt.s32.totalorder %v414, 3
  %vm436 = vcmp.lt.s32.totalorder %v414, 4
  %v437 = vsel %vm433, %v417, %v420
  %v438 = vsel %vm436, %v426, 2102212464
  %v439 = vsel %vm435, %v423, %v438
  %v440 = vsel %vm434, %v437, %v439
  %v441 = vsel %vm433, %v420, %v423
  %v442 = vsel %vm436, %v429, 920167782
  %v443 = vsel %vm435, %v426, %v442
  %v444 = vsel %vm434, %v441, %v443
  %v445 = vsel %vm433, %v423, %v426
  %v446 = vsel %vm436, %v432, 1326507024
  %v447 = vsel %vm435, %v429, %v446
  %v448 = vsel %vm434, %v445, %v447
  %v449 = vshll.u32 %v409, 8
  %v450 = vmul.u32.u64.compose %v449, %v448
  %v451 = vextract.low.u32 %v450
  %v452 = vextract.high.u32 %v450
  %v453 = vmul.u32.u64.compose %v449, %v444
  %v454 = vextract.low.u32 %v453
  %v455 = vextract.high.u32 %v453
  %v456 = vmul.u32 %v449, %v440
  %v457 = vadd.s32 %v452, %v454
  %vm458 = vc.u32 %v452, %v454
  %v459 = vadd.s32 %v455, 1
  %v460 = vsel %vm458, %v459, %v455
  %v461 = vadd.s32 %v456, %v460
  %v462 = vadd.s32 %v461, 536870912
  %v463 = vshrl.u32 %v462, 30
  %v464 = vshll.u32 %v463, 30
  %v465 = vsub.s32 %v461, %v464
  %vm466 = vcmp.lt.s32.totalorder %v465, 0
  %v467 = vsub.s32 0, %v465
  %v468 = vsel %vm466, %v467, %v465
  %v469 = vclz %v468
  %v470 = vsub.s32 %v469, 2
  %vm471 = vcmp.gt.s32.totalorder 0, %v470
  %v472 = vsel %vm471, 0, %v470
  %v473 = vsub.s32 32, %v472
  %v474 = vshll.u32 %v465, %v472
  %v475 = vshrl.u32 %v457, %v473
  %v476 = vor.u32 %v474, %v475
  %v477 = vsub.s32 4294967266, %v472
  %v478 = vadd.s32 %v477, 127
  %v479 = vshll.u32 %v478, 23
  %v480 = vor.u32 4788187, %v479
  %v481 = vand.u32 2147483647, %v480
  %v483 = vcvt.s32.f32 %v476
  %v484 = vmul.f32 %v483, %v481
  %v485 = vxor.u32 %v484, 2147483648
  %v486 = vsel %vm403, %v485, %v484
  %v487 = vsub.s32 4, %v463
  %v488 = vsel %vm403, %v487, %v463
  %v489 = vsel %vm402, %v375, %v486
  %v490 = vsel %vm402, 0, %v488
  %v491 = vcosq.f32.pop %v489
  %v492 = vsinq.f32.pop %v489
  %vm493 = vweird.f32 %v375
  %v494 = vadd.s32 %v490, 3
  %v495 = vand.u32 %v494, 3
  %vm496 = vcmp.lt.s32.totalorder %v495, 2
  %vm497 = vcmp.eq.s32.totalorder %v495, 0
  %v498 = vxor.u32 %v492, 2147483648
  %v499 = vsel %vm497, %v491, %v498
  %vm500 = vcmp.eq.s32.totalorder %v495, 2
  %v501 = vxor.u32 %v491, 2147483648
  %v502 = vsel %vm500, %v501, %v492
  %v503 = vsel %vm496, %v499, %v502
  %v504 = vsel %vm493, nan, %v503
  %v505 = vand.u32 2147483647, %v376
  %vm506 = vcmp.le.f32.partialorder %v505, 0.7853982
  %vm507 = vcmp.lt.s32.totalorder %v376, 0
  %v508 = vand.u32 %v376, 2139095040
  %v509 = vshrl.u32 %v508, 23
  %v510 = vsub.s32 %v509, 127
  %v511 = vand.u32 2147483647, %v376
  %v512 = vand.u32 %v511, 8388607
  %v513 = vor.u32 %v512, 8388608
  %v514 = vsub.s32 0, %v513
  %v515 = vadd.s32 %v510, 1
  %vm516 = vcmp.gt.s32.totalorder %v515, 0
  %v517 = vsel %vm516, %v515, 0
  %v518 = vshrl.u32 %v517, 5
  %v519 = vand.u32 %v517, 31
  %v520 = vsub.s32 32, %v519
  %v521 = vshrl.u32 683565275, %v520
  %v522 = vshll.u32 683565275, %v519
  %v523 = vshrl.u32 2475754826, %v520
  %v524 = vor.u32 %v522, %v523
  %v525 = vshll.u32 2475754826, %v519
  %v526 = vshrl.u32 2131351028, %v520
  %v527 = vor.u32 %v525, %v526
  %v528 = vshll.u32 2131351028, %v519
  %v529 = vshrl.u32 2102212464, %v520
  %v530 = vor.u32 %v528, %v529
  %v531 = vshll.u32 2102212464, %v519
  %v532 = vshrl.u32 920167782, %v520
  %v533 = vor.u32 %v531, %v532
  %v534 = vshll.u32 920167782, %v519
  %v535 = vshrl.u32 1326507024, %v520
  %v536 = vor.u32 %v534, %v535
  %vm537 = vcmp.lt.s32.totalorder %v518, 1
  %vm538 = vcmp.lt.s32.totalorder %v518, 2
  %vm539 = vcmp.lt.s32.totalorder %v518, 3
  %vm540 = vcmp.lt.s32.totalorder %v518, 4
  %v541 = vsel %vm537, %v521, %v524
  %v542 = vsel %vm540, %v530, 2102212464
  %v543 = vsel %vm539, %v527, %v542
  %v544 = vsel %vm538, %v541, %v543
  %v545 = vsel %vm537, %v524, %v527
  %v546 = vsel %vm540, %v533, 920167782
  %v547 = vsel %vm539, %v530, %v546
  %v548 = vsel %vm538, %v545, %v547
  %v549 = vsel %vm537, %v527, %v530
  %v550 = vsel %vm540, %v536, 1326507024
  %v551 = vsel %vm539, %v533, %v550
  %v552 = vsel %vm538, %v549, %v551
  %v553 = vshll.u32 %v513, 8
  %v554 = vmul.u32.u64.compose %v553, %v552
  %v555 = vextract.low.u32 %v554
  %v556 = vextract.high.u32 %v554
  %v557 = vmul.u32.u64.compose %v553, %v548
  %v558 = vextract.low.u32 %v557
  %v559 = vextract.high.u32 %v557
  %v560 = vmul.u32 %v553, %v544
  %v561 = vadd.s32 %v556, %v558
  %vm562 = vc.u32 %v556, %v558
  %v563 = vadd.s32 %v559, 1
  %v564 = vsel %vm562, %v563, %v559
  %v565 = vadd.s32 %v560, %v564
  %v566 = vadd.s32 %v565, 536870912
  %v567 = vshrl.u32 %v566, 30
  %v568 = vshll.u32 %v567, 30
  %v569 = vsub.s32 %v565, %v568
  %vm570 = vcmp.lt.s32.totalorder %v569, 0
  %v571 = vsub.s32 0, %v569
  %v572 = vsel %vm570, %v571, %v569
  %v573 = vclz %v572
  %v574 = vsub.s32 %v573, 2
  %vm575 = vcmp.gt.s32.totalorder 0, %v574
  %v576 = vsel %vm575, 0, %v574
  %v577 = vsub.s32 32, %v576
  %v578 = vshll.u32 %v569, %v576
  %v579 = vshrl.u32 %v561, %v577
  %v580 = vor.u32 %v578, %v579
  %v581 = vsub.s32 4294967266, %v576
  %v582 = vadd.s32 %v581, 127
  %v583 = vshll.u32 %v582, 23
  %v584 = vor.u32 4788187, %v583
  %v585 = vand.u32 2147483647, %v584
  %v587 = vcvt.s32.f32 %v580
  %v588 = vmul.f32 %v587, %v585
  %v589 = vxor.u32 %v588, 2147483648
  %v590 = vsel %vm507, %v589, %v588
  %v591 = vsub.s32 4, %v567
  %v592 = vsel %vm507, %v591, %v567
  %v593 = vsel %vm506, %v376, %v590
  %v594 = vsel %vm506, 0, %v592
  %v595 = vcosq.f32.pop %v593
  %v596 = vsinq.f32.pop %v593
  %vm597 = vweird.f32 %v376
  %v598 = vadd.s32 %v594, 3
  %v599 = vand.u32 %v598, 3
  %vm600 = vcmp.lt.s32.totalorder %v599, 2
  %vm601 = vcmp.eq.s32.totalorder %v599, 0
  %v602 = vxor.u32 %v596, 2147483648
  %v603 = vsel %vm601, %v595, %v602
  %vm604 = vcmp.eq.s32.totalorder %v599, 2
  %v605 = vxor.u32 %v595, 2147483648
  %v606 = vsel %vm604, %v605, %v596
  %v607 = vsel %vm600, %v603, %v606
  %v608 = vsel %vm597, nan, %v607
  %v609 = vand.u32 2147483647, %v377
  %vm610 = vcmp.le.f32.partialorder %v609, 0.7853982
  %vm611 = vcmp.lt.s32.totalorder %v377, 0
  %v612 = vand.u32 %v377, 2139095040
  %v613 = vshrl.u32 %v612, 23
  %v614 = vsub.s32 %v613, 127
  %v615 = vand.u32 2147483647, %v377
  %v616 = vand.u32 %v615, 8388607
  %v617 = vor.u32 %v616, 8388608
  %v618 = vsub.s32 0, %v617
  %v619 = vadd.s32 %v614, 1
  %vm620 = vcmp.gt.s32.totalorder %v619, 0
  %v621 = vsel %vm620, %v619, 0
  %v622 = vshrl.u32 %v621, 5
  %v623 = vand.u32 %v621, 31
  %v624 = vsub.s32 32, %v623
  %v625 = vshrl.u32 683565275, %v624
  %v626 = vshll.u32 683565275, %v623
  %v627 = vshrl.u32 2475754826, %v624
  %v628 = vor.u32 %v626, %v627
  %v629 = vshll.u32 2475754826, %v623
  %v630 = vshrl.u32 2131351028, %v624
  %v631 = vor.u32 %v629, %v630
  %v632 = vshll.u32 2131351028, %v623
  %v633 = vshrl.u32 2102212464, %v624
  %v634 = vor.u32 %v632, %v633
  %v635 = vshll.u32 2102212464, %v623
  %v636 = vshrl.u32 920167782, %v624
  %v637 = vor.u32 %v635, %v636
  %v638 = vshll.u32 920167782, %v623
  %v639 = vshrl.u32 1326507024, %v624
  %v640 = vor.u32 %v638, %v639
  %vm641 = vcmp.lt.s32.totalorder %v622, 1
  %vm642 = vcmp.lt.s32.totalorder %v622, 2
  %vm643 = vcmp.lt.s32.totalorder %v622, 3
  %vm644 = vcmp.lt.s32.totalorder %v622, 4
  %v645 = vsel %vm641, %v625, %v628
  %v646 = vsel %vm644, %v634, 2102212464
  %v647 = vsel %vm643, %v631, %v646
  %v648 = vsel %vm642, %v645, %v647
  %v649 = vsel %vm641, %v628, %v631
  %v650 = vsel %vm644, %v637, 920167782
  %v651 = vsel %vm643, %v634, %v650
  %v652 = vsel %vm642, %v649, %v651
  %v653 = vsel %vm641, %v631, %v634
  %v654 = vsel %vm644, %v640, 1326507024
  %v655 = vsel %vm643, %v637, %v654
  %v656 = vsel %vm642, %v653, %v655
  %v657 = vshll.u32 %v617, 8
  %v658 = vmul.u32.u64.compose %v657, %v656
  %v659 = vextract.low.u32 %v658
  %v660 = vextract.high.u32 %v658
  %v661 = vmul.u32.u64.compose %v657, %v652
  %v662 = vextract.low.u32 %v661
  %v663 = vextract.high.u32 %v661
  %v664 = vmul.u32 %v657, %v648
  %v665 = vadd.s32 %v660, %v662
  %vm666 = vc.u32 %v660, %v662
  %v667 = vadd.s32 %v663, 1
  %v668 = vsel %vm666, %v667, %v663
  %v669 = vadd.s32 %v664, %v668
  %v670 = vadd.s32 %v669, 536870912
  %v671 = vshrl.u32 %v670, 30
  %v672 = vshll.u32 %v671, 30
  %v673 = vsub.s32 %v669, %v672
  %vm674 = vcmp.lt.s32.totalorder %v673, 0
  %v675 = vsub.s32 0, %v673
  %v676 = vsel %vm674, %v675, %v673
  %v677 = vclz %v676
  %v678 = vsub.s32 %v677, 2
  %vm679 = vcmp.gt.s32.totalorder 0, %v678
  %v680 = vsel %vm679, 0, %v678
  %v681 = vsub.s32 32, %v680
  %v682 = vshll.u32 %v673, %v680
  %v683 = vshrl.u32 %v665, %v681
  %v684 = vor.u32 %v682, %v683
  %v685 = vsub.s32 4294967266, %v680
  %v686 = vadd.s32 %v685, 127
  %v687 = vshll.u32 %v686, 23
  %v688 = vor.u32 4788187, %v687
  %v689 = vand.u32 2147483647, %v688
  %v691 = vcvt.s32.f32 %v684
  %v692 = vmul.f32 %v691, %v689
  %v693 = vxor.u32 %v692, 2147483648
  %v694 = vsel %vm611, %v693, %v692
  %v695 = vsub.s32 4, %v671
  %v696 = vsel %vm611, %v695, %v671
  %v697 = vsel %vm610, %v377, %v694
  %v698 = vsel %vm610, 0, %v696
  %v699 = vcosq.f32.pop %v697
  %v700 = vsinq.f32.pop %v697
  %vm701 = vweird.f32 %v377
  %v702 = vadd.s32 %v698, 3
  %v703 = vand.u32 %v702, 3
  %vm704 = vcmp.lt.s32.totalorder %v703, 2
  %vm705 = vcmp.eq.s32.totalorder %v703, 0
  %v706 = vxor.u32 %v700, 2147483648
  %v707 = vsel %vm705, %v699, %v706
  %vm708 = vcmp.eq.s32.totalorder %v703, 2
  %v709 = vxor.u32 %v699, 2147483648
  %v710 = vsel %vm708, %v709, %v700
  %v711 = vsel %vm704, %v707, %v710
  %v712 = vsel %vm701, nan, %v711
  %v713 = vand.u32 2147483647, %v378
  %vm714 = vcmp.le.f32.partialorder %v713, 0.7853982
  %vm715 = vcmp.lt.s32.totalorder %v378, 0
  %v716 = vand.u32 %v378, 2139095040
  %v717 = vshrl.u32 %v716, 23
  %v718 = vsub.s32 %v717, 127
  %v719 = vand.u32 2147483647, %v378
  %v720 = vand.u32 %v719, 8388607
  %v721 = vor.u32 %v720, 8388608
  %v722 = vsub.s32 0, %v721
  %v723 = vadd.s32 %v718, 1
  %vm724 = vcmp.gt.s32.totalorder %v723, 0
  %v725 = vsel %vm724, %v723, 0
  %v726 = vshrl.u32 %v725, 5
  %v727 = vand.u32 %v725, 31
  %v728 = vsub.s32 32, %v727
  %v729 = vshrl.u32 683565275, %v728
  %v730 = vshll.u32 683565275, %v727
  %v731 = vshrl.u32 2475754826, %v728
  %v732 = vor.u32 %v730, %v731
  %v733 = vshll.u32 2475754826, %v727
  %v734 = vshrl.u32 2131351028, %v728
  %v735 = vor.u32 %v733, %v734
  %v736 = vshll.u32 2131351028, %v727
  %v737 = vshrl.u32 2102212464, %v728
  %v738 = vor.u32 %v736, %v737
  %v739 = vshll.u32 2102212464, %v727
  %v740 = vshrl.u32 920167782, %v728
  %v741 = vor.u32 %v739, %v740
  %v742 = vshll.u32 920167782, %v727
  %v743 = vshrl.u32 1326507024, %v728
  %v744 = vor.u32 %v742, %v743
  %vm745 = vcmp.lt.s32.totalorder %v726, 1
  %vm746 = vcmp.lt.s32.totalorder %v726, 2
  %vm747 = vcmp.lt.s32.totalorder %v726, 3
  %vm748 = vcmp.lt.s32.totalorder %v726, 4
  %v749 = vsel %vm745, %v729, %v732
  %v750 = vsel %vm748, %v738, 2102212464
  %v751 = vsel %vm747, %v735, %v750
  %v752 = vsel %vm746, %v749, %v751
  %v753 = vsel %vm745, %v732, %v735
  %v754 = vsel %vm748, %v741, 920167782
  %v755 = vsel %vm747, %v738, %v754
  %v756 = vsel %vm746, %v753, %v755
  %v757 = vsel %vm745, %v735, %v738
  %v758 = vsel %vm748, %v744, 1326507024
  %v759 = vsel %vm747, %v741, %v758
  %v760 = vsel %vm746, %v757, %v759
  %v761 = vshll.u32 %v721, 8
  %v762 = vmul.u32.u64.compose %v761, %v760
  %v763 = vextract.low.u32 %v762
  %v764 = vextract.high.u32 %v762
  %v765 = vmul.u32.u64.compose %v761, %v756
  %v766 = vextract.low.u32 %v765
  %v767 = vextract.high.u32 %v765
  %v768 = vmul.u32 %v761, %v752
  %v769 = vadd.s32 %v764, %v766
  %vm770 = vc.u32 %v764, %v766
  %v771 = vadd.s32 %v767, 1
  %v772 = vsel %vm770, %v771, %v767
  %v773 = vadd.s32 %v768, %v772
  %v774 = vadd.s32 %v773, 536870912
  %v775 = vshrl.u32 %v774, 30
  %v776 = vshll.u32 %v775, 30
  %v777 = vsub.s32 %v773, %v776
  %vm778 = vcmp.lt.s32.totalorder %v777, 0
  %v779 = vsub.s32 0, %v777
  %v780 = vsel %vm778, %v779, %v777
  %v781 = vclz %v780
  %v782 = vsub.s32 %v781, 2
  %vm783 = vcmp.gt.s32.totalorder 0, %v782
  %v784 = vsel %vm783, 0, %v782
  %v785 = vsub.s32 32, %v784
  %v786 = vshll.u32 %v777, %v784
  %v787 = vshrl.u32 %v769, %v785
  %v788 = vor.u32 %v786, %v787
  %v789 = vsub.s32 4294967266, %v784
  %v790 = vadd.s32 %v789, 127
  %v791 = vshll.u32 %v790, 23
  %v792 = vor.u32 4788187, %v791
  %v793 = vand.u32 2147483647, %v792
  %v795 = vcvt.s32.f32 %v788
  %v796 = vmul.f32 %v795, %v793
  %v797 = vxor.u32 %v796, 2147483648
  %v798 = vsel %vm715, %v797, %v796
  %v799 = vsub.s32 4, %v775
  %v800 = vsel %vm715, %v799, %v775
  %v801 = vsel %vm714, %v378, %v798
  %v802 = vsel %vm714, 0, %v800
  %v803 = vcosq.f32.pop %v801
  %v804 = vsinq.f32.pop %v801
  %vm805 = vweird.f32 %v378
  %v806 = vadd.s32 %v802, 3
  %v807 = vand.u32 %v806, 3
  %vm808 = vcmp.lt.s32.totalorder %v807, 2
  %vm809 = vcmp.eq.s32.totalorder %v807, 0
  %v810 = vxor.u32 %v804, 2147483648
  %v811 = vsel %vm809, %v803, %v810
  %vm812 = vcmp.eq.s32.totalorder %v807, 2
  %v813 = vxor.u32 %v803, 2147483648
  %v814 = vsel %vm812, %v813, %v804
  %v815 = vsel %vm808, %v811, %v814
  %v816 = vsel %vm805, nan, %v815
  %v817 = vand.u32 2147483647, %v379
  %vm818 = vcmp.le.f32.partialorder %v817, 0.7853982
  %vm819 = vcmp.lt.s32.totalorder %v379, 0
  %v820 = vand.u32 %v379, 2139095040
  %v821 = vshrl.u32 %v820, 23
  %v822 = vsub.s32 %v821, 127
  %v823 = vand.u32 2147483647, %v379
  %v824 = vand.u32 %v823, 8388607
  %v825 = vor.u32 %v824, 8388608
  %v826 = vsub.s32 0, %v825
  %v827 = vadd.s32 %v822, 1
  %vm828 = vcmp.gt.s32.totalorder %v827, 0
  %v829 = vsel %vm828, %v827, 0
  %v830 = vshrl.u32 %v829, 5
  %v831 = vand.u32 %v829, 31
  %v832 = vsub.s32 32, %v831
  %v833 = vshrl.u32 683565275, %v832
  %v834 = vshll.u32 683565275, %v831
  %v835 = vshrl.u32 2475754826, %v832
  %v836 = vor.u32 %v834, %v835
  %v837 = vshll.u32 2475754826, %v831
  %v838 = vshrl.u32 2131351028, %v832
  %v839 = vor.u32 %v837, %v838
  %v840 = vshll.u32 2131351028, %v831
  %v841 = vshrl.u32 2102212464, %v832
  %v842 = vor.u32 %v840, %v841
  %v843 = vshll.u32 2102212464, %v831
  %v844 = vshrl.u32 920167782, %v832
  %v845 = vor.u32 %v843, %v844
  %v846 = vshll.u32 920167782, %v831
  %v847 = vshrl.u32 1326507024, %v832
  %v848 = vor.u32 %v846, %v847
  %vm849 = vcmp.lt.s32.totalorder %v830, 1
  %vm850 = vcmp.lt.s32.totalorder %v830, 2
  %vm851 = vcmp.lt.s32.totalorder %v830, 3
  %vm852 = vcmp.lt.s32.totalorder %v830, 4
  %v853 = vsel %vm849, %v833, %v836
  %v854 = vsel %vm852, %v842, 2102212464
  %v855 = vsel %vm851, %v839, %v854
  %v856 = vsel %vm850, %v853, %v855
  %v857 = vsel %vm849, %v836, %v839
  %v858 = vsel %vm852, %v845, 920167782
  %v859 = vsel %vm851, %v842, %v858
  %v860 = vsel %vm850, %v857, %v859
  %v861 = vsel %vm849, %v839, %v842
  %v862 = vsel %vm852, %v848, 1326507024
  %v863 = vsel %vm851, %v845, %v862
  %v864 = vsel %vm850, %v861, %v863
  %v865 = vshll.u32 %v825, 8
  %v866 = vmul.u32.u64.compose %v865, %v864
  %v867 = vextract.low.u32 %v866
  %v868 = vextract.high.u32 %v866
  %v869 = vmul.u32.u64.compose %v865, %v860
  %v870 = vextract.low.u32 %v869
  %v871 = vextract.high.u32 %v869
  %v872 = vmul.u32 %v865, %v856
  %v873 = vadd.s32 %v868, %v870
  %vm874 = vc.u32 %v868, %v870
  %v875 = vadd.s32 %v871, 1
  %v876 = vsel %vm874, %v875, %v871
  %v877 = vadd.s32 %v872, %v876
  %v878 = vadd.s32 %v877, 536870912
  %v879 = vshrl.u32 %v878, 30
  %v880 = vshll.u32 %v879, 30
  %v881 = vsub.s32 %v877, %v880
  %vm882 = vcmp.lt.s32.totalorder %v881, 0
  %v883 = vsub.s32 0, %v881
  %v884 = vsel %vm882, %v883, %v881
  %v885 = vclz %v884
  %v886 = vsub.s32 %v885, 2
  %vm887 = vcmp.gt.s32.totalorder 0, %v886
  %v888 = vsel %vm887, 0, %v886
  %v889 = vsub.s32 32, %v888
  %v890 = vshll.u32 %v881, %v888
  %v891 = vshrl.u32 %v873, %v889
  %v892 = vor.u32 %v890, %v891
  %v893 = vsub.s32 4294967266, %v888
  %v894 = vadd.s32 %v893, 127
  %v895 = vshll.u32 %v894, 23
  %v896 = vor.u32 4788187, %v895
  %v897 = vand.u32 2147483647, %v896
  %v899 = vcvt.s32.f32 %v892
  %v900 = vmul.f32 %v899, %v897
  %v901 = vxor.u32 %v900, 2147483648
  %v902 = vsel %vm819, %v901, %v900
  %v903 = vsub.s32 4, %v879
  %v904 = vsel %vm819, %v903, %v879
  %v905 = vsel %vm818, %v379, %v902
  %v906 = vsel %vm818, 0, %v904
  %v907 = vcosq.f32.pop %v905
  %v908 = vsinq.f32.pop %v905
  %vm909 = vweird.f32 %v379
  %v910 = vadd.s32 %v906, 3
  %v911 = vand.u32 %v910, 3
  %vm912 = vcmp.lt.s32.totalorder %v911, 2
  %vm913 = vcmp.eq.s32.totalorder %v911, 0
  %v914 = vxor.u32 %v908, 2147483648
  %v915 = vsel %vm913, %v907, %v914
  %vm916 = vcmp.eq.s32.totalorder %v911, 2
  %v917 = vxor.u32 %v907, 2147483648
  %v918 = vsel %vm916, %v917, %v908
  %v919 = vsel %vm912, %v915, %v918
  %v920 = vsel %vm909, nan, %v919
  %v921 = vand.u32 2147483647, %v380
  %vm922 = vcmp.le.f32.partialorder %v921, 0.7853982
  %vm923 = vcmp.lt.s32.totalorder %v380, 0
  %v924 = vand.u32 %v380, 2139095040
  %v925 = vshrl.u32 %v924, 23
  %v926 = vsub.s32 %v925, 127
  %v927 = vand.u32 2147483647, %v380
  %v928 = vand.u32 %v927, 8388607
  %v929 = vor.u32 %v928, 8388608
  %v930 = vsub.s32 0, %v929
  %v931 = vadd.s32 %v926, 1
  %vm932 = vcmp.gt.s32.totalorder %v931, 0
  %v933 = vsel %vm932, %v931, 0
  %v934 = vshrl.u32 %v933, 5
  %v935 = vand.u32 %v933, 31
  %v936 = vsub.s32 32, %v935
  %v937 = vshrl.u32 683565275, %v936
  %v938 = vshll.u32 683565275, %v935
  %v939 = vshrl.u32 2475754826, %v936
  %v940 = vor.u32 %v938, %v939
  %v941 = vshll.u32 2475754826, %v935
  %v942 = vshrl.u32 2131351028, %v936
  %v943 = vor.u32 %v941, %v942
  %v944 = vshll.u32 2131351028, %v935
  %v945 = vshrl.u32 2102212464, %v936
  %v946 = vor.u32 %v944, %v945
  %v947 = vshll.u32 2102212464, %v935
  %v948 = vshrl.u32 920167782, %v936
  %v949 = vor.u32 %v947, %v948
  %v950 = vshll.u32 920167782, %v935
  %v951 = vshrl.u32 1326507024, %v936
  %v952 = vor.u32 %v950, %v951
  %vm953 = vcmp.lt.s32.totalorder %v934, 1
  %vm954 = vcmp.lt.s32.totalorder %v934, 2
  %vm955 = vcmp.lt.s32.totalorder %v934, 3
  %vm956 = vcmp.lt.s32.totalorder %v934, 4
  %v957 = vsel %vm953, %v937, %v940
  %v958 = vsel %vm956, %v946, 2102212464
  %v959 = vsel %vm955, %v943, %v958
  %v960 = vsel %vm954, %v957, %v959
  %v961 = vsel %vm953, %v940, %v943
  %v962 = vsel %vm956, %v949, 920167782
  %v963 = vsel %vm955, %v946, %v962
  %v964 = vsel %vm954, %v961, %v963
  %v965 = vsel %vm953, %v943, %v946
  %v966 = vsel %vm956, %v952, 1326507024
  %v967 = vsel %vm955, %v949, %v966
  %v968 = vsel %vm954, %v965, %v967
  %v969 = vshll.u32 %v929, 8
  %v970 = vmul.u32.u64.compose %v969, %v968
  %v971 = vextract.low.u32 %v970
  %v972 = vextract.high.u32 %v970
  %v973 = vmul.u32.u64.compose %v969, %v964
  %v974 = vextract.low.u32 %v973
  %v975 = vextract.high.u32 %v973
  %v976 = vmul.u32 %v969, %v960
  %v977 = vadd.s32 %v972, %v974
  %vm978 = vc.u32 %v972, %v974
  %v979 = vadd.s32 %v975, 1
  %v980 = vsel %vm978, %v979, %v975
  %v981 = vadd.s32 %v976, %v980
  %v982 = vadd.s32 %v981, 536870912
  %v983 = vshrl.u32 %v982, 30
  %v984 = vshll.u32 %v983, 30
  %v985 = vsub.s32 %v981, %v984
  %vm986 = vcmp.lt.s32.totalorder %v985, 0
  %v987 = vsub.s32 0, %v985
  %v988 = vsel %vm986, %v987, %v985
  %v989 = vclz %v988
  %v990 = vsub.s32 %v989, 2
  %vm991 = vcmp.gt.s32.totalorder 0, %v990
  %v992 = vsel %vm991, 0, %v990
  %v993 = vsub.s32 32, %v992
  %v994 = vshll.u32 %v985, %v992
  %v995 = vshrl.u32 %v977, %v993
  %v996 = vor.u32 %v994, %v995
  %v997 = vsub.s32 4294967266, %v992
  %v998 = vadd.s32 %v997, 127
  %v999 = vshll.u32 %v998, 23
  %v1000 = vor.u32 4788187, %v999
  %v1001 = vand.u32 2147483647, %v1000
  %v1003 = vcvt.s32.f32 %v996
  %v1004 = vmul.f32 %v1003, %v1001
  %v1005 = vxor.u32 %v1004, 2147483648
  %v1006 = vsel %vm923, %v1005, %v1004
  %v1007 = vsub.s32 4, %v983
  %v1008 = vsel %vm923, %v1007, %v983
  %v1009 = vsel %vm922, %v380, %v1006
  %v1010 = vsel %vm922, 0, %v1008
  %v1011 = vcosq.f32.pop %v1009
  %v1012 = vsinq.f32.pop %v1009
  %vm1013 = vweird.f32 %v380
  %v1014 = vadd.s32 %v1010, 3
  %v1015 = vand.u32 %v1014, 3
  %vm1016 = vcmp.lt.s32.totalorder %v1015, 2
  %vm1017 = vcmp.eq.s32.totalorder %v1015, 0
  %v1018 = vxor.u32 %v1012, 2147483648
  %v1019 = vsel %vm1017, %v1011, %v1018
  %vm1020 = vcmp.eq.s32.totalorder %v1015, 2
  %v1021 = vxor.u32 %v1011, 2147483648
  %v1022 = vsel %vm1020, %v1021, %v1012
  %v1023 = vsel %vm1016, %v1019, %v1022
  %v1024 = vsel %vm1013, nan, %v1023
  %v1025 = vand.u32 2147483647, %v381
  %vm1026 = vcmp.le.f32.partialorder %v1025, 0.7853982
  %vm1027 = vcmp.lt.s32.totalorder %v381, 0
  %v1028 = vand.u32 %v381, 2139095040
  %v1029 = vshrl.u32 %v1028, 23
  %v1030 = vsub.s32 %v1029, 127
  %v1031 = vand.u32 2147483647, %v381
  %v1032 = vand.u32 %v1031, 8388607
  %v1033 = vor.u32 %v1032, 8388608
  %v1034 = vsub.s32 0, %v1033
  %v1035 = vadd.s32 %v1030, 1
  %vm1036 = vcmp.gt.s32.totalorder %v1035, 0
  %v1037 = vsel %vm1036, %v1035, 0
  %v1038 = vshrl.u32 %v1037, 5
  %v1039 = vand.u32 %v1037, 31
  %v1040 = vsub.s32 32, %v1039
  %v1041 = vshrl.u32 683565275, %v1040
  %v1042 = vshll.u32 683565275, %v1039
  %v1043 = vshrl.u32 2475754826, %v1040
  %v1044 = vor.u32 %v1042, %v1043
  %v1045 = vshll.u32 2475754826, %v1039
  %v1046 = vshrl.u32 2131351028, %v1040
  %v1047 = vor.u32 %v1045, %v1046
  %v1048 = vshll.u32 2131351028, %v1039
  %v1049 = vshrl.u32 2102212464, %v1040
  %v1050 = vor.u32 %v1048, %v1049
  %v1051 = vshll.u32 2102212464, %v1039
  %v1052 = vshrl.u32 920167782, %v1040
  %v1053 = vor.u32 %v1051, %v1052
  %v1054 = vshll.u32 920167782, %v1039
  %v1055 = vshrl.u32 1326507024, %v1040
  %v1056 = vor.u32 %v1054, %v1055
  %vm1057 = vcmp.lt.s32.totalorder %v1038, 1
  %vm1058 = vcmp.lt.s32.totalorder %v1038, 2
  %vm1059 = vcmp.lt.s32.totalorder %v1038, 3
  %vm1060 = vcmp.lt.s32.totalorder %v1038, 4
  %v1061 = vsel %vm1057, %v1041, %v1044
  %v1062 = vsel %vm1060, %v1050, 2102212464
  %v1063 = vsel %vm1059, %v1047, %v1062
  %v1064 = vsel %vm1058, %v1061, %v1063
  %v1065 = vsel %vm1057, %v1044, %v1047
  %v1066 = vsel %vm1060, %v1053, 920167782
  %v1067 = vsel %vm1059, %v1050, %v1066
  %v1068 = vsel %vm1058, %v1065, %v1067
  %v1069 = vsel %vm1057, %v1047, %v1050
  %v1070 = vsel %vm1060, %v1056, 1326507024
  %v1071 = vsel %vm1059, %v1053, %v1070
  %v1072 = vsel %vm1058, %v1069, %v1071
  %v1073 = vshll.u32 %v1033, 8
  %v1074 = vmul.u32.u64.compose %v1073, %v1072
  %v1075 = vextract.low.u32 %v1074
  %v1076 = vextract.high.u32 %v1074
  %v1077 = vmul.u32.u64.compose %v1073, %v1068
  %v1078 = vextract.low.u32 %v1077
  %v1079 = vextract.high.u32 %v1077
  %v1080 = vmul.u32 %v1073, %v1064
  %v1081 = vadd.s32 %v1076, %v1078
  %vm1082 = vc.u32 %v1076, %v1078
  %v1083 = vadd.s32 %v1079, 1
  %v1084 = vsel %vm1082, %v1083, %v1079
  %v1085 = vadd.s32 %v1080, %v1084
  %v1086 = vadd.s32 %v1085, 536870912
  %v1087 = vshrl.u32 %v1086, 30
  %v1088 = vshll.u32 %v1087, 30
  %v1089 = vsub.s32 %v1085, %v1088
  %vm1090 = vcmp.lt.s32.totalorder %v1089, 0
  %v1091 = vsub.s32 0, %v1089
  %v1092 = vsel %vm1090, %v1091, %v1089
  %v1093 = vclz %v1092
  %v1094 = vsub.s32 %v1093, 2
  %vm1095 = vcmp.gt.s32.totalorder 0, %v1094
  %v1096 = vsel %vm1095, 0, %v1094
  %v1097 = vsub.s32 32, %v1096
  %v1098 = vshll.u32 %v1089, %v1096
  %v1099 = vshrl.u32 %v1081, %v1097
  %v1100 = vor.u32 %v1098, %v1099
  %v1101 = vsub.s32 4294967266, %v1096
  %v1102 = vadd.s32 %v1101, 127
  %v1103 = vshll.u32 %v1102, 23
  %v1104 = vor.u32 4788187, %v1103
  %v1105 = vand.u32 2147483647, %v1104
  %v1107 = vcvt.s32.f32 %v1100
  %v1108 = vmul.f32 %v1107, %v1105
  %v1109 = vxor.u32 %v1108, 2147483648
  %v1110 = vsel %vm1027, %v1109, %v1108
  %v1111 = vsub.s32 4, %v1087
  %v1112 = vsel %vm1027, %v1111, %v1087
  %v1113 = vsel %vm1026, %v381, %v1110
  %v1114 = vsel %vm1026, 0, %v1112
  %v1115 = vcosq.f32.pop %v1113
  %v1116 = vsinq.f32.pop %v1113
  %vm1117 = vweird.f32 %v381
  %v1118 = vadd.s32 %v1114, 3
  %v1119 = vand.u32 %v1118, 3
  %vm1120 = vcmp.lt.s32.totalorder %v1119, 2
  %vm1121 = vcmp.eq.s32.totalorder %v1119, 0
  %v1122 = vxor.u32 %v1116, 2147483648
  %v1123 = vsel %vm1121, %v1115, %v1122
  %vm1124 = vcmp.eq.s32.totalorder %v1119, 2
  %v1125 = vxor.u32 %v1115, 2147483648
  %v1126 = vsel %vm1124, %v1125, %v1116
  %v1127 = vsel %vm1120, %v1123, %v1126
  %v1128 = vsel %vm1117, nan, %v1127
  %v1129 = vand.u32 2147483647, %v382
  %vm1130 = vcmp.le.f32.partialorder %v1129, 0.7853982
  %vm1131 = vcmp.lt.s32.totalorder %v382, 0
  %v1132 = vand.u32 %v382, 2139095040
  %v1133 = vshrl.u32 %v1132, 23
  %v1134 = vsub.s32 %v1133, 127
  %v1135 = vand.u32 2147483647, %v382
  %v1136 = vand.u32 %v1135, 8388607
  %v1137 = vor.u32 %v1136, 8388608
  %v1138 = vsub.s32 0, %v1137
  %v1139 = vadd.s32 %v1134, 1
  %vm1140 = vcmp.gt.s32.totalorder %v1139, 0
  %v1141 = vsel %vm1140, %v1139, 0
  %v1142 = vshrl.u32 %v1141, 5
  %v1143 = vand.u32 %v1141, 31
  %v1144 = vsub.s32 32, %v1143
  %v1145 = vshrl.u32 683565275, %v1144
  %v1146 = vshll.u32 683565275, %v1143
  %v1147 = vshrl.u32 2475754826, %v1144
  %v1148 = vor.u32 %v1146, %v1147
  %v1149 = vshll.u32 2475754826, %v1143
  %v1150 = vshrl.u32 2131351028, %v1144
  %v1151 = vor.u32 %v1149, %v1150
  %v1152 = vshll.u32 2131351028, %v1143
  %v1153 = vshrl.u32 2102212464, %v1144
  %v1154 = vor.u32 %v1152, %v1153
  %v1155 = vshll.u32 2102212464, %v1143
  %v1156 = vshrl.u32 920167782, %v1144
  %v1157 = vor.u32 %v1155, %v1156
  %v1158 = vshll.u32 920167782, %v1143
  %v1159 = vshrl.u32 1326507024, %v1144
  %v1160 = vor.u32 %v1158, %v1159
  %vm1161 = vcmp.lt.s32.totalorder %v1142, 1
  %vm1162 = vcmp.lt.s32.totalorder %v1142, 2
  %vm1163 = vcmp.lt.s32.totalorder %v1142, 3
  %vm1164 = vcmp.lt.s32.totalorder %v1142, 4
  %v1165 = vsel %vm1161, %v1145, %v1148
  %v1166 = vsel %vm1164, %v1154, 2102212464
  %v1167 = vsel %vm1163, %v1151, %v1166
  %v1168 = vsel %vm1162, %v1165, %v1167
  %v1169 = vsel %vm1161, %v1148, %v1151
  %v1170 = vsel %vm1164, %v1157, 920167782
  %v1171 = vsel %vm1163, %v1154, %v1170
  %v1172 = vsel %vm1162, %v1169, %v1171
  %v1173 = vsel %vm1161, %v1151, %v1154
  %v1174 = vsel %vm1164, %v1160, 1326507024
  %v1175 = vsel %vm1163, %v1157, %v1174
  %v1176 = vsel %vm1162, %v1173, %v1175
  %v1177 = vshll.u32 %v1137, 8
  %v1178 = vmul.u32.u64.compose %v1177, %v1176
  %v1179 = vextract.low.u32 %v1178
  %v1180 = vextract.high.u32 %v1178
  %v1181 = vmul.u32.u64.compose %v1177, %v1172
  %v1182 = vextract.low.u32 %v1181
  %v1183 = vextract.high.u32 %v1181
  %v1184 = vmul.u32 %v1177, %v1168
  %v1185 = vadd.s32 %v1180, %v1182
  %vm1186 = vc.u32 %v1180, %v1182
  %v1187 = vadd.s32 %v1183, 1
  %v1188 = vsel %vm1186, %v1187, %v1183
  %v1189 = vadd.s32 %v1184, %v1188
  %v1190 = vadd.s32 %v1189, 536870912
  %v1191 = vshrl.u32 %v1190, 30
  %v1192 = vshll.u32 %v1191, 30
  %v1193 = vsub.s32 %v1189, %v1192
  %vm1194 = vcmp.lt.s32.totalorder %v1193, 0
  %v1195 = vsub.s32 0, %v1193
  %v1196 = vsel %vm1194, %v1195, %v1193
  %v1197 = vclz %v1196
  %v1198 = vsub.s32 %v1197, 2
  %vm1199 = vcmp.gt.s32.totalorder 0, %v1198
  %v1200 = vsel %vm1199, 0, %v1198
  %v1201 = vsub.s32 32, %v1200
  %v1202 = vshll.u32 %v1193, %v1200
  %v1203 = vshrl.u32 %v1185, %v1201
  %v1204 = vor.u32 %v1202, %v1203
  %v1205 = vsub.s32 4294967266, %v1200
  %v1206 = vadd.s32 %v1205, 127
  %v1207 = vshll.u32 %v1206, 23
  %v1208 = vor.u32 4788187, %v1207
  %v1209 = vand.u32 2147483647, %v1208
  %v1211 = vcvt.s32.f32 %v1204
  %v1212 = vmul.f32 %v1211, %v1209
  %v1213 = vxor.u32 %v1212, 2147483648
  %v1214 = vsel %vm1131, %v1213, %v1212
  %v1215 = vsub.s32 4, %v1191
  %v1216 = vsel %vm1131, %v1215, %v1191
  %v1217 = vsel %vm1130, %v382, %v1214
  %v1218 = vsel %vm1130, 0, %v1216
  %v1219 = vcosq.f32.pop %v1217
  %v1220 = vsinq.f32.pop %v1217
  %vm1221 = vweird.f32 %v382
  %v1222 = vadd.s32 %v1218, 3
  %v1223 = vand.u32 %v1222, 3
  %vm1224 = vcmp.lt.s32.totalorder %v1223, 2
  %vm1225 = vcmp.eq.s32.totalorder %v1223, 0
  %v1226 = vxor.u32 %v1220, 2147483648
  %v1227 = vsel %vm1225, %v1219, %v1226
  %vm1228 = vcmp.eq.s32.totalorder %v1223, 2
  %v1229 = vxor.u32 %v1219, 2147483648
  %v1230 = vsel %vm1228, %v1229, %v1220
  %v1231 = vsel %vm1224, %v1227, %v1230
  %v1232 = vsel %vm1221, nan, %v1231
  %v1233 = vand.u32 2147483647, %v383
  %vm1234 = vcmp.le.f32.partialorder %v1233, 0.7853982
  %vm1235 = vcmp.lt.s32.totalorder %v383, 0
  %v1236 = vand.u32 %v383, 2139095040
  %v1237 = vshrl.u32 %v1236, 23
  %v1238 = vsub.s32 %v1237, 127
  %v1239 = vand.u32 2147483647, %v383
  %v1240 = vand.u32 %v1239, 8388607
  %v1241 = vor.u32 %v1240, 8388608
  %v1242 = vsub.s32 0, %v1241
  %v1243 = vadd.s32 %v1238, 1
  %vm1244 = vcmp.gt.s32.totalorder %v1243, 0
  %v1245 = vsel %vm1244, %v1243, 0
  %v1246 = vshrl.u32 %v1245, 5
  %v1247 = vand.u32 %v1245, 31
  %v1248 = vsub.s32 32, %v1247
  %v1249 = vshrl.u32 683565275, %v1248
  %v1250 = vshll.u32 683565275, %v1247
  %v1251 = vshrl.u32 2475754826, %v1248
  %v1252 = vor.u32 %v1250, %v1251
  %v1253 = vshll.u32 2475754826, %v1247
  %v1254 = vshrl.u32 2131351028, %v1248
  %v1255 = vor.u32 %v1253, %v1254
  %v1256 = vshll.u32 2131351028, %v1247
  %v1257 = vshrl.u32 2102212464, %v1248
  %v1258 = vor.u32 %v1256, %v1257
  %v1259 = vshll.u32 2102212464, %v1247
  %v1260 = vshrl.u32 920167782, %v1248
  %v1261 = vor.u32 %v1259, %v1260
  %v1262 = vshll.u32 920167782, %v1247
  %v1263 = vshrl.u32 1326507024, %v1248
  %v1264 = vor.u32 %v1262, %v1263
  %vm1265 = vcmp.lt.s32.totalorder %v1246, 1
  %vm1266 = vcmp.lt.s32.totalorder %v1246, 2
  %vm1267 = vcmp.lt.s32.totalorder %v1246, 3
  %vm1268 = vcmp.lt.s32.totalorder %v1246, 4
  %v1269 = vsel %vm1265, %v1249, %v1252
  %v1270 = vsel %vm1268, %v1258, 2102212464
  %v1271 = vsel %vm1267, %v1255, %v1270
  %v1272 = vsel %vm1266, %v1269, %v1271
  %v1273 = vsel %vm1265, %v1252, %v1255
  %v1274 = vsel %vm1268, %v1261, 920167782
  %v1275 = vsel %vm1267, %v1258, %v1274
  %v1276 = vsel %vm1266, %v1273, %v1275
  %v1277 = vsel %vm1265, %v1255, %v1258
  %v1278 = vsel %vm1268, %v1264, 1326507024
  %v1279 = vsel %vm1267, %v1261, %v1278
  %v1280 = vsel %vm1266, %v1277, %v1279
  %v1281 = vshll.u32 %v1241, 8
  %v1282 = vmul.u32.u64.compose %v1281, %v1280
  %v1283 = vextract.low.u32 %v1282
  %v1284 = vextract.high.u32 %v1282
  %v1285 = vmul.u32.u64.compose %v1281, %v1276
  %v1286 = vextract.low.u32 %v1285
  %v1287 = vextract.high.u32 %v1285
  %v1288 = vmul.u32 %v1281, %v1272
  %v1289 = vadd.s32 %v1284, %v1286
  %vm1290 = vc.u32 %v1284, %v1286
  %v1291 = vadd.s32 %v1287, 1
  %v1292 = vsel %vm1290, %v1291, %v1287
  %v1293 = vadd.s32 %v1288, %v1292
  %v1294 = vadd.s32 %v1293, 536870912
  %v1295 = vshrl.u32 %v1294, 30
  %v1296 = vshll.u32 %v1295, 30
  %v1297 = vsub.s32 %v1293, %v1296
  %vm1298 = vcmp.lt.s32.totalorder %v1297, 0
  %v1299 = vsub.s32 0, %v1297
  %v1300 = vsel %vm1298, %v1299, %v1297
  %v1301 = vclz %v1300
  %v1302 = vsub.s32 %v1301, 2
  %vm1303 = vcmp.gt.s32.totalorder 0, %v1302
  %v1304 = vsel %vm1303, 0, %v1302
  %v1305 = vsub.s32 32, %v1304
  %v1306 = vshll.u32 %v1297, %v1304
  %v1307 = vshrl.u32 %v1289, %v1305
  %v1308 = vor.u32 %v1306, %v1307
  %v1309 = vsub.s32 4294967266, %v1304
  %v1310 = vadd.s32 %v1309, 127
  %v1311 = vshll.u32 %v1310, 23
  %v1312 = vor.u32 4788187, %v1311
  %v1313 = vand.u32 2147483647, %v1312
  %v1315 = vcvt.s32.f32 %v1308
  %v1316 = vmul.f32 %v1315, %v1313
  %v1317 = vxor.u32 %v1316, 2147483648
  %v1318 = vsel %vm1235, %v1317, %v1316
  %v1319 = vsub.s32 4, %v1295
  %v1320 = vsel %vm1235, %v1319, %v1295
  %v1321 = vsel %vm1234, %v383, %v1318
  %v1322 = vsel %vm1234, 0, %v1320
  %v1323 = vcosq.f32.pop %v1321
  %v1324 = vsinq.f32.pop %v1321
  %vm1325 = vweird.f32 %v383
  %v1326 = vadd.s32 %v1322, 3
  %v1327 = vand.u32 %v1326, 3
  %vm1328 = vcmp.lt.s32.totalorder %v1327, 2
  %vm1329 = vcmp.eq.s32.totalorder %v1327, 0
  %v1330 = vxor.u32 %v1324, 2147483648
  %v1331 = vsel %vm1329, %v1323, %v1330
  %vm1332 = vcmp.eq.s32.totalorder %v1327, 2
  %v1333 = vxor.u32 %v1323, 2147483648
  %v1334 = vsel %vm1332, %v1333, %v1324
  %v1335 = vsel %vm1328, %v1331, %v1334
  %v1336 = vsel %vm1325, nan, %v1335
  %v1337 = vand.u32 2147483647, %v384
  %vm1338 = vcmp.le.f32.partialorder %v1337, 0.7853982
  %vm1339 = vcmp.lt.s32.totalorder %v384, 0
  %v1340 = vand.u32 %v384, 2139095040
  %v1341 = vshrl.u32 %v1340, 23
  %v1342 = vsub.s32 %v1341, 127
  %v1343 = vand.u32 2147483647, %v384
  %v1344 = vand.u32 %v1343, 8388607
  %v1345 = vor.u32 %v1344, 8388608
  %v1346 = vsub.s32 0, %v1345
  %v1347 = vadd.s32 %v1342, 1
  %vm1348 = vcmp.gt.s32.totalorder %v1347, 0
  %v1349 = vsel %vm1348, %v1347, 0
  %v1350 = vshrl.u32 %v1349, 5
  %v1351 = vand.u32 %v1349, 31
  %v1352 = vsub.s32 32, %v1351
  %v1353 = vshrl.u32 683565275, %v1352
  %v1354 = vshll.u32 683565275, %v1351
  %v1355 = vshrl.u32 2475754826, %v1352
  %v1356 = vor.u32 %v1354, %v1355
  %v1357 = vshll.u32 2475754826, %v1351
  %v1358 = vshrl.u32 2131351028, %v1352
  %v1359 = vor.u32 %v1357, %v1358
  %v1360 = vshll.u32 2131351028, %v1351
  %v1361 = vshrl.u32 2102212464, %v1352
  %v1362 = vor.u32 %v1360, %v1361
  %v1363 = vshll.u32 2102212464, %v1351
  %v1364 = vshrl.u32 920167782, %v1352
  %v1365 = vor.u32 %v1363, %v1364
  %v1366 = vshll.u32 920167782, %v1351
  %v1367 = vshrl.u32 1326507024, %v1352
  %v1368 = vor.u32 %v1366, %v1367
  %vm1369 = vcmp.lt.s32.totalorder %v1350, 1
  %vm1370 = vcmp.lt.s32.totalorder %v1350, 2
  %vm1371 = vcmp.lt.s32.totalorder %v1350, 3
  %vm1372 = vcmp.lt.s32.totalorder %v1350, 4
  %v1373 = vsel %vm1369, %v1353, %v1356
  %v1374 = vsel %vm1372, %v1362, 2102212464
  %v1375 = vsel %vm1371, %v1359, %v1374
  %v1376 = vsel %vm1370, %v1373, %v1375
  %v1377 = vsel %vm1369, %v1356, %v1359
  %v1378 = vsel %vm1372, %v1365, 920167782
  %v1379 = vsel %vm1371, %v1362, %v1378
  %v1380 = vsel %vm1370, %v1377, %v1379
  %v1381 = vsel %vm1369, %v1359, %v1362
  %v1382 = vsel %vm1372, %v1368, 1326507024
  %v1383 = vsel %vm1371, %v1365, %v1382
  %v1384 = vsel %vm1370, %v1381, %v1383
  %v1385 = vshll.u32 %v1345, 8
  %v1386 = vmul.u32.u64.compose %v1385, %v1384
  %v1387 = vextract.low.u32 %v1386
  %v1388 = vextract.high.u32 %v1386
  %v1389 = vmul.u32.u64.compose %v1385, %v1380
  %v1390 = vextract.low.u32 %v1389
  %v1391 = vextract.high.u32 %v1389
  %v1392 = vmul.u32 %v1385, %v1376
  %v1393 = vadd.s32 %v1388, %v1390
  %vm1394 = vc.u32 %v1388, %v1390
  %v1395 = vadd.s32 %v1391, 1
  %v1396 = vsel %vm1394, %v1395, %v1391
  %v1397 = vadd.s32 %v1392, %v1396
  %v1398 = vadd.s32 %v1397, 536870912
  %v1399 = vshrl.u32 %v1398, 30
  %v1400 = vshll.u32 %v1399, 30
  %v1401 = vsub.s32 %v1397, %v1400
  %vm1402 = vcmp.lt.s32.totalorder %v1401, 0
  %v1403 = vsub.s32 0, %v1401
  %v1404 = vsel %vm1402, %v1403, %v1401
  %v1405 = vclz %v1404
  %v1406 = vsub.s32 %v1405, 2
  %vm1407 = vcmp.gt.s32.totalorder 0, %v1406
  %v1408 = vsel %vm1407, 0, %v1406
  %v1409 = vsub.s32 32, %v1408
  %v1410 = vshll.u32 %v1401, %v1408
  %v1411 = vshrl.u32 %v1393, %v1409
  %v1412 = vor.u32 %v1410, %v1411
  %v1413 = vsub.s32 4294967266, %v1408
  %v1414 = vadd.s32 %v1413, 127
  %v1415 = vshll.u32 %v1414, 23
  %v1416 = vor.u32 4788187, %v1415
  %v1417 = vand.u32 2147483647, %v1416
  %v1419 = vcvt.s32.f32 %v1412
  %v1420 = vmul.f32 %v1419, %v1417
  %v1421 = vxor.u32 %v1420, 2147483648
  %v1422 = vsel %vm1339, %v1421, %v1420
  %v1423 = vsub.s32 4, %v1399
  %v1424 = vsel %vm1339, %v1423, %v1399
  %v1425 = vsel %vm1338, %v384, %v1422
  %v1426 = vsel %vm1338, 0, %v1424
  %v1427 = vcosq.f32.pop %v1425
  %v1428 = vsinq.f32.pop %v1425
  %vm1429 = vweird.f32 %v384
  %v1430 = vadd.s32 %v1426, 3
  %v1431 = vand.u32 %v1430, 3
  %vm1432 = vcmp.lt.s32.totalorder %v1431, 2
  %vm1433 = vcmp.eq.s32.totalorder %v1431, 0
  %v1434 = vxor.u32 %v1428, 2147483648
  %v1435 = vsel %vm1433, %v1427, %v1434
  %vm1436 = vcmp.eq.s32.totalorder %v1431, 2
  %v1437 = vxor.u32 %v1427, 2147483648
  %v1438 = vsel %vm1436, %v1437, %v1428
  %v1439 = vsel %vm1432, %v1435, %v1438
  %v1440 = vsel %vm1429, nan, %v1439
  %v1441 = vand.u32 2147483647, %v385
  %vm1442 = vcmp.le.f32.partialorder %v1441, 0.7853982
  %vm1443 = vcmp.lt.s32.totalorder %v385, 0
  %v1444 = vand.u32 %v385, 2139095040
  %v1445 = vshrl.u32 %v1444, 23
  %v1446 = vsub.s32 %v1445, 127
  %v1447 = vand.u32 2147483647, %v385
  %v1448 = vand.u32 %v1447, 8388607
  %v1449 = vor.u32 %v1448, 8388608
  %v1450 = vsub.s32 0, %v1449
  %v1451 = vadd.s32 %v1446, 1
  %vm1452 = vcmp.gt.s32.totalorder %v1451, 0
  %v1453 = vsel %vm1452, %v1451, 0
  %v1454 = vshrl.u32 %v1453, 5
  %v1455 = vand.u32 %v1453, 31
  %v1456 = vsub.s32 32, %v1455
  %v1457 = vshrl.u32 683565275, %v1456
  %v1458 = vshll.u32 683565275, %v1455
  %v1459 = vshrl.u32 2475754826, %v1456
  %v1460 = vor.u32 %v1458, %v1459
  %v1461 = vshll.u32 2475754826, %v1455
  %v1462 = vshrl.u32 2131351028, %v1456
  %v1463 = vor.u32 %v1461, %v1462
  %v1464 = vshll.u32 2131351028, %v1455
  %v1465 = vshrl.u32 2102212464, %v1456
  %v1466 = vor.u32 %v1464, %v1465
  %v1467 = vshll.u32 2102212464, %v1455
  %v1468 = vshrl.u32 920167782, %v1456
  %v1469 = vor.u32 %v1467, %v1468
  %v1470 = vshll.u32 920167782, %v1455
  %v1471 = vshrl.u32 1326507024, %v1456
  %v1472 = vor.u32 %v1470, %v1471
  %vm1473 = vcmp.lt.s32.totalorder %v1454, 1
  %vm1474 = vcmp.lt.s32.totalorder %v1454, 2
  %vm1475 = vcmp.lt.s32.totalorder %v1454, 3
  %vm1476 = vcmp.lt.s32.totalorder %v1454, 4
  %v1477 = vsel %vm1473, %v1457, %v1460
  %v1478 = vsel %vm1476, %v1466, 2102212464
  %v1479 = vsel %vm1475, %v1463, %v1478
  %v1480 = vsel %vm1474, %v1477, %v1479
  %v1481 = vsel %vm1473, %v1460, %v1463
  %v1482 = vsel %vm1476, %v1469, 920167782
  %v1483 = vsel %vm1475, %v1466, %v1482
  %v1484 = vsel %vm1474, %v1481, %v1483
  %v1485 = vsel %vm1473, %v1463, %v1466
  %v1486 = vsel %vm1476, %v1472, 1326507024
  %v1487 = vsel %vm1475, %v1469, %v1486
  %v1488 = vsel %vm1474, %v1485, %v1487
  %v1489 = vshll.u32 %v1449, 8
  %v1490 = vmul.u32.u64.compose %v1489, %v1488
  %v1491 = vextract.low.u32 %v1490
  %v1492 = vextract.high.u32 %v1490
  %v1493 = vmul.u32.u64.compose %v1489, %v1484
  %v1494 = vextract.low.u32 %v1493
  %v1495 = vextract.high.u32 %v1493
  %v1496 = vmul.u32 %v1489, %v1480
  %v1497 = vadd.s32 %v1492, %v1494
  %vm1498 = vc.u32 %v1492, %v1494
  %v1499 = vadd.s32 %v1495, 1
  %v1500 = vsel %vm1498, %v1499, %v1495
  %v1501 = vadd.s32 %v1496, %v1500
  %v1502 = vadd.s32 %v1501, 536870912
  %v1503 = vshrl.u32 %v1502, 30
  %v1504 = vshll.u32 %v1503, 30
  %v1505 = vsub.s32 %v1501, %v1504
  %vm1506 = vcmp.lt.s32.totalorder %v1505, 0
  %v1507 = vsub.s32 0, %v1505
  %v1508 = vsel %vm1506, %v1507, %v1505
  %v1509 = vclz %v1508
  %v1510 = vsub.s32 %v1509, 2
  %vm1511 = vcmp.gt.s32.totalorder 0, %v1510
  %v1512 = vsel %vm1511, 0, %v1510
  %v1513 = vsub.s32 32, %v1512
  %v1514 = vshll.u32 %v1505, %v1512
  %v1515 = vshrl.u32 %v1497, %v1513
  %v1516 = vor.u32 %v1514, %v1515
  %v1517 = vsub.s32 4294967266, %v1512
  %v1518 = vadd.s32 %v1517, 127
  %v1519 = vshll.u32 %v1518, 23
  %v1520 = vor.u32 4788187, %v1519
  %v1521 = vand.u32 2147483647, %v1520
  %v1523 = vcvt.s32.f32 %v1516
  %v1524 = vmul.f32 %v1523, %v1521
  %v1525 = vxor.u32 %v1524, 2147483648
  %v1526 = vsel %vm1443, %v1525, %v1524
  %v1527 = vsub.s32 4, %v1503
  %v1528 = vsel %vm1443, %v1527, %v1503
  %v1529 = vsel %vm1442, %v385, %v1526
  %v1530 = vsel %vm1442, 0, %v1528
  %v1531 = vcosq.f32.pop %v1529
  %v1532 = vsinq.f32.pop %v1529
  %vm1533 = vweird.f32 %v385
  %v1534 = vadd.s32 %v1530, 3
  %v1535 = vand.u32 %v1534, 3
  %vm1536 = vcmp.lt.s32.totalorder %v1535, 2
  %vm1537 = vcmp.eq.s32.totalorder %v1535, 0
  %v1538 = vxor.u32 %v1532, 2147483648
  %v1539 = vsel %vm1537, %v1531, %v1538
  %vm1540 = vcmp.eq.s32.totalorder %v1535, 2
  %v1541 = vxor.u32 %v1531, 2147483648
  %v1542 = vsel %vm1540, %v1541, %v1532
  %v1543 = vsel %vm1536, %v1539, %v1542
  %v1544 = vsel %vm1533, nan, %v1543
  %v1545 = vand.u32 2147483647, %v386
  %vm1546 = vcmp.le.f32.partialorder %v1545, 0.7853982
  %vm1547 = vcmp.lt.s32.totalorder %v386, 0
  %v1548 = vand.u32 %v386, 2139095040
  %v1549 = vshrl.u32 %v1548, 23
  %v1550 = vsub.s32 %v1549, 127
  %v1551 = vand.u32 2147483647, %v386
  %v1552 = vand.u32 %v1551, 8388607
  %v1553 = vor.u32 %v1552, 8388608
  %v1554 = vsub.s32 0, %v1553
  %v1555 = vadd.s32 %v1550, 1
  %vm1556 = vcmp.gt.s32.totalorder %v1555, 0
  %v1557 = vsel %vm1556, %v1555, 0
  %v1558 = vshrl.u32 %v1557, 5
  %v1559 = vand.u32 %v1557, 31
  %v1560 = vsub.s32 32, %v1559
  %v1561 = vshrl.u32 683565275, %v1560
  %v1562 = vshll.u32 683565275, %v1559
  %v1563 = vshrl.u32 2475754826, %v1560
  %v1564 = vor.u32 %v1562, %v1563
  %v1565 = vshll.u32 2475754826, %v1559
  %v1566 = vshrl.u32 2131351028, %v1560
  %v1567 = vor.u32 %v1565, %v1566
  %v1568 = vshll.u32 2131351028, %v1559
  %v1569 = vshrl.u32 2102212464, %v1560
  %v1570 = vor.u32 %v1568, %v1569
  %v1571 = vshll.u32 2102212464, %v1559
  %v1572 = vshrl.u32 920167782, %v1560
  %v1573 = vor.u32 %v1571, %v1572
  %v1574 = vshll.u32 920167782, %v1559
  %v1575 = vshrl.u32 1326507024, %v1560
  %v1576 = vor.u32 %v1574, %v1575
  %vm1577 = vcmp.lt.s32.totalorder %v1558, 1
  %vm1578 = vcmp.lt.s32.totalorder %v1558, 2
  %vm1579 = vcmp.lt.s32.totalorder %v1558, 3
  %vm1580 = vcmp.lt.s32.totalorder %v1558, 4
  %v1581 = vsel %vm1577, %v1561, %v1564
  %v1582 = vsel %vm1580, %v1570, 2102212464
  %v1583 = vsel %vm1579, %v1567, %v1582
  %v1584 = vsel %vm1578, %v1581, %v1583
  %v1585 = vsel %vm1577, %v1564, %v1567
  %v1586 = vsel %vm1580, %v1573, 920167782
  %v1587 = vsel %vm1579, %v1570, %v1586
  %v1588 = vsel %vm1578, %v1585, %v1587
  %v1589 = vsel %vm1577, %v1567, %v1570
  %v1590 = vsel %vm1580, %v1576, 1326507024
  %v1591 = vsel %vm1579, %v1573, %v1590
  %v1592 = vsel %vm1578, %v1589, %v1591
  %v1593 = vshll.u32 %v1553, 8
  %v1594 = vmul.u32.u64.compose %v1593, %v1592
  %v1595 = vextract.low.u32 %v1594
  %v1596 = vextract.high.u32 %v1594
  %v1597 = vmul.u32.u64.compose %v1593, %v1588
  %v1598 = vextract.low.u32 %v1597
  %v1599 = vextract.high.u32 %v1597
  %v1600 = vmul.u32 %v1593, %v1584
  %v1601 = vadd.s32 %v1596, %v1598
  %vm1602 = vc.u32 %v1596, %v1598
  %v1603 = vadd.s32 %v1599, 1
  %v1604 = vsel %vm1602, %v1603, %v1599
  %v1605 = vadd.s32 %v1600, %v1604
  %v1606 = vadd.s32 %v1605, 536870912
  %v1607 = vshrl.u32 %v1606, 30
  %v1608 = vshll.u32 %v1607, 30
  %v1609 = vsub.s32 %v1605, %v1608
  %vm1610 = vcmp.lt.s32.totalorder %v1609, 0
  %v1611 = vsub.s32 0, %v1609
  %v1612 = vsel %vm1610, %v1611, %v1609
  %v1613 = vclz %v1612
  %v1614 = vsub.s32 %v1613, 2
  %vm1615 = vcmp.gt.s32.totalorder 0, %v1614
  %v1616 = vsel %vm1615, 0, %v1614
  %v1617 = vsub.s32 32, %v1616
  %v1618 = vshll.u32 %v1609, %v1616
  %v1619 = vshrl.u32 %v1601, %v1617
  %v1620 = vor.u32 %v1618, %v1619
  %v1621 = vsub.s32 4294967266, %v1616
  %v1622 = vadd.s32 %v1621, 127
  %v1623 = vshll.u32 %v1622, 23
  %v1624 = vor.u32 4788187, %v1623
  %v1625 = vand.u32 2147483647, %v1624
  %v1627 = vcvt.s32.f32 %v1620
  %v1628 = vmul.f32 %v1627, %v1625
  %v1629 = vxor.u32 %v1628, 2147483648
  %v1630 = vsel %vm1547, %v1629, %v1628
  %v1631 = vsub.s32 4, %v1607
  %v1632 = vsel %vm1547, %v1631, %v1607
  %v1633 = vsel %vm1546, %v386, %v1630
  %v1634 = vsel %vm1546, 0, %v1632
  %v1635 = vcosq.f32.pop %v1633
  %v1636 = vsinq.f32.pop %v1633
  %vm1637 = vweird.f32 %v386
  %v1638 = vadd.s32 %v1634, 3
  %v1639 = vand.u32 %v1638, 3
  %vm1640 = vcmp.lt.s32.totalorder %v1639, 2
  %vm1641 = vcmp.eq.s32.totalorder %v1639, 0
  %v1642 = vxor.u32 %v1636, 2147483648
  %v1643 = vsel %vm1641, %v1635, %v1642
  %vm1644 = vcmp.eq.s32.totalorder %v1639, 2
  %v1645 = vxor.u32 %v1635, 2147483648
  %v1646 = vsel %vm1644, %v1645, %v1636
  %v1647 = vsel %vm1640, %v1643, %v1646
  %v1648 = vsel %vm1637, nan, %v1647
  %v1649 = vand.u32 2147483647, %v387
  %vm1650 = vcmp.le.f32.partialorder %v1649, 0.7853982
  %vm1651 = vcmp.lt.s32.totalorder %v387, 0
  %v1652 = vand.u32 %v387, 2139095040
  %v1653 = vshrl.u32 %v1652, 23
  %v1654 = vsub.s32 %v1653, 127
  %v1655 = vand.u32 2147483647, %v387
  %v1656 = vand.u32 %v1655, 8388607
  %v1657 = vor.u32 %v1656, 8388608
  %v1658 = vsub.s32 0, %v1657
  %v1659 = vadd.s32 %v1654, 1
  %vm1660 = vcmp.gt.s32.totalorder %v1659, 0
  %v1661 = vsel %vm1660, %v1659, 0
  %v1662 = vshrl.u32 %v1661, 5
  %v1663 = vand.u32 %v1661, 31
  %v1664 = vsub.s32 32, %v1663
  %v1665 = vshrl.u32 683565275, %v1664
  %v1666 = vshll.u32 683565275, %v1663
  %v1667 = vshrl.u32 2475754826, %v1664
  %v1668 = vor.u32 %v1666, %v1667
  %v1669 = vshll.u32 2475754826, %v1663
  %v1670 = vshrl.u32 2131351028, %v1664
  %v1671 = vor.u32 %v1669, %v1670
  %v1672 = vshll.u32 2131351028, %v1663
  %v1673 = vshrl.u32 2102212464, %v1664
  %v1674 = vor.u32 %v1672, %v1673
  %v1675 = vshll.u32 2102212464, %v1663
  %v1676 = vshrl.u32 920167782, %v1664
  %v1677 = vor.u32 %v1675, %v1676
  %v1678 = vshll.u32 920167782, %v1663
  %v1679 = vshrl.u32 1326507024, %v1664
  %v1680 = vor.u32 %v1678, %v1679
  %vm1681 = vcmp.lt.s32.totalorder %v1662, 1
  %vm1682 = vcmp.lt.s32.totalorder %v1662, 2
  %vm1683 = vcmp.lt.s32.totalorder %v1662, 3
  %vm1684 = vcmp.lt.s32.totalorder %v1662, 4
  %v1685 = vsel %vm1681, %v1665, %v1668
  %v1686 = vsel %vm1684, %v1674, 2102212464
  %v1687 = vsel %vm1683, %v1671, %v1686
  %v1688 = vsel %vm1682, %v1685, %v1687
  %v1689 = vsel %vm1681, %v1668, %v1671
  %v1690 = vsel %vm1684, %v1677, 920167782
  %v1691 = vsel %vm1683, %v1674, %v1690
  %v1692 = vsel %vm1682, %v1689, %v1691
  %v1693 = vsel %vm1681, %v1671, %v1674
  %v1694 = vsel %vm1684, %v1680, 1326507024
  %v1695 = vsel %vm1683, %v1677, %v1694
  %v1696 = vsel %vm1682, %v1693, %v1695
  %v1697 = vshll.u32 %v1657, 8
  %v1698 = vmul.u32.u64.compose %v1697, %v1696
  %v1699 = vextract.low.u32 %v1698
  %v1700 = vextract.high.u32 %v1698
  %v1701 = vmul.u32.u64.compose %v1697, %v1692
  %v1702 = vextract.low.u32 %v1701
  %v1703 = vextract.high.u32 %v1701
  %v1704 = vmul.u32 %v1697, %v1688
  %v1705 = vadd.s32 %v1700, %v1702
  %vm1706 = vc.u32 %v1700, %v1702
  %v1707 = vadd.s32 %v1703, 1
  %v1708 = vsel %vm1706, %v1707, %v1703
  %v1709 = vadd.s32 %v1704, %v1708
  %v1710 = vadd.s32 %v1709, 536870912
  %v1711 = vshrl.u32 %v1710, 30
  %v1712 = vshll.u32 %v1711, 30
  %v1713 = vsub.s32 %v1709, %v1712
  %vm1714 = vcmp.lt.s32.totalorder %v1713, 0
  %v1715 = vsub.s32 0, %v1713
  %v1716 = vsel %vm1714, %v1715, %v1713
  %v1717 = vclz %v1716
  %v1718 = vsub.s32 %v1717, 2
  %vm1719 = vcmp.gt.s32.totalorder 0, %v1718
  %v1720 = vsel %vm1719, 0, %v1718
  %v1721 = vsub.s32 32, %v1720
  %v1722 = vshll.u32 %v1713, %v1720
  %v1723 = vshrl.u32 %v1705, %v1721
  %v1724 = vor.u32 %v1722, %v1723
  %v1725 = vsub.s32 4294967266, %v1720
  %v1726 = vadd.s32 %v1725, 127
  %v1727 = vshll.u32 %v1726, 23
  %v1728 = vor.u32 4788187, %v1727
  %v1729 = vand.u32 2147483647, %v1728
  %v1731 = vcvt.s32.f32 %v1724
  %v1732 = vmul.f32 %v1731, %v1729
  %v1733 = vxor.u32 %v1732, 2147483648
  %v1734 = vsel %vm1651, %v1733, %v1732
  %v1735 = vsub.s32 4, %v1711
  %v1736 = vsel %vm1651, %v1735, %v1711
  %v1737 = vsel %vm1650, %v387, %v1734
  %v1738 = vsel %vm1650, 0, %v1736
  %v1739 = vcosq.f32.pop %v1737
  %v1740 = vsinq.f32.pop %v1737
  %vm1741 = vweird.f32 %v387
  %v1742 = vadd.s32 %v1738, 3
  %v1743 = vand.u32 %v1742, 3
  %vm1744 = vcmp.lt.s32.totalorder %v1743, 2
  %vm1745 = vcmp.eq.s32.totalorder %v1743, 0
  %v1746 = vxor.u32 %v1740, 2147483648
  %v1747 = vsel %vm1745, %v1739, %v1746
  %vm1748 = vcmp.eq.s32.totalorder %v1743, 2
  %v1749 = vxor.u32 %v1739, 2147483648
  %v1750 = vsel %vm1748, %v1749, %v1740
  %v1751 = vsel %vm1744, %v1747, %v1750
  %v1752 = vsel %vm1741, nan, %v1751
  %v1753 = vand.u32 2147483647, %v388
  %vm1754 = vcmp.le.f32.partialorder %v1753, 0.7853982
  %vm1755 = vcmp.lt.s32.totalorder %v388, 0
  %v1756 = vand.u32 %v388, 2139095040
  %v1757 = vshrl.u32 %v1756, 23
  %v1758 = vsub.s32 %v1757, 127
  %v1759 = vand.u32 2147483647, %v388
  %v1760 = vand.u32 %v1759, 8388607
  %v1761 = vor.u32 %v1760, 8388608
  %v1762 = vsub.s32 0, %v1761
  %v1763 = vadd.s32 %v1758, 1
  %vm1764 = vcmp.gt.s32.totalorder %v1763, 0
  %v1765 = vsel %vm1764, %v1763, 0
  %v1766 = vshrl.u32 %v1765, 5
  %v1767 = vand.u32 %v1765, 31
  %v1768 = vsub.s32 32, %v1767
  %v1769 = vshrl.u32 683565275, %v1768
  %v1770 = vshll.u32 683565275, %v1767
  %v1771 = vshrl.u32 2475754826, %v1768
  %v1772 = vor.u32 %v1770, %v1771
  %v1773 = vshll.u32 2475754826, %v1767
  %v1774 = vshrl.u32 2131351028, %v1768
  %v1775 = vor.u32 %v1773, %v1774
  %v1776 = vshll.u32 2131351028, %v1767
  %v1777 = vshrl.u32 2102212464, %v1768
  %v1778 = vor.u32 %v1776, %v1777
  %v1779 = vshll.u32 2102212464, %v1767
  %v1780 = vshrl.u32 920167782, %v1768
  %v1781 = vor.u32 %v1779, %v1780
  %v1782 = vshll.u32 920167782, %v1767
  %v1783 = vshrl.u32 1326507024, %v1768
  %v1784 = vor.u32 %v1782, %v1783
  %vm1785 = vcmp.lt.s32.totalorder %v1766, 1
  %vm1786 = vcmp.lt.s32.totalorder %v1766, 2
  %vm1787 = vcmp.lt.s32.totalorder %v1766, 3
  %vm1788 = vcmp.lt.s32.totalorder %v1766, 4
  %v1789 = vsel %vm1785, %v1769, %v1772
  %v1790 = vsel %vm1788, %v1778, 2102212464
  %v1791 = vsel %vm1787, %v1775, %v1790
  %v1792 = vsel %vm1786, %v1789, %v1791
  %v1793 = vsel %vm1785, %v1772, %v1775
  %v1794 = vsel %vm1788, %v1781, 920167782
  %v1795 = vsel %vm1787, %v1778, %v1794
  %v1796 = vsel %vm1786, %v1793, %v1795
  %v1797 = vsel %vm1785, %v1775, %v1778
  %v1798 = vsel %vm1788, %v1784, 1326507024
  %v1799 = vsel %vm1787, %v1781, %v1798
  %v1800 = vsel %vm1786, %v1797, %v1799
  %v1801 = vshll.u32 %v1761, 8
  %v1802 = vmul.u32.u64.compose %v1801, %v1800
  %v1803 = vextract.low.u32 %v1802
  %v1804 = vextract.high.u32 %v1802
  %v1805 = vmul.u32.u64.compose %v1801, %v1796
  %v1806 = vextract.low.u32 %v1805
  %v1807 = vextract.high.u32 %v1805
  %v1808 = vmul.u32 %v1801, %v1792
  %v1809 = vadd.s32 %v1804, %v1806
  %vm1810 = vc.u32 %v1804, %v1806
  %v1811 = vadd.s32 %v1807, 1
  %v1812 = vsel %vm1810, %v1811, %v1807
  %v1813 = vadd.s32 %v1808, %v1812
  %v1814 = vadd.s32 %v1813, 536870912
  %v1815 = vshrl.u32 %v1814, 30
  %v1816 = vshll.u32 %v1815, 30
  %v1817 = vsub.s32 %v1813, %v1816
  %vm1818 = vcmp.lt.s32.totalorder %v1817, 0
  %v1819 = vsub.s32 0, %v1817
  %v1820 = vsel %vm1818, %v1819, %v1817
  %v1821 = vclz %v1820
  %v1822 = vsub.s32 %v1821, 2
  %vm1823 = vcmp.gt.s32.totalorder 0, %v1822
  %v1824 = vsel %vm1823, 0, %v1822
  %v1825 = vsub.s32 32, %v1824
  %v1826 = vshll.u32 %v1817, %v1824
  %v1827 = vshrl.u32 %v1809, %v1825
  %v1828 = vor.u32 %v1826, %v1827
  %v1829 = vsub.s32 4294967266, %v1824
  %v1830 = vadd.s32 %v1829, 127
  %v1831 = vshll.u32 %v1830, 23
  %v1832 = vor.u32 4788187, %v1831
  %v1833 = vand.u32 2147483647, %v1832
  %v1835 = vcvt.s32.f32 %v1828
  %v1836 = vmul.f32 %v1835, %v1833
  %v1837 = vxor.u32 %v1836, 2147483648
  %v1838 = vsel %vm1755, %v1837, %v1836
  %v1839 = vsub.s32 4, %v1815
  %v1840 = vsel %vm1755, %v1839, %v1815
  %v1841 = vsel %vm1754, %v388, %v1838
  %v1842 = vsel %vm1754, 0, %v1840
  %v1843 = vcosq.f32.pop %v1841
  %v1844 = vsinq.f32.pop %v1841
  %vm1845 = vweird.f32 %v388
  %v1846 = vadd.s32 %v1842, 3
  %v1847 = vand.u32 %v1846, 3
  %vm1848 = vcmp.lt.s32.totalorder %v1847, 2
  %vm1849 = vcmp.eq.s32.totalorder %v1847, 0
  %v1850 = vxor.u32 %v1844, 2147483648
  %v1851 = vsel %vm1849, %v1843, %v1850
  %vm1852 = vcmp.eq.s32.totalorder %v1847, 2
  %v1853 = vxor.u32 %v1843, 2147483648
  %v1854 = vsel %vm1852, %v1853, %v1844
  %v1855 = vsel %vm1848, %v1851, %v1854
  %v1856 = vsel %vm1845, nan, %v1855
  %v1857 = vand.u32 2147483647, %v389
  %vm1858 = vcmp.le.f32.partialorder %v1857, 0.7853982
  %vm1859 = vcmp.lt.s32.totalorder %v389, 0
  %v1860 = vand.u32 %v389, 2139095040
  %v1861 = vshrl.u32 %v1860, 23
  %v1862 = vsub.s32 %v1861, 127
  %v1863 = vand.u32 2147483647, %v389
  %v1864 = vand.u32 %v1863, 8388607
  %v1865 = vor.u32 %v1864, 8388608
  %v1866 = vsub.s32 0, %v1865
  %v1867 = vadd.s32 %v1862, 1
  %vm1868 = vcmp.gt.s32.totalorder %v1867, 0
  %v1869 = vsel %vm1868, %v1867, 0
  %v1870 = vshrl.u32 %v1869, 5
  %v1871 = vand.u32 %v1869, 31
  %v1872 = vsub.s32 32, %v1871
  %v1873 = vshrl.u32 683565275, %v1872
  %v1874 = vshll.u32 683565275, %v1871
  %v1875 = vshrl.u32 2475754826, %v1872
  %v1876 = vor.u32 %v1874, %v1875
  %v1877 = vshll.u32 2475754826, %v1871
  %v1878 = vshrl.u32 2131351028, %v1872
  %v1879 = vor.u32 %v1877, %v1878
  %v1880 = vshll.u32 2131351028, %v1871
  %v1881 = vshrl.u32 2102212464, %v1872
  %v1882 = vor.u32 %v1880, %v1881
  %v1883 = vshll.u32 2102212464, %v1871
  %v1884 = vshrl.u32 920167782, %v1872
  %v1885 = vor.u32 %v1883, %v1884
  %v1886 = vshll.u32 920167782, %v1871
  %v1887 = vshrl.u32 1326507024, %v1872
  %v1888 = vor.u32 %v1886, %v1887
  %vm1889 = vcmp.lt.s32.totalorder %v1870, 1
  %vm1890 = vcmp.lt.s32.totalorder %v1870, 2
  %vm1891 = vcmp.lt.s32.totalorder %v1870, 3
  %vm1892 = vcmp.lt.s32.totalorder %v1870, 4
  %v1893 = vsel %vm1889, %v1873, %v1876
  %v1894 = vsel %vm1892, %v1882, 2102212464
  %v1895 = vsel %vm1891, %v1879, %v1894
  %v1896 = vsel %vm1890, %v1893, %v1895
  %v1897 = vsel %vm1889, %v1876, %v1879
  %v1898 = vsel %vm1892, %v1885, 920167782
  %v1899 = vsel %vm1891, %v1882, %v1898
  %v1900 = vsel %vm1890, %v1897, %v1899
  %v1901 = vsel %vm1889, %v1879, %v1882
  %v1902 = vsel %vm1892, %v1888, 1326507024
  %v1903 = vsel %vm1891, %v1885, %v1902
  %v1904 = vsel %vm1890, %v1901, %v1903
  %v1905 = vshll.u32 %v1865, 8
  %v1906 = vmul.u32.u64.compose %v1905, %v1904
  %v1907 = vextract.low.u32 %v1906
  %v1908 = vextract.high.u32 %v1906
  %v1909 = vmul.u32.u64.compose %v1905, %v1900
  %v1910 = vextract.low.u32 %v1909
  %v1911 = vextract.high.u32 %v1909
  %v1912 = vmul.u32 %v1905, %v1896
  %v1913 = vadd.s32 %v1908, %v1910
  %vm1914 = vc.u32 %v1908, %v1910
  %v1915 = vadd.s32 %v1911, 1
  %v1916 = vsel %vm1914, %v1915, %v1911
  %v1917 = vadd.s32 %v1912, %v1916
  %v1918 = vadd.s32 %v1917, 536870912
  %v1919 = vshrl.u32 %v1918, 30
  %v1920 = vshll.u32 %v1919, 30
  %v1921 = vsub.s32 %v1917, %v1920
  %vm1922 = vcmp.lt.s32.totalorder %v1921, 0
  %v1923 = vsub.s32 0, %v1921
  %v1924 = vsel %vm1922, %v1923, %v1921
  %v1925 = vclz %v1924
  %v1926 = vsub.s32 %v1925, 2
  %vm1927 = vcmp.gt.s32.totalorder 0, %v1926
  %v1928 = vsel %vm1927, 0, %v1926
  %v1929 = vsub.s32 32, %v1928
  %v1930 = vshll.u32 %v1921, %v1928
  %v1931 = vshrl.u32 %v1913, %v1929
  %v1932 = vor.u32 %v1930, %v1931
  %v1933 = vsub.s32 4294967266, %v1928
  %v1934 = vadd.s32 %v1933, 127
  %v1935 = vshll.u32 %v1934, 23
  %v1936 = vor.u32 4788187, %v1935
  %v1937 = vand.u32 2147483647, %v1936
  %v1939 = vcvt.s32.f32 %v1932
  %v1940 = vmul.f32 %v1939, %v1937
  %v1941 = vxor.u32 %v1940, 2147483648
  %v1942 = vsel %vm1859, %v1941, %v1940
  %v1943 = vsub.s32 4, %v1919
  %v1944 = vsel %vm1859, %v1943, %v1919
  %v1945 = vsel %vm1858, %v389, %v1942
  %v1946 = vsel %vm1858, 0, %v1944
  %v1947 = vcosq.f32.pop %v1945
  %v1948 = vsinq.f32.pop %v1945
  %vm1949 = vweird.f32 %v389
  %v1950 = vadd.s32 %v1946, 3
  %v1951 = vand.u32 %v1950, 3
  %vm1952 = vcmp.lt.s32.totalorder %v1951, 2
  %vm1953 = vcmp.eq.s32.totalorder %v1951, 0
  %v1954 = vxor.u32 %v1948, 2147483648
  %v1955 = vsel %vm1953, %v1947, %v1954
  %vm1956 = vcmp.eq.s32.totalorder %v1951, 2
  %v1957 = vxor.u32 %v1947, 2147483648
  %v1958 = vsel %vm1956, %v1957, %v1948
  %v1959 = vsel %vm1952, %v1955, %v1958
  %v1960 = vsel %vm1949, nan, %v1959
  %v1961 = vand.u32 2147483647, %v390
  %vm1962 = vcmp.le.f32.partialorder %v1961, 0.7853982
  %vm1963 = vcmp.lt.s32.totalorder %v390, 0
  %v1964 = vand.u32 %v390, 2139095040
  %v1965 = vshrl.u32 %v1964, 23
  %v1966 = vsub.s32 %v1965, 127
  %v1967 = vand.u32 2147483647, %v390
  %v1968 = vand.u32 %v1967, 8388607
  %v1969 = vor.u32 %v1968, 8388608
  %v1970 = vsub.s32 0, %v1969
  %v1971 = vadd.s32 %v1966, 1
  %vm1972 = vcmp.gt.s32.totalorder %v1971, 0
  %v1973 = vsel %vm1972, %v1971, 0
  %v1974 = vshrl.u32 %v1973, 5
  %v1975 = vand.u32 %v1973, 31
  %v1976 = vsub.s32 32, %v1975
  %v1977 = vshrl.u32 683565275, %v1976
  %v1978 = vshll.u32 683565275, %v1975
  %v1979 = vshrl.u32 2475754826, %v1976
  %v1980 = vor.u32 %v1978, %v1979
  %v1981 = vshll.u32 2475754826, %v1975
  %v1982 = vshrl.u32 2131351028, %v1976
  %v1983 = vor.u32 %v1981, %v1982
  %v1984 = vshll.u32 2131351028, %v1975
  %v1985 = vshrl.u32 2102212464, %v1976
  %v1986 = vor.u32 %v1984, %v1985
  %v1987 = vshll.u32 2102212464, %v1975
  %v1988 = vshrl.u32 920167782, %v1976
  %v1989 = vor.u32 %v1987, %v1988
  %v1990 = vshll.u32 920167782, %v1975
  %v1991 = vshrl.u32 1326507024, %v1976
  %v1992 = vor.u32 %v1990, %v1991
  %vm1993 = vcmp.lt.s32.totalorder %v1974, 1
  %vm1994 = vcmp.lt.s32.totalorder %v1974, 2
  %vm1995 = vcmp.lt.s32.totalorder %v1974, 3
  %vm1996 = vcmp.lt.s32.totalorder %v1974, 4
  %v1997 = vsel %vm1993, %v1977, %v1980
  %v1998 = vsel %vm1996, %v1986, 2102212464
  %v1999 = vsel %vm1995, %v1983, %v1998
  %v2000 = vsel %vm1994, %v1997, %v1999
  %v2001 = vsel %vm1993, %v1980, %v1983
  %v2002 = vsel %vm1996, %v1989, 920167782
  %v2003 = vsel %vm1995, %v1986, %v2002
  %v2004 = vsel %vm1994, %v2001, %v2003
  %v2005 = vsel %vm1993, %v1983, %v1986
  %v2006 = vsel %vm1996, %v1992, 1326507024
  %v2007 = vsel %vm1995, %v1989, %v2006
  %v2008 = vsel %vm1994, %v2005, %v2007
  %v2009 = vshll.u32 %v1969, 8
  %v2010 = vmul.u32.u64.compose %v2009, %v2008
  %v2011 = vextract.low.u32 %v2010
  %v2012 = vextract.high.u32 %v2010
  %v2013 = vmul.u32.u64.compose %v2009, %v2004
  %v2014 = vextract.low.u32 %v2013
  %v2015 = vextract.high.u32 %v2013
  %v2016 = vmul.u32 %v2009, %v2000
  %v2017 = vadd.s32 %v2012, %v2014
  %vm2018 = vc.u32 %v2012, %v2014
  %v2019 = vadd.s32 %v2015, 1
  %v2020 = vsel %vm2018, %v2019, %v2015
  %v2021 = vadd.s32 %v2016, %v2020
  %v2022 = vadd.s32 %v2021, 536870912
  %v2023 = vshrl.u32 %v2022, 30
  %v2024 = vshll.u32 %v2023, 30
  %v2025 = vsub.s32 %v2021, %v2024
  %vm2026 = vcmp.lt.s32.totalorder %v2025, 0
  %v2027 = vsub.s32 0, %v2025
  %v2028 = vsel %vm2026, %v2027, %v2025
  %v2029 = vclz %v2028
  %v2030 = vsub.s32 %v2029, 2
  %vm2031 = vcmp.gt.s32.totalorder 0, %v2030
  %v2032 = vsel %vm2031, 0, %v2030
  %v2033 = vsub.s32 32, %v2032
  %v2034 = vshll.u32 %v2025, %v2032
  %v2035 = vshrl.u32 %v2017, %v2033
  %v2036 = vor.u32 %v2034, %v2035
  %v2037 = vsub.s32 4294967266, %v2032
  %v2038 = vadd.s32 %v2037, 127
  %v2039 = vshll.u32 %v2038, 23
  %v2040 = vor.u32 4788187, %v2039
  %v2041 = vand.u32 2147483647, %v2040
  %v2043 = vcvt.s32.f32 %v2036
  %v2044 = vmul.f32 %v2043, %v2041
  %v2045 = vxor.u32 %v2044, 2147483648
  %v2046 = vsel %vm1963, %v2045, %v2044
  %v2047 = vsub.s32 4, %v2023
  %v2048 = vsel %vm1963, %v2047, %v2023
  %v2049 = vsel %vm1962, %v390, %v2046
  %v2050 = vsel %vm1962, 0, %v2048
  %v2051 = vcosq.f32.pop %v2049
  %v2052 = vsinq.f32.pop %v2049
  %vm2053 = vweird.f32 %v390
  %v2054 = vadd.s32 %v2050, 3
  %v2055 = vand.u32 %v2054, 3
  %vm2056 = vcmp.lt.s32.totalorder %v2055, 2
  %vm2057 = vcmp.eq.s32.totalorder %v2055, 0
  %v2058 = vxor.u32 %v2052, 2147483648
  %v2059 = vsel %vm2057, %v2051, %v2058
  %vm2060 = vcmp.eq.s32.totalorder %v2055, 2
  %v2061 = vxor.u32 %v2051, 2147483648
  %v2062 = vsel %vm2060, %v2061, %v2052
  %v2063 = vsel %vm2056, %v2059, %v2062
  %v2064 = vsel %vm2053, nan, %v2063
  %v2065 = vand.u32 2147483647, %v391
  %vm2066 = vcmp.le.f32.partialorder %v2065, 0.7853982
  %vm2067 = vcmp.lt.s32.totalorder %v391, 0
  %v2068 = vand.u32 %v391, 2139095040
  %v2069 = vshrl.u32 %v2068, 23
  %v2070 = vsub.s32 %v2069, 127
  %v2071 = vand.u32 2147483647, %v391
  %v2072 = vand.u32 %v2071, 8388607
  %v2073 = vor.u32 %v2072, 8388608
  %v2074 = vsub.s32 0, %v2073
  %v2075 = vadd.s32 %v2070, 1
  %vm2076 = vcmp.gt.s32.totalorder %v2075, 0
  %v2077 = vsel %vm2076, %v2075, 0
  %v2078 = vshrl.u32 %v2077, 5
  %v2079 = vand.u32 %v2077, 31
  %v2080 = vsub.s32 32, %v2079
  %v2081 = vshrl.u32 683565275, %v2080
  %v2082 = vshll.u32 683565275, %v2079
  %v2083 = vshrl.u32 2475754826, %v2080
  %v2084 = vor.u32 %v2082, %v2083
  %v2085 = vshll.u32 2475754826, %v2079
  %v2086 = vshrl.u32 2131351028, %v2080
  %v2087 = vor.u32 %v2085, %v2086
  %v2088 = vshll.u32 2131351028, %v2079
  %v2089 = vshrl.u32 2102212464, %v2080
  %v2090 = vor.u32 %v2088, %v2089
  %v2091 = vshll.u32 2102212464, %v2079
  %v2092 = vshrl.u32 920167782, %v2080
  %v2093 = vor.u32 %v2091, %v2092
  %v2094 = vshll.u32 920167782, %v2079
  %v2095 = vshrl.u32 1326507024, %v2080
  %v2096 = vor.u32 %v2094, %v2095
  %vm2097 = vcmp.lt.s32.totalorder %v2078, 1
  %vm2098 = vcmp.lt.s32.totalorder %v2078, 2
  %vm2099 = vcmp.lt.s32.totalorder %v2078, 3
  %vm2100 = vcmp.lt.s32.totalorder %v2078, 4
  %v2101 = vsel %vm2097, %v2081, %v2084
  %v2102 = vsel %vm2100, %v2090, 2102212464
  %v2103 = vsel %vm2099, %v2087, %v2102
  %v2104 = vsel %vm2098, %v2101, %v2103
  %v2105 = vsel %vm2097, %v2084, %v2087
  %v2106 = vsel %vm2100, %v2093, 920167782
  %v2107 = vsel %vm2099, %v2090, %v2106
  %v2108 = vsel %vm2098, %v2105, %v2107
  %v2109 = vsel %vm2097, %v2087, %v2090
  %v2110 = vsel %vm2100, %v2096, 1326507024
  %v2111 = vsel %vm2099, %v2093, %v2110
  %v2112 = vsel %vm2098, %v2109, %v2111
  %v2113 = vshll.u32 %v2073, 8
  %v2114 = vmul.u32.u64.compose %v2113, %v2112
  %v2115 = vextract.low.u32 %v2114
  %v2116 = vextract.high.u32 %v2114
  %v2117 = vmul.u32.u64.compose %v2113, %v2108
  %v2118 = vextract.low.u32 %v2117
  %v2119 = vextract.high.u32 %v2117
  %v2120 = vmul.u32 %v2113, %v2104
  %v2121 = vadd.s32 %v2116, %v2118
  %vm2122 = vc.u32 %v2116, %v2118
  %v2123 = vadd.s32 %v2119, 1
  %v2124 = vsel %vm2122, %v2123, %v2119
  %v2125 = vadd.s32 %v2120, %v2124
  %v2126 = vadd.s32 %v2125, 536870912
  %v2127 = vshrl.u32 %v2126, 30
  %v2128 = vshll.u32 %v2127, 30
  %v2129 = vsub.s32 %v2125, %v2128
  %vm2130 = vcmp.lt.s32.totalorder %v2129, 0
  %v2131 = vsub.s32 0, %v2129
  %v2132 = vsel %vm2130, %v2131, %v2129
  %v2133 = vclz %v2132
  %v2134 = vsub.s32 %v2133, 2
  %vm2135 = vcmp.gt.s32.totalorder 0, %v2134
  %v2136 = vsel %vm2135, 0, %v2134
  %v2137 = vsub.s32 32, %v2136
  %v2138 = vshll.u32 %v2129, %v2136
  %v2139 = vshrl.u32 %v2121, %v2137
  %v2140 = vor.u32 %v2138, %v2139
  %v2141 = vsub.s32 4294967266, %v2136
  %v2142 = vadd.s32 %v2141, 127
  %v2143 = vshll.u32 %v2142, 23
  %v2144 = vor.u32 4788187, %v2143
  %v2145 = vand.u32 2147483647, %v2144
  %v2147 = vcvt.s32.f32 %v2140
  %v2148 = vmul.f32 %v2147, %v2145
  %v2149 = vxor.u32 %v2148, 2147483648
  %v2150 = vsel %vm2067, %v2149, %v2148
  %v2151 = vsub.s32 4, %v2127
  %v2152 = vsel %vm2067, %v2151, %v2127
  %v2153 = vsel %vm2066, %v391, %v2150
  %v2154 = vsel %vm2066, 0, %v2152
  %v2155 = vcosq.f32.pop %v2153
  %v2156 = vsinq.f32.pop %v2153
  %vm2157 = vweird.f32 %v391
  %v2158 = vadd.s32 %v2154, 3
  %v2159 = vand.u32 %v2158, 3
  %vm2160 = vcmp.lt.s32.totalorder %v2159, 2
  %vm2161 = vcmp.eq.s32.totalorder %v2159, 0
  %v2162 = vxor.u32 %v2156, 2147483648
  %v2163 = vsel %vm2161, %v2155, %v2162
  %vm2164 = vcmp.eq.s32.totalorder %v2159, 2
  %v2165 = vxor.u32 %v2155, 2147483648
  %v2166 = vsel %vm2164, %v2165, %v2156
  %v2167 = vsel %vm2160, %v2163, %v2166
  %v2168 = vsel %vm2157, nan, %v2167
  %v2169 = vand.u32 2147483647, %v392
  %vm2170 = vcmp.le.f32.partialorder %v2169, 0.7853982
  %vm2171 = vcmp.lt.s32.totalorder %v392, 0
  %v2172 = vand.u32 %v392, 2139095040
  %v2173 = vshrl.u32 %v2172, 23
  %v2174 = vsub.s32 %v2173, 127
  %v2175 = vand.u32 2147483647, %v392
  %v2176 = vand.u32 %v2175, 8388607
  %v2177 = vor.u32 %v2176, 8388608
  %v2178 = vsub.s32 0, %v2177
  %v2179 = vadd.s32 %v2174, 1
  %vm2180 = vcmp.gt.s32.totalorder %v2179, 0
  %v2181 = vsel %vm2180, %v2179, 0
  %v2182 = vshrl.u32 %v2181, 5
  %v2183 = vand.u32 %v2181, 31
  %v2184 = vsub.s32 32, %v2183
  %v2185 = vshrl.u32 683565275, %v2184
  %v2186 = vshll.u32 683565275, %v2183
  %v2187 = vshrl.u32 2475754826, %v2184
  %v2188 = vor.u32 %v2186, %v2187
  %v2189 = vshll.u32 2475754826, %v2183
  %v2190 = vshrl.u32 2131351028, %v2184
  %v2191 = vor.u32 %v2189, %v2190
  %v2192 = vshll.u32 2131351028, %v2183
  %v2193 = vshrl.u32 2102212464, %v2184
  %v2194 = vor.u32 %v2192, %v2193
  %v2195 = vshll.u32 2102212464, %v2183
  %v2196 = vshrl.u32 920167782, %v2184
  %v2197 = vor.u32 %v2195, %v2196
  %v2198 = vshll.u32 920167782, %v2183
  %v2199 = vshrl.u32 1326507024, %v2184
  %v2200 = vor.u32 %v2198, %v2199
  %vm2201 = vcmp.lt.s32.totalorder %v2182, 1
  %vm2202 = vcmp.lt.s32.totalorder %v2182, 2
  %vm2203 = vcmp.lt.s32.totalorder %v2182, 3
  %vm2204 = vcmp.lt.s32.totalorder %v2182, 4
  %v2205 = vsel %vm2201, %v2185, %v2188
  %v2206 = vsel %vm2204, %v2194, 2102212464
  %v2207 = vsel %vm2203, %v2191, %v2206
  %v2208 = vsel %vm2202, %v2205, %v2207
  %v2209 = vsel %vm2201, %v2188, %v2191
  %v2210 = vsel %vm2204, %v2197, 920167782
  %v2211 = vsel %vm2203, %v2194, %v2210
  %v2212 = vsel %vm2202, %v2209, %v2211
  %v2213 = vsel %vm2201, %v2191, %v2194
  %v2214 = vsel %vm2204, %v2200, 1326507024
  %v2215 = vsel %vm2203, %v2197, %v2214
  %v2216 = vsel %vm2202, %v2213, %v2215
  %v2217 = vshll.u32 %v2177, 8
  %v2218 = vmul.u32.u64.compose %v2217, %v2216
  %v2219 = vextract.low.u32 %v2218
  %v2220 = vextract.high.u32 %v2218
  %v2221 = vmul.u32.u64.compose %v2217, %v2212
  %v2222 = vextract.low.u32 %v2221
  %v2223 = vextract.high.u32 %v2221
  %v2224 = vmul.u32 %v2217, %v2208
  %v2225 = vadd.s32 %v2220, %v2222
  %vm2226 = vc.u32 %v2220, %v2222
  %v2227 = vadd.s32 %v2223, 1
  %v2228 = vsel %vm2226, %v2227, %v2223
  %v2229 = vadd.s32 %v2224, %v2228
  %v2230 = vadd.s32 %v2229, 536870912
  %v2231 = vshrl.u32 %v2230, 30
  %v2232 = vshll.u32 %v2231, 30
  %v2233 = vsub.s32 %v2229, %v2232
  %vm2234 = vcmp.lt.s32.totalorder %v2233, 0
  %v2235 = vsub.s32 0, %v2233
  %v2236 = vsel %vm2234, %v2235, %v2233
  %v2237 = vclz %v2236
  %v2238 = vsub.s32 %v2237, 2
  %vm2239 = vcmp.gt.s32.totalorder 0, %v2238
  %v2240 = vsel %vm2239, 0, %v2238
  %v2241 = vsub.s32 32, %v2240
  %v2242 = vshll.u32 %v2233, %v2240
  %v2243 = vshrl.u32 %v2225, %v2241
  %v2244 = vor.u32 %v2242, %v2243
  %v2245 = vsub.s32 4294967266, %v2240
  %v2246 = vadd.s32 %v2245, 127
  %v2247 = vshll.u32 %v2246, 23
  %v2248 = vor.u32 4788187, %v2247
  %v2249 = vand.u32 2147483647, %v2248
  %v2251 = vcvt.s32.f32 %v2244
  %v2252 = vmul.f32 %v2251, %v2249
  %v2253 = vxor.u32 %v2252, 2147483648
  %v2254 = vsel %vm2171, %v2253, %v2252
  %v2255 = vsub.s32 4, %v2231
  %v2256 = vsel %vm2171, %v2255, %v2231
  %v2257 = vsel %vm2170, %v392, %v2254
  %v2258 = vsel %vm2170, 0, %v2256
  %v2259 = vcosq.f32.pop %v2257
  %v2260 = vsinq.f32.pop %v2257
  %vm2261 = vweird.f32 %v392
  %v2262 = vadd.s32 %v2258, 3
  %v2263 = vand.u32 %v2262, 3
  %vm2264 = vcmp.lt.s32.totalorder %v2263, 2
  %vm2265 = vcmp.eq.s32.totalorder %v2263, 0
  %v2266 = vxor.u32 %v2260, 2147483648
  %v2267 = vsel %vm2265, %v2259, %v2266
  %vm2268 = vcmp.eq.s32.totalorder %v2263, 2
  %v2269 = vxor.u32 %v2259, 2147483648
  %v2270 = vsel %vm2268, %v2269, %v2260
  %v2271 = vsel %vm2264, %v2267, %v2270
  %v2272 = vsel %vm2261, nan, %v2271
  %v2273 = vand.u32 2147483647, %v393
  %vm2274 = vcmp.le.f32.partialorder %v2273, 0.7853982
  %vm2275 = vcmp.lt.s32.totalorder %v393, 0
  %v2276 = vand.u32 %v393, 2139095040
  %v2277 = vshrl.u32 %v2276, 23
  %v2278 = vsub.s32 %v2277, 127
  %v2279 = vand.u32 2147483647, %v393
  %v2280 = vand.u32 %v2279, 8388607
  %v2281 = vor.u32 %v2280, 8388608
  %v2282 = vsub.s32 0, %v2281
  %v2283 = vadd.s32 %v2278, 1
  %vm2284 = vcmp.gt.s32.totalorder %v2283, 0
  %v2285 = vsel %vm2284, %v2283, 0
  %v2286 = vshrl.u32 %v2285, 5
  %v2287 = vand.u32 %v2285, 31
  %v2288 = vsub.s32 32, %v2287
  %v2289 = vshrl.u32 683565275, %v2288
  %v2290 = vshll.u32 683565275, %v2287
  %v2291 = vshrl.u32 2475754826, %v2288
  %v2292 = vor.u32 %v2290, %v2291
  %v2293 = vshll.u32 2475754826, %v2287
  %v2294 = vshrl.u32 2131351028, %v2288
  %v2295 = vor.u32 %v2293, %v2294
  %v2296 = vshll.u32 2131351028, %v2287
  %v2297 = vshrl.u32 2102212464, %v2288
  %v2298 = vor.u32 %v2296, %v2297
  %v2299 = vshll.u32 2102212464, %v2287
  %v2300 = vshrl.u32 920167782, %v2288
  %v2301 = vor.u32 %v2299, %v2300
  %v2302 = vshll.u32 920167782, %v2287
  %v2303 = vshrl.u32 1326507024, %v2288
  %v2304 = vor.u32 %v2302, %v2303
  %vm2305 = vcmp.lt.s32.totalorder %v2286, 1
  %vm2306 = vcmp.lt.s32.totalorder %v2286, 2
  %vm2307 = vcmp.lt.s32.totalorder %v2286, 3
  %vm2308 = vcmp.lt.s32.totalorder %v2286, 4
  %v2309 = vsel %vm2305, %v2289, %v2292
  %v2310 = vsel %vm2308, %v2298, 2102212464
  %v2311 = vsel %vm2307, %v2295, %v2310
  %v2312 = vsel %vm2306, %v2309, %v2311
  %v2313 = vsel %vm2305, %v2292, %v2295
  %v2314 = vsel %vm2308, %v2301, 920167782
  %v2315 = vsel %vm2307, %v2298, %v2314
  %v2316 = vsel %vm2306, %v2313, %v2315
  %v2317 = vsel %vm2305, %v2295, %v2298
  %v2318 = vsel %vm2308, %v2304, 1326507024
  %v2319 = vsel %vm2307, %v2301, %v2318
  %v2320 = vsel %vm2306, %v2317, %v2319
  %v2321 = vshll.u32 %v2281, 8
  %v2322 = vmul.u32.u64.compose %v2321, %v2320
  %v2323 = vextract.low.u32 %v2322
  %v2324 = vextract.high.u32 %v2322
  %v2325 = vmul.u32.u64.compose %v2321, %v2316
  %v2326 = vextract.low.u32 %v2325
  %v2327 = vextract.high.u32 %v2325
  %v2328 = vmul.u32 %v2321, %v2312
  %v2329 = vadd.s32 %v2324, %v2326
  %vm2330 = vc.u32 %v2324, %v2326
  %v2331 = vadd.s32 %v2327, 1
  %v2332 = vsel %vm2330, %v2331, %v2327
  %v2333 = vadd.s32 %v2328, %v2332
  %v2334 = vadd.s32 %v2333, 536870912
  %v2335 = vshrl.u32 %v2334, 30
  %v2336 = vshll.u32 %v2335, 30
  %v2337 = vsub.s32 %v2333, %v2336
  %vm2338 = vcmp.lt.s32.totalorder %v2337, 0
  %v2339 = vsub.s32 0, %v2337
  %v2340 = vsel %vm2338, %v2339, %v2337
  %v2341 = vclz %v2340
  %v2342 = vsub.s32 %v2341, 2
  %vm2343 = vcmp.gt.s32.totalorder 0, %v2342
  %v2344 = vsel %vm2343, 0, %v2342
  %v2345 = vsub.s32 32, %v2344
  %v2346 = vshll.u32 %v2337, %v2344
  %v2347 = vshrl.u32 %v2329, %v2345
  %v2348 = vor.u32 %v2346, %v2347
  %v2349 = vsub.s32 4294967266, %v2344
  %v2350 = vadd.s32 %v2349, 127
  %v2351 = vshll.u32 %v2350, 23
  %v2352 = vor.u32 4788187, %v2351
  %v2353 = vand.u32 2147483647, %v2352
  %v2355 = vcvt.s32.f32 %v2348
  %v2356 = vmul.f32 %v2355, %v2353
  %v2357 = vxor.u32 %v2356, 2147483648
  %v2358 = vsel %vm2275, %v2357, %v2356
  %v2359 = vsub.s32 4, %v2335
  %v2360 = vsel %vm2275, %v2359, %v2335
  %v2361 = vsel %vm2274, %v393, %v2358
  %v2362 = vsel %vm2274, 0, %v2360
  %v2363 = vcosq.f32.pop %v2361
  %v2364 = vsinq.f32.pop %v2361
  %vm2365 = vweird.f32 %v393
  %v2366 = vadd.s32 %v2362, 3
  %v2367 = vand.u32 %v2366, 3
  %vm2368 = vcmp.lt.s32.totalorder %v2367, 2
  %vm2369 = vcmp.eq.s32.totalorder %v2367, 0
  %v2370 = vxor.u32 %v2364, 2147483648
  %v2371 = vsel %vm2369, %v2363, %v2370
  %vm2372 = vcmp.eq.s32.totalorder %v2367, 2
  %v2373 = vxor.u32 %v2363, 2147483648
  %v2374 = vsel %vm2372, %v2373, %v2364
  %v2375 = vsel %vm2368, %v2371, %v2374
  %v2376 = vsel %vm2365, nan, %v2375
  %v2377 = vand.u32 2147483647, %v394
  %vm2378 = vcmp.le.f32.partialorder %v2377, 0.7853982
  %vm2379 = vcmp.lt.s32.totalorder %v394, 0
  %v2380 = vand.u32 %v394, 2139095040
  %v2381 = vshrl.u32 %v2380, 23
  %v2382 = vsub.s32 %v2381, 127
  %v2383 = vand.u32 2147483647, %v394
  %v2384 = vand.u32 %v2383, 8388607
  %v2385 = vor.u32 %v2384, 8388608
  %v2386 = vsub.s32 0, %v2385
  %v2387 = vadd.s32 %v2382, 1
  %vm2388 = vcmp.gt.s32.totalorder %v2387, 0
  %v2389 = vsel %vm2388, %v2387, 0
  %v2390 = vshrl.u32 %v2389, 5
  %v2391 = vand.u32 %v2389, 31
  %v2392 = vsub.s32 32, %v2391
  %v2393 = vshrl.u32 683565275, %v2392
  %v2394 = vshll.u32 683565275, %v2391
  %v2395 = vshrl.u32 2475754826, %v2392
  %v2396 = vor.u32 %v2394, %v2395
  %v2397 = vshll.u32 2475754826, %v2391
  %v2398 = vshrl.u32 2131351028, %v2392
  %v2399 = vor.u32 %v2397, %v2398
  %v2400 = vshll.u32 2131351028, %v2391
  %v2401 = vshrl.u32 2102212464, %v2392
  %v2402 = vor.u32 %v2400, %v2401
  %v2403 = vshll.u32 2102212464, %v2391
  %v2404 = vshrl.u32 920167782, %v2392
  %v2405 = vor.u32 %v2403, %v2404
  %v2406 = vshll.u32 920167782, %v2391
  %v2407 = vshrl.u32 1326507024, %v2392
  %v2408 = vor.u32 %v2406, %v2407
  %vm2409 = vcmp.lt.s32.totalorder %v2390, 1
  %vm2410 = vcmp.lt.s32.totalorder %v2390, 2
  %vm2411 = vcmp.lt.s32.totalorder %v2390, 3
  %vm2412 = vcmp.lt.s32.totalorder %v2390, 4
  %v2413 = vsel %vm2409, %v2393, %v2396
  %v2414 = vsel %vm2412, %v2402, 2102212464
  %v2415 = vsel %vm2411, %v2399, %v2414
  %v2416 = vsel %vm2410, %v2413, %v2415
  %v2417 = vsel %vm2409, %v2396, %v2399
  %v2418 = vsel %vm2412, %v2405, 920167782
  %v2419 = vsel %vm2411, %v2402, %v2418
  %v2420 = vsel %vm2410, %v2417, %v2419
  %v2421 = vsel %vm2409, %v2399, %v2402
  %v2422 = vsel %vm2412, %v2408, 1326507024
  %v2423 = vsel %vm2411, %v2405, %v2422
  %v2424 = vsel %vm2410, %v2421, %v2423
  %v2425 = vshll.u32 %v2385, 8
  %v2426 = vmul.u32.u64.compose %v2425, %v2424
  %v2427 = vextract.low.u32 %v2426
  %v2428 = vextract.high.u32 %v2426
  %v2429 = vmul.u32.u64.compose %v2425, %v2420
  %v2430 = vextract.low.u32 %v2429
  %v2431 = vextract.high.u32 %v2429
  %v2432 = vmul.u32 %v2425, %v2416
  %v2433 = vadd.s32 %v2428, %v2430
  %vm2434 = vc.u32 %v2428, %v2430
  %v2435 = vadd.s32 %v2431, 1
  %v2436 = vsel %vm2434, %v2435, %v2431
  %v2437 = vadd.s32 %v2432, %v2436
  %v2438 = vadd.s32 %v2437, 536870912
  %v2439 = vshrl.u32 %v2438, 30
  %v2440 = vshll.u32 %v2439, 30
  %v2441 = vsub.s32 %v2437, %v2440
  %vm2442 = vcmp.lt.s32.totalorder %v2441, 0
  %v2443 = vsub.s32 0, %v2441
  %v2444 = vsel %vm2442, %v2443, %v2441
  %v2445 = vclz %v2444
  %v2446 = vsub.s32 %v2445, 2
  %vm2447 = vcmp.gt.s32.totalorder 0, %v2446
  %v2448 = vsel %vm2447, 0, %v2446
  %v2449 = vsub.s32 32, %v2448
  %v2450 = vshll.u32 %v2441, %v2448
  %v2451 = vshrl.u32 %v2433, %v2449
  %v2452 = vor.u32 %v2450, %v2451
  %v2453 = vsub.s32 4294967266, %v2448
  %v2454 = vadd.s32 %v2453, 127
  %v2455 = vshll.u32 %v2454, 23
  %v2456 = vor.u32 4788187, %v2455
  %v2457 = vand.u32 2147483647, %v2456
  %v2459 = vcvt.s32.f32 %v2452
  %v2460 = vmul.f32 %v2459, %v2457
  %v2461 = vxor.u32 %v2460, 2147483648
  %v2462 = vsel %vm2379, %v2461, %v2460
  %v2463 = vsub.s32 4, %v2439
  %v2464 = vsel %vm2379, %v2463, %v2439
  %v2465 = vsel %vm2378, %v394, %v2462
  %v2466 = vsel %vm2378, 0, %v2464
  %v2467 = vcosq.f32.pop %v2465
  %v2468 = vsinq.f32.pop %v2465
  %vm2469 = vweird.f32 %v394
  %v2470 = vadd.s32 %v2466, 3
  %v2471 = vand.u32 %v2470, 3
  %vm2472 = vcmp.lt.s32.totalorder %v2471, 2
  %vm2473 = vcmp.eq.s32.totalorder %v2471, 0
  %v2474 = vxor.u32 %v2468, 2147483648
  %v2475 = vsel %vm2473, %v2467, %v2474
  %vm2476 = vcmp.eq.s32.totalorder %v2471, 2
  %v2477 = vxor.u32 %v2467, 2147483648
  %v2478 = vsel %vm2476, %v2477, %v2468
  %v2479 = vsel %vm2472, %v2475, %v2478
  %v2480 = vsel %vm2469, nan, %v2479
  %v2481 = vand.u32 2147483647, %v395
  %vm2482 = vcmp.le.f32.partialorder %v2481, 0.7853982
  %vm2483 = vcmp.lt.s32.totalorder %v395, 0
  %v2484 = vand.u32 %v395, 2139095040
  %v2485 = vshrl.u32 %v2484, 23
  %v2486 = vsub.s32 %v2485, 127
  %v2487 = vand.u32 2147483647, %v395
  %v2488 = vand.u32 %v2487, 8388607
  %v2489 = vor.u32 %v2488, 8388608
  %v2490 = vsub.s32 0, %v2489
  %v2491 = vadd.s32 %v2486, 1
  %vm2492 = vcmp.gt.s32.totalorder %v2491, 0
  %v2493 = vsel %vm2492, %v2491, 0
  %v2494 = vshrl.u32 %v2493, 5
  %v2495 = vand.u32 %v2493, 31
  %v2496 = vsub.s32 32, %v2495
  %v2497 = vshrl.u32 683565275, %v2496
  %v2498 = vshll.u32 683565275, %v2495
  %v2499 = vshrl.u32 2475754826, %v2496
  %v2500 = vor.u32 %v2498, %v2499
  %v2501 = vshll.u32 2475754826, %v2495
  %v2502 = vshrl.u32 2131351028, %v2496
  %v2503 = vor.u32 %v2501, %v2502
  %v2504 = vshll.u32 2131351028, %v2495
  %v2505 = vshrl.u32 2102212464, %v2496
  %v2506 = vor.u32 %v2504, %v2505
  %v2507 = vshll.u32 2102212464, %v2495
  %v2508 = vshrl.u32 920167782, %v2496
  %v2509 = vor.u32 %v2507, %v2508
  %v2510 = vshll.u32 920167782, %v2495
  %v2511 = vshrl.u32 1326507024, %v2496
  %v2512 = vor.u32 %v2510, %v2511
  %vm2513 = vcmp.lt.s32.totalorder %v2494, 1
  %vm2514 = vcmp.lt.s32.totalorder %v2494, 2
  %vm2515 = vcmp.lt.s32.totalorder %v2494, 3
  %vm2516 = vcmp.lt.s32.totalorder %v2494, 4
  %v2517 = vsel %vm2513, %v2497, %v2500
  %v2518 = vsel %vm2516, %v2506, 2102212464
  %v2519 = vsel %vm2515, %v2503, %v2518
  %v2520 = vsel %vm2514, %v2517, %v2519
  %v2521 = vsel %vm2513, %v2500, %v2503
  %v2522 = vsel %vm2516, %v2509, 920167782
  %v2523 = vsel %vm2515, %v2506, %v2522
  %v2524 = vsel %vm2514, %v2521, %v2523
  %v2525 = vsel %vm2513, %v2503, %v2506
  %v2526 = vsel %vm2516, %v2512, 1326507024
  %v2527 = vsel %vm2515, %v2509, %v2526
  %v2528 = vsel %vm2514, %v2525, %v2527
  %v2529 = vshll.u32 %v2489, 8
  %v2530 = vmul.u32.u64.compose %v2529, %v2528
  %v2531 = vextract.low.u32 %v2530
  %v2532 = vextract.high.u32 %v2530
  %v2533 = vmul.u32.u64.compose %v2529, %v2524
  %v2534 = vextract.low.u32 %v2533
  %v2535 = vextract.high.u32 %v2533
  %v2536 = vmul.u32 %v2529, %v2520
  %v2537 = vadd.s32 %v2532, %v2534
  %vm2538 = vc.u32 %v2532, %v2534
  %v2539 = vadd.s32 %v2535, 1
  %v2540 = vsel %vm2538, %v2539, %v2535
  %v2541 = vadd.s32 %v2536, %v2540
  %v2542 = vadd.s32 %v2541, 536870912
  %v2543 = vshrl.u32 %v2542, 30
  %v2544 = vshll.u32 %v2543, 30
  %v2545 = vsub.s32 %v2541, %v2544
  %vm2546 = vcmp.lt.s32.totalorder %v2545, 0
  %v2547 = vsub.s32 0, %v2545
  %v2548 = vsel %vm2546, %v2547, %v2545
  %v2549 = vclz %v2548
  %v2550 = vsub.s32 %v2549, 2
  %vm2551 = vcmp.gt.s32.totalorder 0, %v2550
  %v2552 = vsel %vm2551, 0, %v2550
  %v2553 = vsub.s32 32, %v2552
  %v2554 = vshll.u32 %v2545, %v2552
  %v2555 = vshrl.u32 %v2537, %v2553
  %v2556 = vor.u32 %v2554, %v2555
  %v2557 = vsub.s32 4294967266, %v2552
  %v2558 = vadd.s32 %v2557, 127
  %v2559 = vshll.u32 %v2558, 23
  %v2560 = vor.u32 4788187, %v2559
  %v2561 = vand.u32 2147483647, %v2560
  %v2563 = vcvt.s32.f32 %v2556
  %v2564 = vmul.f32 %v2563, %v2561
  %v2565 = vxor.u32 %v2564, 2147483648
  %v2566 = vsel %vm2483, %v2565, %v2564
  %v2567 = vsub.s32 4, %v2543
  %v2568 = vsel %vm2483, %v2567, %v2543
  %v2569 = vsel %vm2482, %v395, %v2566
  %v2570 = vsel %vm2482, 0, %v2568
  %v2571 = vcosq.f32.pop %v2569
  %v2572 = vsinq.f32.pop %v2569
  %vm2573 = vweird.f32 %v395
  %v2574 = vadd.s32 %v2570, 3
  %v2575 = vand.u32 %v2574, 3
  %vm2576 = vcmp.lt.s32.totalorder %v2575, 2
  %vm2577 = vcmp.eq.s32.totalorder %v2575, 0
  %v2578 = vxor.u32 %v2572, 2147483648
  %v2579 = vsel %vm2577, %v2571, %v2578
  %vm2580 = vcmp.eq.s32.totalorder %v2575, 2
  %v2581 = vxor.u32 %v2571, 2147483648
  %v2582 = vsel %vm2580, %v2581, %v2572
  %v2583 = vsel %vm2576, %v2579, %v2582
  %v2584 = vsel %vm2573, nan, %v2583
  %v2585 = vand.u32 2147483647, %v396
  %vm2586 = vcmp.le.f32.partialorder %v2585, 0.7853982
  %vm2587 = vcmp.lt.s32.totalorder %v396, 0
  %v2588 = vand.u32 %v396, 2139095040
  %v2589 = vshrl.u32 %v2588, 23
  %v2590 = vsub.s32 %v2589, 127
  %v2591 = vand.u32 2147483647, %v396
  %v2592 = vand.u32 %v2591, 8388607
  %v2593 = vor.u32 %v2592, 8388608
  %v2594 = vsub.s32 0, %v2593
  %v2595 = vadd.s32 %v2590, 1
  %vm2596 = vcmp.gt.s32.totalorder %v2595, 0
  %v2597 = vsel %vm2596, %v2595, 0
  %v2598 = vshrl.u32 %v2597, 5
  %v2599 = vand.u32 %v2597, 31
  %v2600 = vsub.s32 32, %v2599
  %v2601 = vshrl.u32 683565275, %v2600
  %v2602 = vshll.u32 683565275, %v2599
  %v2603 = vshrl.u32 2475754826, %v2600
  %v2604 = vor.u32 %v2602, %v2603
  %v2605 = vshll.u32 2475754826, %v2599
  %v2606 = vshrl.u32 2131351028, %v2600
  %v2607 = vor.u32 %v2605, %v2606
  %v2608 = vshll.u32 2131351028, %v2599
  %v2609 = vshrl.u32 2102212464, %v2600
  %v2610 = vor.u32 %v2608, %v2609
  %v2611 = vshll.u32 2102212464, %v2599
  %v2612 = vshrl.u32 920167782, %v2600
  %v2613 = vor.u32 %v2611, %v2612
  %v2614 = vshll.u32 920167782, %v2599
  %v2615 = vshrl.u32 1326507024, %v2600
  %v2616 = vor.u32 %v2614, %v2615
  %vm2617 = vcmp.lt.s32.totalorder %v2598, 1
  %vm2618 = vcmp.lt.s32.totalorder %v2598, 2
  %vm2619 = vcmp.lt.s32.totalorder %v2598, 3
  %vm2620 = vcmp.lt.s32.totalorder %v2598, 4
  %v2621 = vsel %vm2617, %v2601, %v2604
  %v2622 = vsel %vm2620, %v2610, 2102212464
  %v2623 = vsel %vm2619, %v2607, %v2622
  %v2624 = vsel %vm2618, %v2621, %v2623
  %v2625 = vsel %vm2617, %v2604, %v2607
  %v2626 = vsel %vm2620, %v2613, 920167782
  %v2627 = vsel %vm2619, %v2610, %v2626
  %v2628 = vsel %vm2618, %v2625, %v2627
  %v2629 = vsel %vm2617, %v2607, %v2610
  %v2630 = vsel %vm2620, %v2616, 1326507024
  %v2631 = vsel %vm2619, %v2613, %v2630
  %v2632 = vsel %vm2618, %v2629, %v2631
  %v2633 = vshll.u32 %v2593, 8
  %v2634 = vmul.u32.u64.compose %v2633, %v2632
  %v2635 = vextract.low.u32 %v2634
  %v2636 = vextract.high.u32 %v2634
  %v2637 = vmul.u32.u64.compose %v2633, %v2628
  %v2638 = vextract.low.u32 %v2637
  %v2639 = vextract.high.u32 %v2637
  %v2640 = vmul.u32 %v2633, %v2624
  %v2641 = vadd.s32 %v2636, %v2638
  %vm2642 = vc.u32 %v2636, %v2638
  %v2643 = vadd.s32 %v2639, 1
  %v2644 = vsel %vm2642, %v2643, %v2639
  %v2645 = vadd.s32 %v2640, %v2644
  %v2646 = vadd.s32 %v2645, 536870912
  %v2647 = vshrl.u32 %v2646, 30
  %v2648 = vshll.u32 %v2647, 30
  %v2649 = vsub.s32 %v2645, %v2648
  %vm2650 = vcmp.lt.s32.totalorder %v2649, 0
  %v2651 = vsub.s32 0, %v2649
  %v2652 = vsel %vm2650, %v2651, %v2649
  %v2653 = vclz %v2652
  %v2654 = vsub.s32 %v2653, 2
  %vm2655 = vcmp.gt.s32.totalorder 0, %v2654
  %v2656 = vsel %vm2655, 0, %v2654
  %v2657 = vsub.s32 32, %v2656
  %v2658 = vshll.u32 %v2649, %v2656
  %v2659 = vshrl.u32 %v2641, %v2657
  %v2660 = vor.u32 %v2658, %v2659
  %v2661 = vsub.s32 4294967266, %v2656
  %v2662 = vadd.s32 %v2661, 127
  %v2663 = vshll.u32 %v2662, 23
  %v2664 = vor.u32 4788187, %v2663
  %v2665 = vand.u32 2147483647, %v2664
  %v2667 = vcvt.s32.f32 %v2660
  %v2668 = vmul.f32 %v2667, %v2665
  %v2669 = vxor.u32 %v2668, 2147483648
  %v2670 = vsel %vm2587, %v2669, %v2668
  %v2671 = vsub.s32 4, %v2647
  %v2672 = vsel %vm2587, %v2671, %v2647
  %v2673 = vsel %vm2586, %v396, %v2670
  %v2674 = vsel %vm2586, 0, %v2672
  %v2675 = vcosq.f32.pop %v2673
  %v2676 = vsinq.f32.pop %v2673
  %vm2677 = vweird.f32 %v396
  %v2678 = vadd.s32 %v2674, 3
  %v2679 = vand.u32 %v2678, 3
  %vm2680 = vcmp.lt.s32.totalorder %v2679, 2
  %vm2681 = vcmp.eq.s32.totalorder %v2679, 0
  %v2682 = vxor.u32 %v2676, 2147483648
  %v2683 = vsel %vm2681, %v2675, %v2682
  %vm2684 = vcmp.eq.s32.totalorder %v2679, 2
  %v2685 = vxor.u32 %v2675, 2147483648
  %v2686 = vsel %vm2684, %v2685, %v2676
  %v2687 = vsel %vm2680, %v2683, %v2686
  %v2688 = vsel %vm2677, nan, %v2687
  %v2689 = vand.u32 2147483647, %v397
  %vm2690 = vcmp.le.f32.partialorder %v2689, 0.7853982
  %vm2691 = vcmp.lt.s32.totalorder %v397, 0
  %v2692 = vand.u32 %v397, 2139095040
  %v2693 = vshrl.u32 %v2692, 23
  %v2694 = vsub.s32 %v2693, 127
  %v2695 = vand.u32 2147483647, %v397
  %v2696 = vand.u32 %v2695, 8388607
  %v2697 = vor.u32 %v2696, 8388608
  %v2698 = vsub.s32 0, %v2697
  %v2699 = vadd.s32 %v2694, 1
  %vm2700 = vcmp.gt.s32.totalorder %v2699, 0
  %v2701 = vsel %vm2700, %v2699, 0
  %v2702 = vshrl.u32 %v2701, 5
  %v2703 = vand.u32 %v2701, 31
  %v2704 = vsub.s32 32, %v2703
  %v2705 = vshrl.u32 683565275, %v2704
  %v2706 = vshll.u32 683565275, %v2703
  %v2707 = vshrl.u32 2475754826, %v2704
  %v2708 = vor.u32 %v2706, %v2707
  %v2709 = vshll.u32 2475754826, %v2703
  %v2710 = vshrl.u32 2131351028, %v2704
  %v2711 = vor.u32 %v2709, %v2710
  %v2712 = vshll.u32 2131351028, %v2703
  %v2713 = vshrl.u32 2102212464, %v2704
  %v2714 = vor.u32 %v2712, %v2713
  %v2715 = vshll.u32 2102212464, %v2703
  %v2716 = vshrl.u32 920167782, %v2704
  %v2717 = vor.u32 %v2715, %v2716
  %v2718 = vshll.u32 920167782, %v2703
  %v2719 = vshrl.u32 1326507024, %v2704
  %v2720 = vor.u32 %v2718, %v2719
  %vm2721 = vcmp.lt.s32.totalorder %v2702, 1
  %vm2722 = vcmp.lt.s32.totalorder %v2702, 2
  %vm2723 = vcmp.lt.s32.totalorder %v2702, 3
  %vm2724 = vcmp.lt.s32.totalorder %v2702, 4
  %v2725 = vsel %vm2721, %v2705, %v2708
  %v2726 = vsel %vm2724, %v2714, 2102212464
  %v2727 = vsel %vm2723, %v2711, %v2726
  %v2728 = vsel %vm2722, %v2725, %v2727
  %v2729 = vsel %vm2721, %v2708, %v2711
  %v2730 = vsel %vm2724, %v2717, 920167782
  %v2731 = vsel %vm2723, %v2714, %v2730
  %v2732 = vsel %vm2722, %v2729, %v2731
  %v2733 = vsel %vm2721, %v2711, %v2714
  %v2734 = vsel %vm2724, %v2720, 1326507024
  %v2735 = vsel %vm2723, %v2717, %v2734
  %v2736 = vsel %vm2722, %v2733, %v2735
  %v2737 = vshll.u32 %v2697, 8
  %v2738 = vmul.u32.u64.compose %v2737, %v2736
  %v2739 = vextract.low.u32 %v2738
  %v2740 = vextract.high.u32 %v2738
  %v2741 = vmul.u32.u64.compose %v2737, %v2732
  %v2742 = vextract.low.u32 %v2741
  %v2743 = vextract.high.u32 %v2741
  %v2744 = vmul.u32 %v2737, %v2728
  %v2745 = vadd.s32 %v2740, %v2742
  %vm2746 = vc.u32 %v2740, %v2742
  %v2747 = vadd.s32 %v2743, 1
  %v2748 = vsel %vm2746, %v2747, %v2743
  %v2749 = vadd.s32 %v2744, %v2748
  %v2750 = vadd.s32 %v2749, 536870912
  %v2751 = vshrl.u32 %v2750, 30
  %v2752 = vshll.u32 %v2751, 30
  %v2753 = vsub.s32 %v2749, %v2752
  %vm2754 = vcmp.lt.s32.totalorder %v2753, 0
  %v2755 = vsub.s32 0, %v2753
  %v2756 = vsel %vm2754, %v2755, %v2753
  %v2757 = vclz %v2756
  %v2758 = vsub.s32 %v2757, 2
  %vm2759 = vcmp.gt.s32.totalorder 0, %v2758
  %v2760 = vsel %vm2759, 0, %v2758
  %v2761 = vsub.s32 32, %v2760
  %v2762 = vshll.u32 %v2753, %v2760
  %v2763 = vshrl.u32 %v2745, %v2761
  %v2764 = vor.u32 %v2762, %v2763
  %v2765 = vsub.s32 4294967266, %v2760
  %v2766 = vadd.s32 %v2765, 127
  %v2767 = vshll.u32 %v2766, 23
  %v2768 = vor.u32 4788187, %v2767
  %v2769 = vand.u32 2147483647, %v2768
  %v2771 = vcvt.s32.f32 %v2764
  %v2772 = vmul.f32 %v2771, %v2769
  %v2773 = vxor.u32 %v2772, 2147483648
  %v2774 = vsel %vm2691, %v2773, %v2772
  %v2775 = vsub.s32 4, %v2751
  %v2776 = vsel %vm2691, %v2775, %v2751
  %v2777 = vsel %vm2690, %v397, %v2774
  %v2778 = vsel %vm2690, 0, %v2776
  %v2779 = vcosq.f32.pop %v2777
  %v2780 = vsinq.f32.pop %v2777
  %vm2781 = vweird.f32 %v397
  %v2782 = vadd.s32 %v2778, 3
  %v2783 = vand.u32 %v2782, 3
  %vm2784 = vcmp.lt.s32.totalorder %v2783, 2
  %vm2785 = vcmp.eq.s32.totalorder %v2783, 0
  %v2786 = vxor.u32 %v2780, 2147483648
  %v2787 = vsel %vm2785, %v2779, %v2786
  %vm2788 = vcmp.eq.s32.totalorder %v2783, 2
  %v2789 = vxor.u32 %v2779, 2147483648
  %v2790 = vsel %vm2788, %v2789, %v2780
  %v2791 = vsel %vm2784, %v2787, %v2790
  %v2792 = vsel %vm2781, nan, %v2791
  %v2793 = vand.u32 2147483647, %v398
  %vm2794 = vcmp.le.f32.partialorder %v2793, 0.7853982
  %vm2795 = vcmp.lt.s32.totalorder %v398, 0
  %v2796 = vand.u32 %v398, 2139095040
  %v2797 = vshrl.u32 %v2796, 23
  %v2798 = vsub.s32 %v2797, 127
  %v2799 = vand.u32 2147483647, %v398
  %v2800 = vand.u32 %v2799, 8388607
  %v2801 = vor.u32 %v2800, 8388608
  %v2802 = vsub.s32 0, %v2801
  %v2803 = vadd.s32 %v2798, 1
  %vm2804 = vcmp.gt.s32.totalorder %v2803, 0
  %v2805 = vsel %vm2804, %v2803, 0
  %v2806 = vshrl.u32 %v2805, 5
  %v2807 = vand.u32 %v2805, 31
  %v2808 = vsub.s32 32, %v2807
  %v2809 = vshrl.u32 683565275, %v2808
  %v2810 = vshll.u32 683565275, %v2807
  %v2811 = vshrl.u32 2475754826, %v2808
  %v2812 = vor.u32 %v2810, %v2811
  %v2813 = vshll.u32 2475754826, %v2807
  %v2814 = vshrl.u32 2131351028, %v2808
  %v2815 = vor.u32 %v2813, %v2814
  %v2816 = vshll.u32 2131351028, %v2807
  %v2817 = vshrl.u32 2102212464, %v2808
  %v2818 = vor.u32 %v2816, %v2817
  %v2819 = vshll.u32 2102212464, %v2807
  %v2820 = vshrl.u32 920167782, %v2808
  %v2821 = vor.u32 %v2819, %v2820
  %v2822 = vshll.u32 920167782, %v2807
  %v2823 = vshrl.u32 1326507024, %v2808
  %v2824 = vor.u32 %v2822, %v2823
  %vm2825 = vcmp.lt.s32.totalorder %v2806, 1
  %vm2826 = vcmp.lt.s32.totalorder %v2806, 2
  %vm2827 = vcmp.lt.s32.totalorder %v2806, 3
  %vm2828 = vcmp.lt.s32.totalorder %v2806, 4
  %v2829 = vsel %vm2825, %v2809, %v2812
  %v2830 = vsel %vm2828, %v2818, 2102212464
  %v2831 = vsel %vm2827, %v2815, %v2830
  %v2832 = vsel %vm2826, %v2829, %v2831
  %v2833 = vsel %vm2825, %v2812, %v2815
  %v2834 = vsel %vm2828, %v2821, 920167782
  %v2835 = vsel %vm2827, %v2818, %v2834
  %v2836 = vsel %vm2826, %v2833, %v2835
  %v2837 = vsel %vm2825, %v2815, %v2818
  %v2838 = vsel %vm2828, %v2824, 1326507024
  %v2839 = vsel %vm2827, %v2821, %v2838
  %v2840 = vsel %vm2826, %v2837, %v2839
  %v2841 = vshll.u32 %v2801, 8
  %v2842 = vmul.u32.u64.compose %v2841, %v2840
  %v2843 = vextract.low.u32 %v2842
  %v2844 = vextract.high.u32 %v2842
  %v2845 = vmul.u32.u64.compose %v2841, %v2836
  %v2846 = vextract.low.u32 %v2845
  %v2847 = vextract.high.u32 %v2845
  %v2848 = vmul.u32 %v2841, %v2832
  %v2849 = vadd.s32 %v2844, %v2846
  %vm2850 = vc.u32 %v2844, %v2846
  %v2851 = vadd.s32 %v2847, 1
  %v2852 = vsel %vm2850, %v2851, %v2847
  %v2853 = vadd.s32 %v2848, %v2852
  %v2854 = vadd.s32 %v2853, 536870912
  %v2855 = vshrl.u32 %v2854, 30
  %v2856 = vshll.u32 %v2855, 30
  %v2857 = vsub.s32 %v2853, %v2856
  %vm2858 = vcmp.lt.s32.totalorder %v2857, 0
  %v2859 = vsub.s32 0, %v2857
  %v2860 = vsel %vm2858, %v2859, %v2857
  %v2861 = vclz %v2860
  %v2862 = vsub.s32 %v2861, 2
  %vm2863 = vcmp.gt.s32.totalorder 0, %v2862
  %v2864 = vsel %vm2863, 0, %v2862
  %v2865 = vsub.s32 32, %v2864
  %v2866 = vshll.u32 %v2857, %v2864
  %v2867 = vshrl.u32 %v2849, %v2865
  %v2868 = vor.u32 %v2866, %v2867
  %v2869 = vsub.s32 4294967266, %v2864
  %v2870 = vadd.s32 %v2869, 127
  %v2871 = vshll.u32 %v2870, 23
  %v2872 = vor.u32 4788187, %v2871
  %v2873 = vand.u32 2147483647, %v2872
  %v2875 = vcvt.s32.f32 %v2868
  %v2876 = vmul.f32 %v2875, %v2873
  %v2877 = vxor.u32 %v2876, 2147483648
  %v2878 = vsel %vm2795, %v2877, %v2876
  %v2879 = vsub.s32 4, %v2855
  %v2880 = vsel %vm2795, %v2879, %v2855
  %v2881 = vsel %vm2794, %v398, %v2878
  %v2882 = vsel %vm2794, 0, %v2880
  %v2883 = vcosq.f32.pop %v2881
  %v2884 = vsinq.f32.pop %v2881
  %vm2885 = vweird.f32 %v398
  %v2886 = vadd.s32 %v2882, 3
  %v2887 = vand.u32 %v2886, 3
  %vm2888 = vcmp.lt.s32.totalorder %v2887, 2
  %vm2889 = vcmp.eq.s32.totalorder %v2887, 0
  %v2890 = vxor.u32 %v2884, 2147483648
  %v2891 = vsel %vm2889, %v2883, %v2890
  %vm2892 = vcmp.eq.s32.totalorder %v2887, 2
  %v2893 = vxor.u32 %v2883, 2147483648
  %v2894 = vsel %vm2892, %v2893, %v2884
  %v2895 = vsel %vm2888, %v2891, %v2894
  %v2896 = vsel %vm2885, nan, %v2895
  %v2897 = vand.u32 2147483647, %v399
  %vm2898 = vcmp.le.f32.partialorder %v2897, 0.7853982
  %vm2899 = vcmp.lt.s32.totalorder %v399, 0
  %v2900 = vand.u32 %v399, 2139095040
  %v2901 = vshrl.u32 %v2900, 23
  %v2902 = vsub.s32 %v2901, 127
  %v2903 = vand.u32 2147483647, %v399
  %v2904 = vand.u32 %v2903, 8388607
  %v2905 = vor.u32 %v2904, 8388608
  %v2906 = vsub.s32 0, %v2905
  %v2907 = vadd.s32 %v2902, 1
  %vm2908 = vcmp.gt.s32.totalorder %v2907, 0
  %v2909 = vsel %vm2908, %v2907, 0
  %v2910 = vshrl.u32 %v2909, 5
  %v2911 = vand.u32 %v2909, 31
  %v2912 = vsub.s32 32, %v2911
  %v2913 = vshrl.u32 683565275, %v2912
  %v2914 = vshll.u32 683565275, %v2911
  %v2915 = vshrl.u32 2475754826, %v2912
  %v2916 = vor.u32 %v2914, %v2915
  %v2917 = vshll.u32 2475754826, %v2911
  %v2918 = vshrl.u32 2131351028, %v2912
  %v2919 = vor.u32 %v2917, %v2918
  %v2920 = vshll.u32 2131351028, %v2911
  %v2921 = vshrl.u32 2102212464, %v2912
  %v2922 = vor.u32 %v2920, %v2921
  %v2923 = vshll.u32 2102212464, %v2911
  %v2924 = vshrl.u32 920167782, %v2912
  %v2925 = vor.u32 %v2923, %v2924
  %v2926 = vshll.u32 920167782, %v2911
  %v2927 = vshrl.u32 1326507024, %v2912
  %v2928 = vor.u32 %v2926, %v2927
  %vm2929 = vcmp.lt.s32.totalorder %v2910, 1
  %vm2930 = vcmp.lt.s32.totalorder %v2910, 2
  %vm2931 = vcmp.lt.s32.totalorder %v2910, 3
  %vm2932 = vcmp.lt.s32.totalorder %v2910, 4
  %v2933 = vsel %vm2929, %v2913, %v2916
  %v2934 = vsel %vm2932, %v2922, 2102212464
  %v2935 = vsel %vm2931, %v2919, %v2934
  %v2936 = vsel %vm2930, %v2933, %v2935
  %v2937 = vsel %vm2929, %v2916, %v2919
  %v2938 = vsel %vm2932, %v2925, 920167782
  %v2939 = vsel %vm2931, %v2922, %v2938
  %v2940 = vsel %vm2930, %v2937, %v2939
  %v2941 = vsel %vm2929, %v2919, %v2922
  %v2942 = vsel %vm2932, %v2928, 1326507024
  %v2943 = vsel %vm2931, %v2925, %v2942
  %v2944 = vsel %vm2930, %v2941, %v2943
  %v2945 = vshll.u32 %v2905, 8
  %v2946 = vmul.u32.u64.compose %v2945, %v2944
  %v2947 = vextract.low.u32 %v2946
  %v2948 = vextract.high.u32 %v2946
  %v2949 = vmul.u32.u64.compose %v2945, %v2940
  %v2950 = vextract.low.u32 %v2949
  %v2951 = vextract.high.u32 %v2949
  %v2952 = vmul.u32 %v2945, %v2936
  %v2953 = vadd.s32 %v2948, %v2950
  %vm2954 = vc.u32 %v2948, %v2950
  %v2955 = vadd.s32 %v2951, 1
  %v2956 = vsel %vm2954, %v2955, %v2951
  %v2957 = vadd.s32 %v2952, %v2956
  %v2958 = vadd.s32 %v2957, 536870912
  %v2959 = vshrl.u32 %v2958, 30
  %v2960 = vshll.u32 %v2959, 30
  %v2961 = vsub.s32 %v2957, %v2960
  %vm2962 = vcmp.lt.s32.totalorder %v2961, 0
  %v2963 = vsub.s32 0, %v2961
  %v2964 = vsel %vm2962, %v2963, %v2961
  %v2965 = vclz %v2964
  %v2966 = vsub.s32 %v2965, 2
  %vm2967 = vcmp.gt.s32.totalorder 0, %v2966
  %v2968 = vsel %vm2967, 0, %v2966
  %v2969 = vsub.s32 32, %v2968
  %v2970 = vshll.u32 %v2961, %v2968
  %v2971 = vshrl.u32 %v2953, %v2969
  %v2972 = vor.u32 %v2970, %v2971
  %v2973 = vsub.s32 4294967266, %v2968
  %v2974 = vadd.s32 %v2973, 127
  %v2975 = vshll.u32 %v2974, 23
  %v2976 = vor.u32 4788187, %v2975
  %v2977 = vand.u32 2147483647, %v2976
  %v2979 = vcvt.s32.f32 %v2972
  %v2980 = vmul.f32 %v2979, %v2977
  %v2981 = vxor.u32 %v2980, 2147483648
  %v2982 = vsel %vm2899, %v2981, %v2980
  %v2983 = vsub.s32 4, %v2959
  %v2984 = vsel %vm2899, %v2983, %v2959
  %v2985 = vsel %vm2898, %v399, %v2982
  %v2986 = vsel %vm2898, 0, %v2984
  %v2987 = vcosq.f32.pop %v2985
  %v2988 = vsinq.f32.pop %v2985
  %vm2989 = vweird.f32 %v399
  %v2990 = vadd.s32 %v2986, 3
  %v2991 = vand.u32 %v2990, 3
  %vm2992 = vcmp.lt.s32.totalorder %v2991, 2
  %vm2993 = vcmp.eq.s32.totalorder %v2991, 0
  %v2994 = vxor.u32 %v2988, 2147483648
  %v2995 = vsel %vm2993, %v2987, %v2994
  %vm2996 = vcmp.eq.s32.totalorder %v2991, 2
  %v2997 = vxor.u32 %v2987, 2147483648
  %v2998 = vsel %vm2996, %v2997, %v2988
  %v2999 = vsel %vm2992, %v2995, %v2998
  %v3000 = vsel %vm2989, nan, %v2999
  %v3001 = vand.u32 2147483647, %v400
  %vm3002 = vcmp.le.f32.partialorder %v3001, 0.7853982
  %vm3003 = vcmp.lt.s32.totalorder %v400, 0
  %v3004 = vand.u32 %v400, 2139095040
  %v3005 = vshrl.u32 %v3004, 23
  %v3006 = vsub.s32 %v3005, 127
  %v3007 = vand.u32 2147483647, %v400
  %v3008 = vand.u32 %v3007, 8388607
  %v3009 = vor.u32 %v3008, 8388608
  %v3010 = vsub.s32 0, %v3009
  %v3011 = vadd.s32 %v3006, 1
  %vm3012 = vcmp.gt.s32.totalorder %v3011, 0
  %v3013 = vsel %vm3012, %v3011, 0
  %v3014 = vshrl.u32 %v3013, 5
  %v3015 = vand.u32 %v3013, 31
  %v3016 = vsub.s32 32, %v3015
  %v3017 = vshrl.u32 683565275, %v3016
  %v3018 = vshll.u32 683565275, %v3015
  %v3019 = vshrl.u32 2475754826, %v3016
  %v3020 = vor.u32 %v3018, %v3019
  %v3021 = vshll.u32 2475754826, %v3015
  %v3022 = vshrl.u32 2131351028, %v3016
  %v3023 = vor.u32 %v3021, %v3022
  %v3024 = vshll.u32 2131351028, %v3015
  %v3025 = vshrl.u32 2102212464, %v3016
  %v3026 = vor.u32 %v3024, %v3025
  %v3027 = vshll.u32 2102212464, %v3015
  %v3028 = vshrl.u32 920167782, %v3016
  %v3029 = vor.u32 %v3027, %v3028
  %v3030 = vshll.u32 920167782, %v3015
  %v3031 = vshrl.u32 1326507024, %v3016
  %v3032 = vor.u32 %v3030, %v3031
  %vm3033 = vcmp.lt.s32.totalorder %v3014, 1
  %vm3034 = vcmp.lt.s32.totalorder %v3014, 2
  %vm3035 = vcmp.lt.s32.totalorder %v3014, 3
  %vm3036 = vcmp.lt.s32.totalorder %v3014, 4
  %v3037 = vsel %vm3033, %v3017, %v3020
  %v3038 = vsel %vm3036, %v3026, 2102212464
  %v3039 = vsel %vm3035, %v3023, %v3038
  %v3040 = vsel %vm3034, %v3037, %v3039
  %v3041 = vsel %vm3033, %v3020, %v3023
  %v3042 = vsel %vm3036, %v3029, 920167782
  %v3043 = vsel %vm3035, %v3026, %v3042
  %v3044 = vsel %vm3034, %v3041, %v3043
  %v3045 = vsel %vm3033, %v3023, %v3026
  %v3046 = vsel %vm3036, %v3032, 1326507024
  %v3047 = vsel %vm3035, %v3029, %v3046
  %v3048 = vsel %vm3034, %v3045, %v3047
  %v3049 = vshll.u32 %v3009, 8
  %v3050 = vmul.u32.u64.compose %v3049, %v3048
  %v3051 = vextract.low.u32 %v3050
  %v3052 = vextract.high.u32 %v3050
  %v3053 = vmul.u32.u64.compose %v3049, %v3044
  %v3054 = vextract.low.u32 %v3053
  %v3055 = vextract.high.u32 %v3053
  %v3056 = vmul.u32 %v3049, %v3040
  %v3057 = vadd.s32 %v3052, %v3054
  %vm3058 = vc.u32 %v3052, %v3054
  %v3059 = vadd.s32 %v3055, 1
  %v3060 = vsel %vm3058, %v3059, %v3055
  %v3061 = vadd.s32 %v3056, %v3060
  %v3062 = vadd.s32 %v3061, 536870912
  %v3063 = vshrl.u32 %v3062, 30
  %v3064 = vshll.u32 %v3063, 30
  %v3065 = vsub.s32 %v3061, %v3064
  %vm3066 = vcmp.lt.s32.totalorder %v3065, 0
  %v3067 = vsub.s32 0, %v3065
  %v3068 = vsel %vm3066, %v3067, %v3065
  %v3069 = vclz %v3068
  %v3070 = vsub.s32 %v3069, 2
  %vm3071 = vcmp.gt.s32.totalorder 0, %v3070
  %v3072 = vsel %vm3071, 0, %v3070
  %v3073 = vsub.s32 32, %v3072
  %v3074 = vshll.u32 %v3065, %v3072
  %v3075 = vshrl.u32 %v3057, %v3073
  %v3076 = vor.u32 %v3074, %v3075
  %v3077 = vsub.s32 4294967266, %v3072
  %v3078 = vadd.s32 %v3077, 127
  %v3079 = vshll.u32 %v3078, 23
  %v3080 = vor.u32 4788187, %v3079
  %v3081 = vand.u32 2147483647, %v3080
  %v3083 = vcvt.s32.f32 %v3076
  %v3084 = vmul.f32 %v3083, %v3081
  %v3085 = vxor.u32 %v3084, 2147483648
  %v3086 = vsel %vm3003, %v3085, %v3084
  %v3087 = vsub.s32 4, %v3063
  %v3088 = vsel %vm3003, %v3087, %v3063
  %v3089 = vsel %vm3002, %v400, %v3086
  %v3090 = vsel %vm3002, 0, %v3088
  %v3091 = vcosq.f32.pop %v3089
  %v3092 = vsinq.f32.pop %v3089
  %vm3093 = vweird.f32 %v400
  %v3094 = vadd.s32 %v3090, 3
  %v3095 = vand.u32 %v3094, 3
  %vm3096 = vcmp.lt.s32.totalorder %v3095, 2
  %vm3097 = vcmp.eq.s32.totalorder %v3095, 0
  %v3098 = vxor.u32 %v3092, 2147483648
  %v3099 = vsel %vm3097, %v3091, %v3098
  %vm3100 = vcmp.eq.s32.totalorder %v3095, 2
  %v3101 = vxor.u32 %v3091, 2147483648
  %v3102 = vsel %vm3100, %v3101, %v3092
  %v3103 = vsel %vm3096, %v3099, %v3102
  %v3104 = vsel %vm3093, nan, %v3103
  %v3105 = vpack.c.bf16 %v608, %v504
  %v3106 = vpack.c.bf16 %v25, %v24
  %v3107 = vpack.c.bf16 %v816, %v712
  %v3108 = vpack.c.bf16 %v27, %v26
  %v3109 = vpack.c.bf16 %v1024, %v920
  %v3110 = vpack.c.bf16 %v29, %v28
  %v3111 = vpack.c.bf16 %v1232, %v1128
  %v3112 = vpack.c.bf16 %v31, %v30
  %v3113 = vpack.c.bf16 %v1440, %v1336
  %v3114 = vpack.c.bf16 %v33, %v32
  %v3115 = vpack.c.bf16 %v1648, %v1544
  %v3116 = vpack.c.bf16 %v35, %v34
  %v3117 = vpack.c.bf16 %v1856, %v1752
  %v3118 = vpack.c.bf16 %v37, %v36
  %v3119 = vpack.c.bf16 %v2064, %v1960
  %v3120 = vpack.c.bf16 %v39, %v38
  %v3121 = vpack.c.bf16 %v2272, %v2168
  %v3122 = vpack.c.bf16 %v41, %v40
  %v3123 = vpack.c.bf16 %v2480, %v2376
  %v3124 = vpack.c.bf16 %v43, %v42
  %v3125 = vpack.c.bf16 %v2688, %v2584
  %v3126 = vpack.c.bf16 %v45, %v44
  %v3127 = vpack.c.bf16 %v2896, %v2792
  %v3128 = vpack.c.bf16 %v47, %v46
  %v3129 = vpack.c.bf16 %v3104, %v3000
  %v3130 = vpack.c.bf16 %v49, %v48
  %v3131 = vld [vmem:[%s2] sm:$0xff]
  %v3132 = vld [vmem:[%s2 + $0x8] sm:$0xff]
  %v3133 = vld [vmem:[%s2 + $0x10] sm:$0xff]
  %v3134 = vld [vmem:[%s2 + $0x18] sm:$0xff]
  %v3135 = vld [vmem:[%s2 + $0x20] sm:$0xff]
  %v3136 = vld [vmem:[%s2 + $0x28] sm:$0xff]
  %v3137 = vld [vmem:[%s2 + $0x30] sm:$0xff]
  %v3138 = vld [vmem:[%s2 + $0x38] sm:$0xff]
  %v3139 = vld [vmem:[%s2 + $0x40] sm:$0xff]
  %v3140 = vld [vmem:[%s2 + $0x48] sm:$0xff]
  %v3141 = vld [vmem:[%s2 + $0x50] sm:$0xff]
  %v3142 = vld [vmem:[%s2 + $0x58] sm:$0xff]
  %v3143 = vld [vmem:[%s2 + $0x60] sm:$0xff]
  %v3144 = vld [vmem:[%s2 + $0x68] sm:$0xff]
  %v3145 = vld [vmem:[%s2 + $0x70] sm:$0xff]
  %v3146 = vld [vmem:[%s2 + $0x78] sm:$0xff]
  %v3147 = vld [vmem:[%s2 + $0x80] sm:$0xff]
  %v3148 = vld [vmem:[%s2 + $0x88] sm:$0xff]
  %v3149 = vld [vmem:[%s2 + $0x90] sm:$0xff]
  %v3150 = vld [vmem:[%s2 + $0x98] sm:$0xff]
  %v3151 = vld [vmem:[%s2 + $0xa0] sm:$0xff]
  %v3152 = vld [vmem:[%s2 + $0xa8] sm:$0xff]
  %v3153 = vld [vmem:[%s2 + $0xb0] sm:$0xff]
  %v3154 = vld [vmem:[%s2 + $0xb8] sm:$0xff]
  %v3155 = vld [vmem:[%s2 + $0xc0] sm:$0xff]
  %v3156 = vld [vmem:[%s2 + $0xc8] sm:$0xff]
  %v3157 = vld [vmem:[%s2 + $0xd0] sm:$0xff]
  %v3158 = vld [vmem:[%s2 + $0xd8] sm:$0xff]
  %v3159 = vld [vmem:[%s2 + $0xe0] sm:$0xff]
  %v3160 = vld [vmem:[%s2 + $0xe8] sm:$0xff]
  %v3161 = vld [vmem:[%s2 + $0xf0] sm:$0xff]
  %v3162 = vld [vmem:[%s2 + $0xf8] sm:$0xff]
  %v3163 = vld [vmem:[%s2 + $0x100] sm:$0xff]
  %v3164 = vld [vmem:[%s2 + $0x108] sm:$0xff]
  %v3165 = vld [vmem:[%s2 + $0x110] sm:$0xff]
  %v3166 = vld [vmem:[%s2 + $0x118] sm:$0xff]
  %v3203 = vunpack.c.l.b16 %v3131
  %v3204 = vunpack.c.h.b16 %v3131
  %v3205 = vunpack.c.l.b16 %v3132
  %v3206 = vunpack.c.h.b16 %v3132
  %v3207 = vunpack.c.l.b16 %v3133
  %v3208 = vunpack.c.h.b16 %v3133
  %v3209 = vunpack.c.l.b16 %v3134
  %v3210 = vunpack.c.h.b16 %v3134
  %v3211 = vunpack.c.l.b16 %v3135
  %v3212 = vunpack.c.h.b16 %v3135
  %v3213 = vunpack.c.l.b16 %v3136
  %v3214 = vunpack.c.h.b16 %v3136
  %v3215 = vunpack.c.l.b16 %v3137
  %v3216 = vunpack.c.h.b16 %v3137
  %v3217 = vunpack.c.l.b16 %v3138
  %v3218 = vunpack.c.h.b16 %v3138
  %v3219 = vunpack.c.l.b16 %v3139
  %v3220 = vunpack.c.h.b16 %v3139
  %v3221 = vunpack.c.l.b16 %v3140
  %v3222 = vunpack.c.h.b16 %v3140
  %v3223 = vunpack.c.l.b16 %v3141
  %v3224 = vunpack.c.h.b16 %v3141
  %v3225 = vunpack.c.l.b16 %v3142
  %v3226 = vunpack.c.h.b16 %v3142
  %v3227 = vunpack.c.l.b16 %v3143
  %v3228 = vunpack.c.h.b16 %v3143
  %v3229 = vunpack.c.l.b16 %v3144
  %v3230 = vunpack.c.h.b16 %v3144
  %v3231 = vunpack.c.l.b16 %v3145
  %v3232 = vunpack.c.h.b16 %v3145
  %v3233 = vunpack.c.l.b16 %v3146
  %v3234 = vunpack.c.h.b16 %v3146
  %v3235 = vunpack.c.l.b16 %v3147
  %v3236 = vunpack.c.h.b16 %v3147
  %v3237 = vunpack.c.l.b16 %v3148
  %v3238 = vunpack.c.h.b16 %v3148
  %v3239 = vunpack.c.l.b16 %v3149
  %v3240 = vunpack.c.h.b16 %v3149
  %v3241 = vunpack.c.l.b16 %v3150
  %v3242 = vunpack.c.h.b16 %v3150
  %v3243 = vunpack.c.l.b16 %v3151
  %v3244 = vunpack.c.h.b16 %v3151
  %v3245 = vunpack.c.l.b16 %v3152
  %v3246 = vunpack.c.h.b16 %v3152
  %v3247 = vunpack.c.l.b16 %v3153
  %v3248 = vunpack.c.h.b16 %v3153
  %v3249 = vunpack.c.l.b16 %v3154
  %v3250 = vunpack.c.h.b16 %v3154
  %v3251 = vunpack.c.l.b16 %v3155
  %v3252 = vunpack.c.h.b16 %v3155
  %v3253 = vunpack.c.l.b16 %v3156
  %v3254 = vunpack.c.h.b16 %v3156
  %v3255 = vunpack.c.l.b16 %v3157
  %v3256 = vunpack.c.h.b16 %v3157
  %v3257 = vunpack.c.l.b16 %v3158
  %v3258 = vunpack.c.h.b16 %v3158
  %v3259 = vunpack.c.l.b16 %v3159
  %v3260 = vunpack.c.h.b16 %v3159
  %v3261 = vunpack.c.l.b16 %v3160
  %v3262 = vunpack.c.h.b16 %v3160
  %v3263 = vunpack.c.l.b16 %v3161
  %v3264 = vunpack.c.h.b16 %v3161
  %v3265 = vunpack.c.l.b16 %v3162
  %v3266 = vunpack.c.h.b16 %v3162
  %v3267 = vunpack.c.l.b16 %v3163
  %v3268 = vunpack.c.h.b16 %v3163
  %v3269 = vunpack.c.l.b16 %v3164
  %v3270 = vunpack.c.h.b16 %v3164
  %v3271 = vunpack.c.l.b16 %v3165
  %v3272 = vunpack.c.h.b16 %v3165
  %v3273 = vunpack.c.l.b16 %v3166
  %v3274 = vunpack.c.h.b16 %v3166
  %v3275 = vpack.c.b16 %v3207, %v3203
  %v3276 = vpack.c.b16 %v3208, %v3204
  %v3277 = vpack.c.b16 %v3209, %v3205
  %v3278 = vpack.c.b16 %v3210, %v3206
  %v3279 = vpack.c.b16 %v3215, %v3211
  %v3280 = vpack.c.b16 %v3216, %v3212
  %v3281 = vpack.c.b16 %v3217, %v3213
  %v3282 = vpack.c.b16 %v3218, %v3214
  %v3283 = vpack.c.b16 %v3223, %v3219
  %v3284 = vpack.c.b16 %v3224, %v3220
  %v3285 = vpack.c.b16 %v3225, %v3221
  %v3286 = vpack.c.b16 %v3226, %v3222
  %v3287 = vpack.c.b16 %v3231, %v3227
  %v3288 = vpack.c.b16 %v3232, %v3228
  %v3289 = vpack.c.b16 %v3233, %v3229
  %v3290 = vpack.c.b16 %v3234, %v3230
  %v3291 = vpack.c.b16 %v3239, %v3235
  %v3292 = vpack.c.b16 %v3240, %v3236
  %v3293 = vpack.c.b16 %v3241, %v3237
  %v3294 = vpack.c.b16 %v3242, %v3238
  %v3295 = vpack.c.b16 %v3247, %v3243
  %v3296 = vpack.c.b16 %v3248, %v3244
  %v3297 = vpack.c.b16 %v3249, %v3245
  %v3298 = vpack.c.b16 %v3250, %v3246
  %v3299 = vpack.c.b16 %v3255, %v3251
  %v3300 = vpack.c.b16 %v3256, %v3252
  %v3301 = vpack.c.b16 %v3257, %v3253
  %v3302 = vpack.c.b16 %v3258, %v3254
  %v3303 = vpack.c.b16 %v3263, %v3259
  %v3304 = vpack.c.b16 %v3264, %v3260
  %v3305 = vpack.c.b16 %v3265, %v3261
  %v3306 = vpack.c.b16 %v3266, %v3262
  %v3307 = vpack.c.b16 %v3271, %v3267
  %v3308 = vpack.c.b16 %v3272, %v3268
  %v3309 = vpack.c.b16 %v3273, %v3269
  %v3310 = vpack.c.b16 %v3274, %v3270
  %vm3347 = vcmask 130048
  %v3349 = vsel %vm3347, %v3106, 0
  %v3352 = vsel %vm3347, %v3108, 0
  %v3355 = vsel %vm3347, %v3110, 0
  %v3358 = vsel %vm3347, %v3112, 0
  %v3361 = vsel %vm3347, %v3114, 0
  %v3364 = vsel %vm3347, %v3116, 0
  %v3367 = vsel %vm3347, %v3118, 0
  %v3370 = vsel %vm3347, %v3120, 0
  %v3373 = vsel %vm3347, %v3122, 0
  %v3376 = vsel %vm3347, %v3124, 0
  %v3379 = vsel %vm3347, %v3126, 0
  %v3382 = vsel %vm3347, %v3128, 0
  %v3385 = vsel %vm3347, %v3130, 0
  %3387 = vmatprep.subr.bf16.mxu0 %v3276
  %3388 = vmatpush1.bf16.msra.mxu0 %v3275
  %3389 = vmatprep.subr.bf16.mxu0 %v3280
  %3390 = vmatpush1.bf16.msra.mxu0 %v3279
  %3391 = vmatprep.subr.bf16.mxu0 %v3284
  %3392 = vmatpush1.bf16.msra.mxu0 %v3283
  %3393 = vmatprep.subr.bf16.mxu0 %v3288
  %3394 = vmatpush1.bf16.msra.mxu0 %v3287
  %3395 = vmatprep.subr.bf16.mxu0 %v3292
  %3396 = vmatpush1.bf16.msra.mxu0 %v3291
  %3397 = vmatprep.subr.bf16.mxu0 %v3296
  %3398 = vmatpush1.bf16.msra.mxu0 %v3295
  %3399 = vmatprep.subr.bf16.mxu0 %v3300
  %3400 = vmatpush1.bf16.msra.mxu0 %v3299
  %3401 = vmatprep.subr.bf16.mxu0 %v3304
  %3402 = vmatpush1.bf16.msra.mxu0 %v3303
  %3403 = vmatprep.subr.bf16.mxu0 %v3308
  %3404 = vmatpush1.bf16.msra.mxu0 %v3307
  %3405 = vmatprep.subr.bf16.mxu0 0
  %3406 = vmatpush1.bf16.msra.mxu0 0
  %3407 = vmatprep.subr.bf16.mxu0 0
  %3408 = vmatpush1.bf16.msra.mxu0 0
  %3409 = vmatprep.subr.bf16.mxu0 0
  %3410 = vmatpush1.bf16.msra.mxu0 0
  %3411 = vmatprep.subr.bf16.mxu0 0
  %3412 = vmatpush1.bf16.msra.mxu0 0
  %3413 = vmatprep.subr.bf16.mxu0 0
  %3414 = vmatpush1.bf16.msra.mxu0 0
  %3415 = vmatprep.subr.bf16.mxu0 0
  %3416 = vmatpush1.bf16.msra.mxu0 0
  %3417 = vmatprep.subr.bf16.mxu0 0
  %3418 = vmatpush1.bf16.msra.mxu0 0
  %3419 = vmatprep.mubr.bf16.mxu0 %v3349
  %3420 = vmatmul.mubr.bf16.gmra.mrb[0].mxu0 %v3105
  %v3421 = vpop.f32.mrb[0].mxu0
  %v3422 = vadd.f32 0.0, %v3421
  %v3423 = vpop.f32.mrb[0].mxu0
  %v3424 = vadd.f32 0.0, %v3423
  %v3425 = vpop.f32.mrb[0].mxu0
  %v3426 = vadd.f32 0.0, %v3425
  %v3427 = vpop.f32.mrb[0].mxu0
  %v3428 = vadd.f32 0.0, %v3427
  %3429 = vmatprep.mubr.bf16.mxu0 %v3352
  %3430 = vmatmul.mubr.bf16.gmra.mrb[0].mxu0 %v3107
  %v3431 = vpop.f32.mrb[0].mxu0
  %v3432 = vadd.f32 0.0, %v3431
  %v3433 = vpop.f32.mrb[0].mxu0
  %v3434 = vadd.f32 0.0, %v3433
  %v3435 = vpop.f32.mrb[0].mxu0
  %v3436 = vadd.f32 0.0, %v3435
  %v3437 = vpop.f32.mrb[0].mxu0
  %v3438 = vadd.f32 0.0, %v3437
  %3439 = vmatprep.mubr.bf16.mxu0 %v3355
  %3440 = vmatmul.mubr.bf16.gmra.mrb[0].mxu0 %v3109
  %v3441 = vpop.f32.mrb[0].mxu0
  %v3442 = vadd.f32 0.0, %v3441
  %v3443 = vpop.f32.mrb[0].mxu0
  %v3444 = vadd.f32 0.0, %v3443
  %v3445 = vpop.f32.mrb[0].mxu0
  %v3446 = vadd.f32 0.0, %v3445
  %v3447 = vpop.f32.mrb[0].mxu0
  %v3448 = vadd.f32 0.0, %v3447
  %3449 = vmatprep.mubr.bf16.mxu0 %v3358
  %3450 = vmatmul.mubr.bf16.gmra.mrb[0].mxu0 %v3111
  %v3451 = vpop.f32.mrb[0].mxu0
  %v3452 = vadd.f32 0.0, %v3451
  %v3453 = vpop.f32.mrb[0].mxu0
  %v3454 = vadd.f32 0.0, %v3453
  %v3455 = vpop.f32.mrb[0].mxu0
  %v3456 = vadd.f32 0.0, %v3455
  %v3457 = vpop.f32.mrb[0].mxu0
  %v3458 = vadd.f32 0.0, %v3457
  %3459 = vmatprep.mubr.bf16.mxu0 %v3361
  %3460 = vmatmul.mubr.bf16.gmra.mrb[0].mxu0 %v3113
  %v3461 = vpop.f32.mrb[0].mxu0
  %v3462 = vadd.f32 0.0, %v3461
  %v3463 = vpop.f32.mrb[0].mxu0
  %v3464 = vadd.f32 0.0, %v3463
  %v3465 = vpop.f32.mrb[0].mxu0
  %v3466 = vadd.f32 0.0, %v3465
  %v3467 = vpop.f32.mrb[0].mxu0
  %v3468 = vadd.f32 0.0, %v3467
  %3469 = vmatprep.mubr.bf16.mxu0 %v3364
  %3470 = vmatmul.mubr.bf16.gmra.mrb[0].mxu0 %v3115
  %v3471 = vpop.f32.mrb[0].mxu0
  %v3472 = vadd.f32 0.0, %v3471
  %v3473 = vpop.f32.mrb[0].mxu0
  %v3474 = vadd.f32 0.0, %v3473
  %v3475 = vpop.f32.mrb[0].mxu0
  %v3476 = vadd.f32 0.0, %v3475
  %v3477 = vpop.f32.mrb[0].mxu0
  %v3478 = vadd.f32 0.0, %v3477
  %3479 = vmatprep.mubr.bf16.mxu0 %v3367
  %3480 = vmatmul.mubr.bf16.gmra.mrb[0].mxu0 %v3117
  %v3481 = vpop.f32.mrb[0].mxu0
  %v3482 = vadd.f32 0.0, %v3481
  %v3483 = vpop.f32.mrb[0].mxu0
  %v3484 = vadd.f32 0.0, %v3483
  %v3485 = vpop.f32.mrb[0].mxu0
  %v3486 = vadd.f32 0.0, %v3485
  %v3487 = vpop.f32.mrb[0].mxu0
  %v3488 = vadd.f32 0.0, %v3487
  %3489 = vmatprep.mubr.bf16.mxu0 %v3370
  %3490 = vmatmul.mubr.bf16.gmra.mrb[0].mxu0 %v3119
  %v3491 = vpop.f32.mrb[0].mxu0
  %v3492 = vadd.f32 0.0, %v3491
  %v3493 = vpop.f32.mrb[0].mxu0
  %v3494 = vadd.f32 0.0, %v3493
  %v3495 = vpop.f32.mrb[0].mxu0
  %v3496 = vadd.f32 0.0, %v3495
  %v3497 = vpop.f32.mrb[0].mxu0
  %v3498 = vadd.f32 0.0, %v3497
  %3499 = vmatprep.mubr.bf16.mxu0 %v3373
  %3500 = vmatmul.mubr.bf16.gmra.mrb[0].mxu0 %v3121
  %v3501 = vpop.f32.mrb[0].mxu0
  %v3502 = vadd.f32 0.0, %v3501
  %v3503 = vpop.f32.mrb[0].mxu0
  %v3504 = vadd.f32 0.0, %v3503
  %v3505 = vpop.f32.mrb[0].mxu0
  %v3506 = vadd.f32 0.0, %v3505
  %v3507 = vpop.f32.mrb[0].mxu0
  %v3508 = vadd.f32 0.0, %v3507
  %3509 = vmatprep.mubr.bf16.mxu0 %v3376
  %3510 = vmatmul.mubr.bf16.gmra.mrb[0].mxu0 %v3123
  %v3511 = vpop.f32.mrb[0].mxu0
  %v3512 = vadd.f32 0.0, %v3511
  %v3513 = vpop.f32.mrb[0].mxu0
  %v3514 = vadd.f32 0.0, %v3513
  %v3515 = vpop.f32.mrb[0].mxu0
  %v3516 = vadd.f32 0.0, %v3515
  %v3517 = vpop.f32.mrb[0].mxu0
  %v3518 = vadd.f32 0.0, %v3517
  %3519 = vmatprep.mubr.bf16.mxu0 %v3379
  %3520 = vmatmul.mubr.bf16.gmra.mrb[0].mxu0 %v3125
  %v3521 = vpop.f32.mrb[0].mxu0
  %v3522 = vadd.f32 0.0, %v3521
  %v3523 = vpop.f32.mrb[0].mxu0
  %v3524 = vadd.f32 0.0, %v3523
  %v3525 = vpop.f32.mrb[0].mxu0
  %v3526 = vadd.f32 0.0, %v3525
  %v3527 = vpop.f32.mrb[0].mxu0
  %v3528 = vadd.f32 0.0, %v3527
  %3529 = vmatprep.mubr.bf16.mxu0 %v3382
  %3530 = vmatmul.mubr.bf16.gmra.mrb[0].mxu0 %v3127
  %v3531 = vpop.f32.mrb[0].mxu0
  %v3532 = vadd.f32 0.0, %v3531
  %v3533 = vpop.f32.mrb[0].mxu0
  %v3534 = vadd.f32 0.0, %v3533
  %v3535 = vpop.f32.mrb[0].mxu0
  %v3536 = vadd.f32 0.0, %v3535
  %v3537 = vpop.f32.mrb[0].mxu0
  %v3538 = vadd.f32 0.0, %v3537
  %3539 = vmatprep.mubr.bf16.mxu0 %v3385
  %3540 = vmatmul.mubr.bf16.gmra.mrb[0].mxu0 %v3129
  %v3541 = vpop.f32.mrb[0].mxu0
  %v3542 = vadd.f32 0.0, %v3541
  %v3543 = vpop.f32.mrb[0].mxu0
  %v3544 = vadd.f32 0.0, %v3543
  %v3545 = vpop.f32.mrb[0].mxu0
  %v3546 = vadd.f32 0.0, %v3545
  %v3547 = vpop.f32.mrb[0].mxu0
  %v3548 = vadd.f32 0.0, %v3547
  %3549 = vdwg.mxu0
  %3550 = vmatprep.subr.bf16.mxu0 %v3278
  %3551 = vmatpush1.bf16.msra.mxu0 %v3277
  %3552 = vmatprep.subr.bf16.mxu0 %v3282
  %3553 = vmatpush1.bf16.msra.mxu0 %v3281
  %3554 = vmatprep.subr.bf16.mxu0 %v3286
  %3555 = vmatpush1.bf16.msra.mxu0 %v3285
  %3556 = vmatprep.subr.bf16.mxu0 %v3290
  %3557 = vmatpush1.bf16.msra.mxu0 %v3289
  %3558 = vmatprep.subr.bf16.mxu0 %v3294
  %3559 = vmatpush1.bf16.msra.mxu0 %v3293
  %3560 = vmatprep.subr.bf16.mxu0 %v3298
  %3561 = vmatpush1.bf16.msra.mxu0 %v3297
  %3562 = vmatprep.subr.bf16.mxu0 %v3302
  %3563 = vmatpush1.bf16.msra.mxu0 %v3301
  %3564 = vmatprep.subr.bf16.mxu0 %v3306
  %3565 = vmatpush1.bf16.msra.mxu0 %v3305
  %3566 = vmatprep.subr.bf16.mxu0 %v3310
  %3567 = vmatpush1.bf16.msra.mxu0 %v3309
  %3568 = vmatprep.subr.bf16.mxu0 0
  %3569 = vmatpush1.bf16.msra.mxu0 0
  %3570 = vmatprep.subr.bf16.mxu0 0
  %3571 = vmatpush1.bf16.msra.mxu0 0
  %3572 = vmatprep.subr.bf16.mxu0 0
  %3573 = vmatpush1.bf16.msra.mxu0 0
  %3574 = vmatprep.subr.bf16.mxu0 0
  %3575 = vmatpush1.bf16.msra.mxu0 0
  %3576 = vmatprep.subr.bf16.mxu0 0
  %3577 = vmatpush1.bf16.msra.mxu0 0
  %3578 = vmatprep.subr.bf16.mxu0 0
  %3579 = vmatpush1.bf16.msra.mxu0 0
  %3580 = vmatprep.subr.bf16.mxu0 0
  %3581 = vmatpush1.bf16.msra.mxu0 0
  %3582 = vmatprep.mubr.bf16.mxu0 %v3349
  %3583 = vmatmul.mubr.bf16.gmra.mrb[0].mxu0 %v3105
  %v3584 = vpop.f32.mrb[0].mxu0
  %v3585 = vadd.f32 0.0, %v3584
  %v3586 = vpop.f32.mrb[0].mxu0
  %v3587 = vadd.f32 0.0, %v3586
  %v3588 = vpop.f32.mrb[0].mxu0
  %v3589 = vadd.f32 0.0, %v3588
  %v3590 = vpop.f32.mrb[0].mxu0
  %v3591 = vadd.f32 0.0, %v3590
  %3592 = vmatprep.mubr.bf16.mxu0 %v3352
  %3593 = vmatmul.mubr.bf16.gmra.mrb[0].mxu0 %v3107
  %v3594 = vpop.f32.mrb[0].mxu0
  %v3595 = vadd.f32 0.0, %v3594
  %v3596 = vpop.f32.mrb[0].mxu0
  %v3597 = vadd.f32 0.0, %v3596
  %v3598 = vpop.f32.mrb[0].mxu0
  %v3599 = vadd.f32 0.0, %v3598
  %v3600 = vpop.f32.mrb[0].mxu0
  %v3601 = vadd.f32 0.0, %v3600
  %3602 = vmatprep.mubr.bf16.mxu0 %v3355
  %3603 = vmatmul.mubr.bf16.gmra.mrb[0].mxu0 %v3109
  %v3604 = vpop.f32.mrb[0].mxu0
  %v3605 = vadd.f32 0.0, %v3604
  %v3606 = vpop.f32.mrb[0].mxu0
  %v3607 = vadd.f32 0.0, %v3606
  %v3608 = vpop.f32.mrb[0].mxu0
  %v3609 = vadd.f32 0.0, %v3608
  %v3610 = vpop.f32.mrb[0].mxu0
  %v3611 = vadd.f32 0.0, %v3610
  %3612 = vmatprep.mubr.bf16.mxu0 %v3358
  %3613 = vmatmul.mubr.bf16.gmra.mrb[0].mxu0 %v3111
  %v3614 = vpop.f32.mrb[0].mxu0
  %v3615 = vadd.f32 0.0, %v3614
  %v3616 = vpop.f32.mrb[0].mxu0
  %v3617 = vadd.f32 0.0, %v3616
  %v3618 = vpop.f32.mrb[0].mxu0
  %v3619 = vadd.f32 0.0, %v3618
  %v3620 = vpop.f32.mrb[0].mxu0
  %v3621 = vadd.f32 0.0, %v3620
  %3622 = vmatprep.mubr.bf16.mxu0 %v3361
  %3623 = vmatmul.mubr.bf16.gmra.mrb[0].mxu0 %v3113
  %v3624 = vpop.f32.mrb[0].mxu0
  %v3625 = vadd.f32 0.0, %v3624
  %v3626 = vpop.f32.mrb[0].mxu0
  %v3627 = vadd.f32 0.0, %v3626
  %v3628 = vpop.f32.mrb[0].mxu0
  %v3629 = vadd.f32 0.0, %v3628
  %v3630 = vpop.f32.mrb[0].mxu0
  %v3631 = vadd.f32 0.0, %v3630
  %3632 = vmatprep.mubr.bf16.mxu0 %v3364
  %3633 = vmatmul.mubr.bf16.gmra.mrb[0].mxu0 %v3115
  %v3634 = vpop.f32.mrb[0].mxu0
  %v3635 = vadd.f32 0.0, %v3634
  %v3636 = vpop.f32.mrb[0].mxu0
  %v3637 = vadd.f32 0.0, %v3636
  %v3638 = vpop.f32.mrb[0].mxu0
  %v3639 = vadd.f32 0.0, %v3638
  %v3640 = vpop.f32.mrb[0].mxu0
  %v3641 = vadd.f32 0.0, %v3640
  %3642 = vmatprep.mubr.bf16.mxu0 %v3367
  %3643 = vmatmul.mubr.bf16.gmra.mrb[0].mxu0 %v3117
  %v3644 = vpop.f32.mrb[0].mxu0
  %v3645 = vadd.f32 0.0, %v3644
  %v3646 = vpop.f32.mrb[0].mxu0
  %v3647 = vadd.f32 0.0, %v3646
  %v3648 = vpop.f32.mrb[0].mxu0
  %v3649 = vadd.f32 0.0, %v3648
  %v3650 = vpop.f32.mrb[0].mxu0
  %v3651 = vadd.f32 0.0, %v3650
  %3652 = vmatprep.mubr.bf16.mxu0 %v3370
  %3653 = vmatmul.mubr.bf16.gmra.mrb[0].mxu0 %v3119
  %v3654 = vpop.f32.mrb[0].mxu0
  %v3655 = vadd.f32 0.0, %v3654
  %v3656 = vpop.f32.mrb[0].mxu0
  %v3657 = vadd.f32 0.0, %v3656
  %v3658 = vpop.f32.mrb[0].mxu0
  %v3659 = vadd.f32 0.0, %v3658
  %v3660 = vpop.f32.mrb[0].mxu0
  %v3661 = vadd.f32 0.0, %v3660
  %3662 = vmatprep.mubr.bf16.mxu0 %v3373
  %3663 = vmatmul.mubr.bf16.gmra.mrb[0].mxu0 %v3121
  %v3664 = vpop.f32.mrb[0].mxu0
  %v3665 = vadd.f32 0.0, %v3664
  %v3666 = vpop.f32.mrb[0].mxu0
  %v3667 = vadd.f32 0.0, %v3666
  %v3668 = vpop.f32.mrb[0].mxu0
  %v3669 = vadd.f32 0.0, %v3668
  %v3670 = vpop.f32.mrb[0].mxu0
  %v3671 = vadd.f32 0.0, %v3670
  %3672 = vmatprep.mubr.bf16.mxu0 %v3376
  %3673 = vmatmul.mubr.bf16.gmra.mrb[0].mxu0 %v3123
  %v3674 = vpop.f32.mrb[0].mxu0
  %v3675 = vadd.f32 0.0, %v3674
  %v3676 = vpop.f32.mrb[0].mxu0
  %v3677 = vadd.f32 0.0, %v3676
  %v3678 = vpop.f32.mrb[0].mxu0
  %v3679 = vadd.f32 0.0, %v3678
  %v3680 = vpop.f32.mrb[0].mxu0
  %v3681 = vadd.f32 0.0, %v3680
  %3682 = vmatprep.mubr.bf16.mxu0 %v3379
  %3683 = vmatmul.mubr.bf16.gmra.mrb[0].mxu0 %v3125
  %v3684 = vpop.f32.mrb[0].mxu0
  %v3685 = vadd.f32 0.0, %v3684
  %v3686 = vpop.f32.mrb[0].mxu0
  %v3687 = vadd.f32 0.0, %v3686
  %v3688 = vpop.f32.mrb[0].mxu0
  %v3689 = vadd.f32 0.0, %v3688
  %v3690 = vpop.f32.mrb[0].mxu0
  %v3691 = vadd.f32 0.0, %v3690
  %3692 = vmatprep.mubr.bf16.mxu0 %v3382
  %3693 = vmatmul.mubr.bf16.gmra.mrb[0].mxu0 %v3127
  %v3694 = vpop.f32.mrb[0].mxu0
  %v3695 = vadd.f32 0.0, %v3694
  %v3696 = vpop.f32.mrb[0].mxu0
  %v3697 = vadd.f32 0.0, %v3696
  %v3698 = vpop.f32.mrb[0].mxu0
  %v3699 = vadd.f32 0.0, %v3698
  %v3700 = vpop.f32.mrb[0].mxu0
  %v3701 = vadd.f32 0.0, %v3700
  %3702 = vmatprep.mubr.bf16.mxu0 %v3385
  %3703 = vmatmul.mubr.bf16.gmra.mrb[0].mxu0 %v3129
  %v3704 = vpop.f32.mrb[0].mxu0
  %v3705 = vadd.f32 0.0, %v3704
  %v3706 = vpop.f32.mrb[0].mxu0
  %v3707 = vadd.f32 0.0, %v3706
  %v3708 = vpop.f32.mrb[0].mxu0
  %v3709 = vadd.f32 0.0, %v3708
  %v3710 = vpop.f32.mrb[0].mxu0
  %v3711 = vadd.f32 0.0, %v3710
  %3712 = vdwg.mxu0
  %v3713 = vld [vmem:[%s5] sm:$0xff]
  %v3714 = vld [vmem:[%s5 + $0x8] sm:$0xff]
  %v3715 = vlaneseq
  %v3716 = vshrl.u32 %v3715, 7
  %v3717 = vsub.s32 0, %v3716
  %v3718 = vrot.slane %v3713, %v3717
  %v3719 = vlaneseq
  %v3720 = vshrl.u32 %v3719, 7
  %v3721 = vsub.s32 0, %v3720
  %v3722 = vrot.slane %v3714, %v3721
  %v3723 = vadd.f32 %v3422, %v3718
  %v3724 = vadd.f32 %v3424, %v3722
  %v3725 = vadd.f32 %v3426, %v3718
  %v3726 = vadd.f32 %v3428, %v3722
  %v3727 = vadd.f32 %v3432, %v3718
  %v3728 = vadd.f32 %v3434, %v3722
  %v3729 = vadd.f32 %v3436, %v3718
  %v3730 = vadd.f32 %v3438, %v3722
  %v3731 = vadd.f32 %v3442, %v3718
  %v3732 = vadd.f32 %v3444, %v3722
  %v3733 = vadd.f32 %v3446, %v3718
  %v3734 = vadd.f32 %v3448, %v3722
  %v3735 = vadd.f32 %v3452, %v3718
  %v3736 = vadd.f32 %v3454, %v3722
  %v3737 = vadd.f32 %v3456, %v3718
  %v3738 = vadd.f32 %v3458, %v3722
  %v3739 = vadd.f32 %v3462, %v3718
  %v3740 = vadd.f32 %v3464, %v3722
  %v3741 = vadd.f32 %v3466, %v3718
  %v3742 = vadd.f32 %v3468, %v3722
  %v3743 = vadd.f32 %v3472, %v3718
  %v3744 = vadd.f32 %v3474, %v3722
  %v3745 = vadd.f32 %v3476, %v3718
  %v3746 = vadd.f32 %v3478, %v3722
  %v3747 = vadd.f32 %v3482, %v3718
  %v3748 = vadd.f32 %v3484, %v3722
  %v3749 = vadd.f32 %v3486, %v3718
  %v3750 = vadd.f32 %v3488, %v3722
  %v3751 = vadd.f32 %v3492, %v3718
  %v3752 = vadd.f32 %v3494, %v3722
  %v3753 = vadd.f32 %v3496, %v3718
  %v3754 = vadd.f32 %v3498, %v3722
  %v3755 = vadd.f32 %v3502, %v3718
  %v3756 = vadd.f32 %v3504, %v3722
  %v3757 = vadd.f32 %v3506, %v3718
  %v3758 = vadd.f32 %v3508, %v3722
  %v3759 = vadd.f32 %v3512, %v3718
  %v3760 = vadd.f32 %v3514, %v3722
  %v3761 = vadd.f32 %v3516, %v3718
  %v3762 = vadd.f32 %v3518, %v3722
  %v3763 = vadd.f32 %v3522, %v3718
  %v3764 = vadd.f32 %v3524, %v3722
  %v3765 = vadd.f32 %v3526, %v3718
  %v3766 = vadd.f32 %v3528, %v3722
  %v3767 = vadd.f32 %v3532, %v3718
  %v3768 = vadd.f32 %v3534, %v3722
  %v3769 = vadd.f32 %v3536, %v3718
  %v3770 = vadd.f32 %v3538, %v3722
  %v3771 = vadd.f32 %v3542, %v3718
  %v3772 = vadd.f32 %v3544, %v3722
  %v3773 = vadd.f32 %v3546, %v3718
  %v3774 = vadd.f32 %v3548, %v3722
  %vm3775 = vcmp.gt.f32.partialorder %v3723, 0.0
  %vm3776 = vcmp.gt.f32.partialorder %v3724, 0.0
  %vm3777 = vcmp.gt.f32.partialorder %v3725, 0.0
  %vm3778 = vcmp.gt.f32.partialorder %v3726, 0.0
  %vm3779 = vcmp.gt.f32.partialorder %v3727, 0.0
  %vm3780 = vcmp.gt.f32.partialorder %v3728, 0.0
  %vm3781 = vcmp.gt.f32.partialorder %v3729, 0.0
  %vm3782 = vcmp.gt.f32.partialorder %v3730, 0.0
  %vm3783 = vcmp.gt.f32.partialorder %v3731, 0.0
  %vm3784 = vcmp.gt.f32.partialorder %v3732, 0.0
  %vm3785 = vcmp.gt.f32.partialorder %v3733, 0.0
  %vm3786 = vcmp.gt.f32.partialorder %v3734, 0.0
  %vm3787 = vcmp.gt.f32.partialorder %v3735, 0.0
  %vm3788 = vcmp.gt.f32.partialorder %v3736, 0.0
  %vm3789 = vcmp.gt.f32.partialorder %v3737, 0.0
  %vm3790 = vcmp.gt.f32.partialorder %v3738, 0.0
  %vm3791 = vcmp.gt.f32.partialorder %v3739, 0.0
  %vm3792 = vcmp.gt.f32.partialorder %v3740, 0.0
  %vm3793 = vcmp.gt.f32.partialorder %v3741, 0.0
  %vm3794 = vcmp.gt.f32.partialorder %v3742, 0.0
  %vm3795 = vcmp.gt.f32.partialorder %v3743, 0.0
  %vm3796 = vcmp.gt.f32.partialorder %v3744, 0.0
  %vm3797 = vcmp.gt.f32.partialorder %v3745, 0.0
  %vm3798 = vcmp.gt.f32.partialorder %v3746, 0.0
  %vm3799 = vcmp.gt.f32.partialorder %v3747, 0.0
  %vm3800 = vcmp.gt.f32.partialorder %v3748, 0.0
  %vm3801 = vcmp.gt.f32.partialorder %v3749, 0.0
  %vm3802 = vcmp.gt.f32.partialorder %v3750, 0.0
  %vm3803 = vcmp.gt.f32.partialorder %v3751, 0.0
  %vm3804 = vcmp.gt.f32.partialorder %v3752, 0.0
  %vm3805 = vcmp.gt.f32.partialorder %v3753, 0.0
  %vm3806 = vcmp.gt.f32.partialorder %v3754, 0.0
  %vm3807 = vcmp.gt.f32.partialorder %v3755, 0.0
  %vm3808 = vcmp.gt.f32.partialorder %v3756, 0.0
  %vm3809 = vcmp.gt.f32.partialorder %v3757, 0.0
  %vm3810 = vcmp.gt.f32.partialorder %v3758, 0.0
  %vm3811 = vcmp.gt.f32.partialorder %v3759, 0.0
  %vm3812 = vcmp.gt.f32.partialorder %v3760, 0.0
  %vm3813 = vcmp.gt.f32.partialorder %v3761, 0.0
  %vm3814 = vcmp.gt.f32.partialorder %v3762, 0.0
  %vm3815 = vcmp.gt.f32.partialorder %v3763, 0.0
  %vm3816 = vcmp.gt.f32.partialorder %v3764, 0.0
  %vm3817 = vcmp.gt.f32.partialorder %v3765, 0.0
  %vm3818 = vcmp.gt.f32.partialorder %v3766, 0.0
  %vm3819 = vcmp.gt.f32.partialorder %v3767, 0.0
  %vm3820 = vcmp.gt.f32.partialorder %v3768, 0.0
  %vm3821 = vcmp.gt.f32.partialorder %v3769, 0.0
  %vm3822 = vcmp.gt.f32.partialorder %v3770, 0.0
  %vm3823 = vcmp.gt.f32.partialorder %v3771, 0.0
  %vm3824 = vcmp.gt.f32.partialorder %v3772, 0.0
  %vm3825 = vcmp.gt.f32.partialorder %v3773, 0.0
  %vm3826 = vcmp.gt.f32.partialorder %v3774, 0.0
  %v3827 = vlaneseq
  %v3828 = vshrl.u32 %v3827, 7
  %v3829 = vsub.s32 2, %v3828
  %v3830 = vrot.slane %v3713, %v3829
  %v3831 = vlaneseq
  %v3832 = vshrl.u32 %v3831, 7
  %v3833 = vsub.s32 2, %v3832
  %v3834 = vrot.slane %v3714, %v3833
  %v3835 = vmul.f32 %v3830, %v3723
  %v3836 = vmul.f32 %v3834, %v3724
  %v3837 = vmul.f32 %v3830, %v3725
  %v3838 = vmul.f32 %v3834, %v3726
  %v3839 = vmul.f32 %v3830, %v3727
  %v3840 = vmul.f32 %v3834, %v3728
  %v3841 = vmul.f32 %v3830, %v3729
  %v3842 = vmul.f32 %v3834, %v3730
  %v3843 = vmul.f32 %v3830, %v3731
  %v3844 = vmul.f32 %v3834, %v3732
  %v3845 = vmul.f32 %v3830, %v3733
  %v3846 = vmul.f32 %v3834, %v3734
  %v3847 = vmul.f32 %v3830, %v3735
  %v3848 = vmul.f32 %v3834, %v3736
  %v3849 = vmul.f32 %v3830, %v3737
  %v3850 = vmul.f32 %v3834, %v3738
  %v3851 = vmul.f32 %v3830, %v3739
  %v3852 = vmul.f32 %v3834, %v3740
  %v3853 = vmul.f32 %v3830, %v3741
  %v3854 = vmul.f32 %v3834, %v3742
  %v3855 = vmul.f32 %v3830, %v3743
  %v3856 = vmul.f32 %v3834, %v3744
  %v3857 = vmul.f32 %v3830, %v3745
  %v3858 = vmul.f32 %v3834, %v3746
  %v3859 = vmul.f32 %v3830, %v3747
  %v3860 = vmul.f32 %v3834, %v3748
  %v3861 = vmul.f32 %v3830, %v3749
  %v3862 = vmul.f32 %v3834, %v3750
  %v3863 = vmul.f32 %v3830, %v3751
  %v3864 = vmul.f32 %v3834, %v3752
  %v3865 = vmul.f32 %v3830, %v3753
  %v3866 = vmul.f32 %v3834, %v3754
  %v3867 = vmul.f32 %v3830, %v3755
  %v3868 = vmul.f32 %v3834, %v3756
  %v3869 = vmul.f32 %v3830, %v3757
  %v3870 = vmul.f32 %v3834, %v3758
  %v3871 = vmul.f32 %v3830, %v3759
  %v3872 = vmul.f32 %v3834, %v3760
  %v3873 = vmul.f32 %v3830, %v3761
  %v3874 = vmul.f32 %v3834, %v3762
  %v3875 = vmul.f32 %v3830, %v3763
  %v3876 = vmul.f32 %v3834, %v3764
  %v3877 = vmul.f32 %v3830, %v3765
  %v3878 = vmul.f32 %v3834, %v3766
  %v3879 = vmul.f32 %v3830, %v3767
  %v3880 = vmul.f32 %v3834, %v3768
  %v3881 = vmul.f32 %v3830, %v3769
  %v3882 = vmul.f32 %v3834, %v3770
  %v3883 = vmul.f32 %v3830, %v3771
  %v3884 = vmul.f32 %v3834, %v3772
  %v3885 = vmul.f32 %v3830, %v3773
  %v3886 = vmul.f32 %v3834, %v3774
  %v3887 = vsel %vm3775, %v3723, %v3835
  %v3888 = vsel %vm3776, %v3724, %v3836
  %v3889 = vsel %vm3777, %v3725, %v3837
  %v3890 = vsel %vm3778, %v3726, %v3838
  %v3891 = vsel %vm3779, %v3727, %v3839
  %v3892 = vsel %vm3780, %v3728, %v3840
  %v3893 = vsel %vm3781, %v3729, %v3841
  %v3894 = vsel %vm3782, %v3730, %v3842
  %v3895 = vsel %vm3783, %v3731, %v3843
  %v3896 = vsel %vm3784, %v3732, %v3844
  %v3897 = vsel %vm3785, %v3733, %v3845
  %v3898 = vsel %vm3786, %v3734, %v3846
  %v3899 = vsel %vm3787, %v3735, %v3847
  %v3900 = vsel %vm3788, %v3736, %v3848
  %v3901 = vsel %vm3789, %v3737, %v3849
  %v3902 = vsel %vm3790, %v3738, %v3850
  %v3903 = vsel %vm3791, %v3739, %v3851
  %v3904 = vsel %vm3792, %v3740, %v3852
  %v3905 = vsel %vm3793, %v3741, %v3853
  %v3906 = vsel %vm3794, %v3742, %v3854
  %v3907 = vsel %vm3795, %v3743, %v3855
  %v3908 = vsel %vm3796, %v3744, %v3856
  %v3909 = vsel %vm3797, %v3745, %v3857
  %v3910 = vsel %vm3798, %v3746, %v3858
  %v3911 = vsel %vm3799, %v3747, %v3859
  %v3912 = vsel %vm3800, %v3748, %v3860
  %v3913 = vsel %vm3801, %v3749, %v3861
  %v3914 = vsel %vm3802, %v3750, %v3862
  %v3915 = vsel %vm3803, %v3751, %v3863
  %v3916 = vsel %vm3804, %v3752, %v3864
  %v3917 = vsel %vm3805, %v3753, %v3865
  %v3918 = vsel %vm3806, %v3754, %v3866
  %v3919 = vsel %vm3807, %v3755, %v3867
  %v3920 = vsel %vm3808, %v3756, %v3868
  %v3921 = vsel %vm3809, %v3757, %v3869
  %v3922 = vsel %vm3810, %v3758, %v3870
  %v3923 = vsel %vm3811, %v3759, %v3871
  %v3924 = vsel %vm3812, %v3760, %v3872
  %v3925 = vsel %vm3813, %v3761, %v3873
  %v3926 = vsel %vm3814, %v3762, %v3874
  %v3927 = vsel %vm3815, %v3763, %v3875
  %v3928 = vsel %vm3816, %v3764, %v3876
  %v3929 = vsel %vm3817, %v3765, %v3877
  %v3930 = vsel %vm3818, %v3766, %v3878
  %v3931 = vsel %vm3819, %v3767, %v3879
  %v3932 = vsel %vm3820, %v3768, %v3880
  %v3933 = vsel %vm3821, %v3769, %v3881
  %v3934 = vsel %vm3822, %v3770, %v3882
  %v3935 = vsel %vm3823, %v3771, %v3883
  %v3936 = vsel %vm3824, %v3772, %v3884
  %v3937 = vsel %vm3825, %v3773, %v3885
  %v3938 = vsel %vm3826, %v3774, %v3886
  %v3939 = vpack.c.bf16 %v3889, %v3887
  %v3940 = vpack.c.bf16 %v3890, %v3888
  %v3941 = vpack.c.bf16 %v3893, %v3891
  %v3942 = vpack.c.bf16 %v3894, %v3892
  %v3943 = vpack.c.bf16 %v3897, %v3895
  %v3944 = vpack.c.bf16 %v3898, %v3896
  %v3945 = vpack.c.bf16 %v3901, %v3899
  %v3946 = vpack.c.bf16 %v3902, %v3900
  %v3947 = vpack.c.bf16 %v3905, %v3903
  %v3948 = vpack.c.bf16 %v3906, %v3904
  %v3949 = vpack.c.bf16 %v3909, %v3907
  %v3950 = vpack.c.bf16 %v3910, %v3908
  %v3951 = vpack.c.bf16 %v3913, %v3911
  %v3952 = vpack.c.bf16 %v3914, %v3912
  %v3953 = vpack.c.bf16 %v3917, %v3915
  %v3954 = vpack.c.bf16 %v3918, %v3916
  %v3955 = vpack.c.bf16 %v3921, %v3919
  %v3956 = vpack.c.bf16 %v3922, %v3920
  %v3957 = vpack.c.bf16 %v3925, %v3923
  %v3958 = vpack.c.bf16 %v3926, %v3924
  %v3959 = vpack.c.bf16 %v3929, %v3927
  %v3960 = vpack.c.bf16 %v3930, %v3928
  %v3961 = vpack.c.bf16 %v3933, %v3931
  %v3962 = vpack.c.bf16 %v3934, %v3932
  %v3963 = vpack.c.bf16 %v3937, %v3935
  %v3964 = vpack.c.bf16 %v3938, %v3936
  %v3965 = vld [vmem:[%s3] sm:$0xff]
  %v3966 = vld [vmem:[%s3 + $0x8] sm:$0xff]
  %v3967 = vld [vmem:[%s3 + $0x10] sm:$0xff]
  %v3968 = vld [vmem:[%s3 + $0x18] sm:$0xff]
  %v3969 = vld [vmem:[%s3 + $0x20] sm:$0xff]
  %v3970 = vld [vmem:[%s3 + $0x28] sm:$0xff]
  %v3971 = vld [vmem:[%s3 + $0x30] sm:$0xff]
  %v3972 = vld [vmem:[%s3 + $0x38] sm:$0xff]
  %v3973 = vld [vmem:[%s3 + $0x40] sm:$0xff]
  %v3974 = vld [vmem:[%s3 + $0x48] sm:$0xff]
  %v3975 = vld [vmem:[%s3 + $0x50] sm:$0xff]
  %v3976 = vld [vmem:[%s3 + $0x58] sm:$0xff]
  %v3977 = vld [vmem:[%s3 + $0x60] sm:$0xff]
  %v3978 = vld [vmem:[%s3 + $0x68] sm:$0xff]
  %v3979 = vld [vmem:[%s3 + $0x70] sm:$0xff]
  %v3980 = vld [vmem:[%s3 + $0x78] sm:$0xff]
  %v3981 = vld [vmem:[%s3 + $0x80] sm:$0xff]
  %v3982 = vld [vmem:[%s3 + $0x88] sm:$0xff]
  %v3983 = vld [vmem:[%s3 + $0x90] sm:$0xff]
  %v3984 = vld [vmem:[%s3 + $0x98] sm:$0xff]
  %v3985 = vld [vmem:[%s3 + $0xa0] sm:$0xff]
  %v3986 = vld [vmem:[%s3 + $0xa8] sm:$0xff]
  %v3987 = vld [vmem:[%s3 + $0xb0] sm:$0xff]
  %v3988 = vld [vmem:[%s3 + $0xb8] sm:$0xff]
  %v3989 = vld [vmem:[%s3 + $0xc0] sm:$0xff]
  %v3990 = vld [vmem:[%s3 + $0xc8] sm:$0xff]
  %v3991 = vld [vmem:[%s3 + $0xd0] sm:$0xff]
  %v3992 = vld [vmem:[%s3 + $0xd8] sm:$0xff]
  %v3993 = vld [vmem:[%s3 + $0xe0] sm:$0xff]
  %v3994 = vld [vmem:[%s3 + $0xe8] sm:$0xff]
  %v3995 = vld [vmem:[%s3 + $0xf0] sm:$0xff]
  %v3996 = vld [vmem:[%s3 + $0xf8] sm:$0xff]
  %v4029 = vunpack.c.l.b16 %v3965
  %v4030 = vunpack.c.h.b16 %v3965
  %v4031 = vunpack.c.l.b16 %v3966
  %v4032 = vunpack.c.h.b16 %v3966
  %v4033 = vunpack.c.l.b16 %v3967
  %v4034 = vunpack.c.h.b16 %v3967
  %v4035 = vunpack.c.l.b16 %v3968
  %v4036 = vunpack.c.h.b16 %v3968
  %v4037 = vunpack.c.l.b16 %v3969
  %v4038 = vunpack.c.h.b16 %v3969
  %v4039 = vunpack.c.l.b16 %v3970
  %v4040 = vunpack.c.h.b16 %v3970
  %v4041 = vunpack.c.l.b16 %v3971
  %v4042 = vunpack.c.h.b16 %v3971
  %v4043 = vunpack.c.l.b16 %v3972
  %v4044 = vunpack.c.h.b16 %v3972
  %v4045 = vunpack.c.l.b16 %v3973
  %v4046 = vunpack.c.h.b16 %v3973
  %v4047 = vunpack.c.l.b16 %v3974
  %v4048 = vunpack.c.h.b16 %v3974
  %v4049 = vunpack.c.l.b16 %v3975
  %v4050 = vunpack.c.h.b16 %v3975
  %v4051 = vunpack.c.l.b16 %v3976
  %v4052 = vunpack.c.h.b16 %v3976
  %v4053 = vunpack.c.l.b16 %v3977
  %v4054 = vunpack.c.h.b16 %v3977
  %v4055 = vunpack.c.l.b16 %v3978
  %v4056 = vunpack.c.h.b16 %v3978
  %v4057 = vunpack.c.l.b16 %v3979
  %v4058 = vunpack.c.h.b16 %v3979
  %v4059 = vunpack.c.l.b16 %v3980
  %v4060 = vunpack.c.h.b16 %v3980
  %v4061 = vunpack.c.l.b16 %v3981
  %v4062 = vunpack.c.h.b16 %v3981
  %v4063 = vunpack.c.l.b16 %v3982
  %v4064 = vunpack.c.h.b16 %v3982
  %v4065 = vunpack.c.l.b16 %v3983
  %v4066 = vunpack.c.h.b16 %v3983
  %v4067 = vunpack.c.l.b16 %v3984
  %v4068 = vunpack.c.h.b16 %v3984
  %v4069 = vunpack.c.l.b16 %v3985
  %v4070 = vunpack.c.h.b16 %v3985
  %v4071 = vunpack.c.l.b16 %v3986
  %v4072 = vunpack.c.h.b16 %v3986
  %v4073 = vunpack.c.l.b16 %v3987
  %v4074 = vunpack.c.h.b16 %v3987
  %v4075 = vunpack.c.l.b16 %v3988
  %v4076 = vunpack.c.h.b16 %v3988
  %v4077 = vunpack.c.l.b16 %v3989
  %v4078 = vunpack.c.h.b16 %v3989
  %v4079 = vunpack.c.l.b16 %v3990
  %v4080 = vunpack.c.h.b16 %v3990
  %v4081 = vunpack.c.l.b16 %v3991
  %v4082 = vunpack.c.h.b16 %v3991
  %v4083 = vunpack.c.l.b16 %v3992
  %v4084 = vunpack.c.h.b16 %v3992
  %v4085 = vunpack.c.l.b16 %v3993
  %v4086 = vunpack.c.h.b16 %v3993
  %v4087 = vunpack.c.l.b16 %v3994
  %v4088 = vunpack.c.h.b16 %v3994
  %v4089 = vunpack.c.l.b16 %v3995
  %v4090 = vunpack.c.h.b16 %v3995
  %v4091 = vunpack.c.l.b16 %v3996
  %v4092 = vunpack.c.h.b16 %v3996
  %v4093 = vpack.c.b16 %v4031, %v4029
  %v4094 = vpack.c.b16 %v4032, %v4030
  %v4095 = vpack.c.b16 %v4035, %v4033
  %v4096 = vpack.c.b16 %v4036, %v4034
  %v4097 = vpack.c.b16 %v4039, %v4037
  %v4098 = vpack.c.b16 %v4040, %v4038
  %v4099 = vpack.c.b16 %v4043, %v4041
  %v4100 = vpack.c.b16 %v4044, %v4042
  %v4101 = vpack.c.b16 %v4047, %v4045
  %v4102 = vpack.c.b16 %v4048, %v4046
  %v4103 = vpack.c.b16 %v4051, %v4049
  %v4104 = vpack.c.b16 %v4052, %v4050
  %v4105 = vpack.c.b16 %v4055, %v4053
  %v4106 = vpack.c.b16 %v4056, %v4054
  %v4107 = vpack.c.b16 %v4059, %v4057
  %v4108 = vpack.c.b16 %v4060, %v4058
  %v4109 = vpack.c.b16 %v4063, %v4061
  %v4110 = vpack.c.b16 %v4064, %v4062
  %v4111 = vpack.c.b16 %v4067, %v4065
  %v4112 = vpack.c.b16 %v4068, %v4066
  %v4113 = vpack.c.b16 %v4071, %v4069
  %v4114 = vpack.c.b16 %v4072, %v4070
  %v4115 = vpack.c.b16 %v4075, %v4073
  %v4116 = vpack.c.b16 %v4076, %v4074
  %v4117 = vpack.c.b16 %v4079, %v4077
  %v4118 = vpack.c.b16 %v4080, %v4078
  %v4119 = vpack.c.b16 %v4083, %v4081
  %v4120 = vpack.c.b16 %v4084, %v4082
  %v4121 = vpack.c.b16 %v4087, %v4085
  %v4122 = vpack.c.b16 %v4088, %v4086
  %v4123 = vpack.c.b16 %v4091, %v4089
  %v4124 = vpack.c.b16 %v4092, %v4090
  %4157 = vmatprep.subr.bf16.mxu0 %v4094
  %4158 = vmatpush1.bf16.msra.mxu0 %v4093
  %4159 = vmatprep.subr.bf16.mxu0 %v4096
  %4160 = vmatpush1.bf16.msra.mxu0 %v4095
  %4161 = vmatprep.subr.bf16.mxu0 %v4098
  %4162 = vmatpush1.bf16.msra.mxu0 %v4097
  %4163 = vmatprep.subr.bf16.mxu0 %v4100
  %4164 = vmatpush1.bf16.msra.mxu0 %v4099
  %4165 = vmatprep.subr.bf16.mxu0 %v4102
  %4166 = vmatpush1.bf16.msra.mxu0 %v4101
  %4167 = vmatprep.subr.bf16.mxu0 %v4104
  %4168 = vmatpush1.bf16.msra.mxu0 %v4103
  %4169 = vmatprep.subr.bf16.mxu0 %v4106
  %4170 = vmatpush1.bf16.msra.mxu0 %v4105
  %4171 = vmatprep.subr.bf16.mxu0 %v4108
  %4172 = vmatpush1.bf16.msra.mxu0 %v4107
  %4173 = vmatprep.subr.bf16.mxu0 %v4110
  %4174 = vmatpush1.bf16.msra.mxu0 %v4109
  %4175 = vmatprep.subr.bf16.mxu0 %v4112
  %4176 = vmatpush1.bf16.msra.mxu0 %v4111
  %4177 = vmatprep.subr.bf16.mxu0 %v4114
  %4178 = vmatpush1.bf16.msra.mxu0 %v4113
  %4179 = vmatprep.subr.bf16.mxu0 %v4116
  %4180 = vmatpush1.bf16.msra.mxu0 %v4115
  %4181 = vmatprep.subr.bf16.mxu0 %v4118
  %4182 = vmatpush1.bf16.msra.mxu0 %v4117
  %4183 = vmatprep.subr.bf16.mxu0 %v4120
  %4184 = vmatpush1.bf16.msra.mxu0 %v4119
  %4185 = vmatprep.subr.bf16.mxu0 %v4122
  %4186 = vmatpush1.bf16.msra.mxu0 %v4121
  %4187 = vmatprep.subr.bf16.mxu0 %v4124
  %4188 = vmatpush1.bf16.msra.mxu0 %v4123
  %4189 = vmatprep.mubr.bf16.mxu0 %v3940
  %4190 = vmatmul.mubr.bf16.gmra.mrb[0].mxu0 %v3939
  %v4191 = vpop.f32.mrb[0].mxu0
  %v4192 = vadd.f32 %v3585, %v4191
  %v4193 = vpop.f32.mrb[0].mxu0
  %v4194 = vadd.f32 %v3587, %v4193
  %v4195 = vpop.f32.mrb[0].mxu0
  %v4196 = vadd.f32 %v3589, %v4195
  %v4197 = vpop.f32.mrb[0].mxu0
  %v4198 = vadd.f32 %v3591, %v4197
  %4199 = vmatprep.mubr.bf16.mxu0 %v3942
  %4200 = vmatmul.mubr.bf16.gmra.mrb[0].mxu0 %v3941
  %v4201 = vpop.f32.mrb[0].mxu0
  %v4202 = vadd.f32 %v3595, %v4201
  %v4203 = vpop.f32.mrb[0].mxu0
  %v4204 = vadd.f32 %v3597, %v4203
  %v4205 = vpop.f32.mrb[0].mxu0
  %v4206 = vadd.f32 %v3599, %v4205
  %v4207 = vpop.f32.mrb[0].mxu0
  %v4208 = vadd.f32 %v3601, %v4207
  %4209 = vmatprep.mubr.bf16.mxu0 %v3944
  %4210 = vmatmul.mubr.bf16.gmra.mrb[0].mxu0 %v3943
  %v4211 = vpop.f32.mrb[0].mxu0
  %v4212 = vadd.f32 %v3605, %v4211
  %v4213 = vpop.f32.mrb[0].mxu0
  %v4214 = vadd.f32 %v3607, %v4213
  %v4215 = vpop.f32.mrb[0].mxu0
  %v4216 = vadd.f32 %v3609, %v4215
  %v4217 = vpop.f32.mrb[0].mxu0
  %v4218 = vadd.f32 %v3611, %v4217
  %4219 = vmatprep.mubr.bf16.mxu0 %v3946
  %4220 = vmatmul.mubr.bf16.gmra.mrb[0].mxu0 %v3945
  %v4221 = vpop.f32.mrb[0].mxu0
  %v4222 = vadd.f32 %v3615, %v4221
  %v4223 = vpop.f32.mrb[0].mxu0
  %v4224 = vadd.f32 %v3617, %v4223
  %v4225 = vpop.f32.mrb[0].mxu0
  %v4226 = vadd.f32 %v3619, %v4225
  %v4227 = vpop.f32.mrb[0].mxu0
  %v4228 = vadd.f32 %v3621, %v4227
  %4229 = vmatprep.mubr.bf16.mxu0 %v3948
  %4230 = vmatmul.mubr.bf16.gmra.mrb[0].mxu0 %v3947
  %v4231 = vpop.f32.mrb[0].mxu0
  %v4232 = vadd.f32 %v3625, %v4231
  %v4233 = vpop.f32.mrb[0].mxu0
  %v4234 = vadd.f32 %v3627, %v4233
  %v4235 = vpop.f32.mrb[0].mxu0
  %v4236 = vadd.f32 %v3629, %v4235
  %v4237 = vpop.f32.mrb[0].mxu0
  %v4238 = vadd.f32 %v3631, %v4237
  %4239 = vmatprep.mubr.bf16.mxu0 %v3950
  %4240 = vmatmul.mubr.bf16.gmra.mrb[0].mxu0 %v3949
  %v4241 = vpop.f32.mrb[0].mxu0
  %v4242 = vadd.f32 %v3635, %v4241
  %v4243 = vpop.f32.mrb[0].mxu0
  %v4244 = vadd.f32 %v3637, %v4243
  %v4245 = vpop.f32.mrb[0].mxu0
  %v4246 = vadd.f32 %v3639, %v4245
  %v4247 = vpop.f32.mrb[0].mxu0
  %v4248 = vadd.f32 %v3641, %v4247
  %4249 = vmatprep.mubr.bf16.mxu0 %v3952
  %4250 = vmatmul.mubr.bf16.gmra.mrb[0].mxu0 %v3951
  %v4251 = vpop.f32.mrb[0].mxu0
  %v4252 = vadd.f32 %v3645, %v4251
  %v4253 = vpop.f32.mrb[0].mxu0
  %v4254 = vadd.f32 %v3647, %v4253
  %v4255 = vpop.f32.mrb[0].mxu0
  %v4256 = vadd.f32 %v3649, %v4255
  %v4257 = vpop.f32.mrb[0].mxu0
  %v4258 = vadd.f32 %v3651, %v4257
  %4259 = vmatprep.mubr.bf16.mxu0 %v3954
  %4260 = vmatmul.mubr.bf16.gmra.mrb[0].mxu0 %v3953
  %v4261 = vpop.f32.mrb[0].mxu0
  %v4262 = vadd.f32 %v3655, %v4261
  %v4263 = vpop.f32.mrb[0].mxu0
  %v4264 = vadd.f32 %v3657, %v4263
  %v4265 = vpop.f32.mrb[0].mxu0
  %v4266 = vadd.f32 %v3659, %v4265
  %v4267 = vpop.f32.mrb[0].mxu0
  %v4268 = vadd.f32 %v3661, %v4267
  %4269 = vmatprep.mubr.bf16.mxu0 %v3956
  %4270 = vmatmul.mubr.bf16.gmra.mrb[0].mxu0 %v3955
  %v4271 = vpop.f32.mrb[0].mxu0
  %v4272 = vadd.f32 %v3665, %v4271
  %v4273 = vpop.f32.mrb[0].mxu0
  %v4274 = vadd.f32 %v3667, %v4273
  %v4275 = vpop.f32.mrb[0].mxu0
  %v4276 = vadd.f32 %v3669, %v4275
  %v4277 = vpop.f32.mrb[0].mxu0
  %v4278 = vadd.f32 %v3671, %v4277
  %4279 = vmatprep.mubr.bf16.mxu0 %v3958
  %4280 = vmatmul.mubr.bf16.gmra.mrb[0].mxu0 %v3957
  %v4281 = vpop.f32.mrb[0].mxu0
  %v4282 = vadd.f32 %v3675, %v4281
  %v4283 = vpop.f32.mrb[0].mxu0
  %v4284 = vadd.f32 %v3677, %v4283
  %v4285 = vpop.f32.mrb[0].mxu0
  %v4286 = vadd.f32 %v3679, %v4285
  %v4287 = vpop.f32.mrb[0].mxu0
  %v4288 = vadd.f32 %v3681, %v4287
  %4289 = vmatprep.mubr.bf16.mxu0 %v3960
  %4290 = vmatmul.mubr.bf16.gmra.mrb[0].mxu0 %v3959
  %v4291 = vpop.f32.mrb[0].mxu0
  %v4292 = vadd.f32 %v3685, %v4291
  %v4293 = vpop.f32.mrb[0].mxu0
  %v4294 = vadd.f32 %v3687, %v4293
  %v4295 = vpop.f32.mrb[0].mxu0
  %v4296 = vadd.f32 %v3689, %v4295
  %v4297 = vpop.f32.mrb[0].mxu0
  %v4298 = vadd.f32 %v3691, %v4297
  %4299 = vmatprep.mubr.bf16.mxu0 %v3962
  %4300 = vmatmul.mubr.bf16.gmra.mrb[0].mxu0 %v3961
  %v4301 = vpop.f32.mrb[0].mxu0
  %v4302 = vadd.f32 %v3695, %v4301
  %v4303 = vpop.f32.mrb[0].mxu0
  %v4304 = vadd.f32 %v3697, %v4303
  %v4305 = vpop.f32.mrb[0].mxu0
  %v4306 = vadd.f32 %v3699, %v4305
  %v4307 = vpop.f32.mrb[0].mxu0
  %v4308 = vadd.f32 %v3701, %v4307
  %4309 = vmatprep.mubr.bf16.mxu0 %v3964
  %4310 = vmatmul.mubr.bf16.gmra.mrb[0].mxu0 %v3963
  %v4311 = vpop.f32.mrb[0].mxu0
  %v4312 = vadd.f32 %v3705, %v4311
  %v4313 = vpop.f32.mrb[0].mxu0
  %v4314 = vadd.f32 %v3707, %v4313
  %v4315 = vpop.f32.mrb[0].mxu0
  %v4316 = vadd.f32 %v3709, %v4315
  %v4317 = vpop.f32.mrb[0].mxu0
  %v4318 = vadd.f32 %v3711, %v4317
  %4319 = vdwg.mxu0
  %v4320 = vlaneseq
  %v4321 = vshrl.u32 %v4320, 7
  %v4322 = vsub.s32 1, %v4321
  %v4323 = vrot.slane %v3713, %v4322
  %v4324 = vlaneseq
  %v4325 = vshrl.u32 %v4324, 7
  %v4326 = vsub.s32 1, %v4325
  %v4327 = vrot.slane %v3714, %v4326
  %v4328 = vadd.f32 %v4192, %v4323
  %v4329 = vadd.f32 %v4194, %v4327
  %v4330 = vadd.f32 %v4196, %v4323
  %v4331 = vadd.f32 %v4198, %v4327
  %v4332 = vadd.f32 %v4202, %v4323
  %v4333 = vadd.f32 %v4204, %v4327
  %v4334 = vadd.f32 %v4206, %v4323
  %v4335 = vadd.f32 %v4208, %v4327
  %v4336 = vadd.f32 %v4212, %v4323
  %v4337 = vadd.f32 %v4214, %v4327
  %v4338 = vadd.f32 %v4216, %v4323
  %v4339 = vadd.f32 %v4218, %v4327
  %v4340 = vadd.f32 %v4222, %v4323
  %v4341 = vadd.f32 %v4224, %v4327
  %v4342 = vadd.f32 %v4226, %v4323
  %v4343 = vadd.f32 %v4228, %v4327
  %v4344 = vadd.f32 %v4232, %v4323
  %v4345 = vadd.f32 %v4234, %v4327
  %v4346 = vadd.f32 %v4236, %v4323
  %v4347 = vadd.f32 %v4238, %v4327
  %v4348 = vadd.f32 %v4242, %v4323
  %v4349 = vadd.f32 %v4244, %v4327
  %v4350 = vadd.f32 %v4246, %v4323
  %v4351 = vadd.f32 %v4248, %v4327
  %v4352 = vadd.f32 %v4252, %v4323
  %v4353 = vadd.f32 %v4254, %v4327
  %v4354 = vadd.f32 %v4256, %v4323
  %v4355 = vadd.f32 %v4258, %v4327
  %v4356 = vadd.f32 %v4262, %v4323
  %v4357 = vadd.f32 %v4264, %v4327
  %v4358 = vadd.f32 %v4266, %v4323
  %v4359 = vadd.f32 %v4268, %v4327
  %v4360 = vadd.f32 %v4272, %v4323
  %v4361 = vadd.f32 %v4274, %v4327
  %v4362 = vadd.f32 %v4276, %v4323
  %v4363 = vadd.f32 %v4278, %v4327
  %v4364 = vadd.f32 %v4282, %v4323
  %v4365 = vadd.f32 %v4284, %v4327
  %v4366 = vadd.f32 %v4286, %v4323
  %v4367 = vadd.f32 %v4288, %v4327
  %v4368 = vadd.f32 %v4292, %v4323
  %v4369 = vadd.f32 %v4294, %v4327
  %v4370 = vadd.f32 %v4296, %v4323
  %v4371 = vadd.f32 %v4298, %v4327
  %v4372 = vadd.f32 %v4302, %v4323
  %v4373 = vadd.f32 %v4304, %v4327
  %v4374 = vadd.f32 %v4306, %v4323
  %v4375 = vadd.f32 %v4308, %v4327
  %v4376 = vadd.f32 %v4312, %v4323
  %v4377 = vadd.f32 %v4314, %v4327
  %v4378 = vadd.f32 %v4316, %v4323
  %v4379 = vadd.f32 %v4318, %v4327
  %vm4380 = vcmp.gt.f32.partialorder %v4328, 0.0
  %vm4381 = vcmp.gt.f32.partialorder %v4329, 0.0
  %vm4382 = vcmp.gt.f32.partialorder %v4330, 0.0
  %vm4383 = vcmp.gt.f32.partialorder %v4331, 0.0
  %vm4384 = vcmp.gt.f32.partialorder %v4332, 0.0
  %vm4385 = vcmp.gt.f32.partialorder %v4333, 0.0
  %vm4386 = vcmp.gt.f32.partialorder %v4334, 0.0
  %vm4387 = vcmp.gt.f32.partialorder %v4335, 0.0
  %vm4388 = vcmp.gt.f32.partialorder %v4336, 0.0
  %vm4389 = vcmp.gt.f32.partialorder %v4337, 0.0
  %vm4390 = vcmp.gt.f32.partialorder %v4338, 0.0
  %vm4391 = vcmp.gt.f32.partialorder %v4339, 0.0
  %vm4392 = vcmp.gt.f32.partialorder %v4340, 0.0
  %vm4393 = vcmp.gt.f32.partialorder %v4341, 0.0
  %vm4394 = vcmp.gt.f32.partialorder %v4342, 0.0
  %vm4395 = vcmp.gt.f32.partialorder %v4343, 0.0
  %vm4396 = vcmp.gt.f32.partialorder %v4344, 0.0
  %vm4397 = vcmp.gt.f32.partialorder %v4345, 0.0
  %vm4398 = vcmp.gt.f32.partialorder %v4346, 0.0
  %vm4399 = vcmp.gt.f32.partialorder %v4347, 0.0
  %vm4400 = vcmp.gt.f32.partialorder %v4348, 0.0
  %vm4401 = vcmp.gt.f32.partialorder %v4349, 0.0
  %vm4402 = vcmp.gt.f32.partialorder %v4350, 0.0
  %vm4403 = vcmp.gt.f32.partialorder %v4351, 0.0
  %vm4404 = vcmp.gt.f32.partialorder %v4352, 0.0
  %vm4405 = vcmp.gt.f32.partialorder %v4353, 0.0
  %vm4406 = vcmp.gt.f32.partialorder %v4354, 0.0
  %vm4407 = vcmp.gt.f32.partialorder %v4355, 0.0
  %vm4408 = vcmp.gt.f32.partialorder %v4356, 0.0
  %vm4409 = vcmp.gt.f32.partialorder %v4357, 0.0
  %vm4410 = vcmp.gt.f32.partialorder %v4358, 0.0
  %vm4411 = vcmp.gt.f32.partialorder %v4359, 0.0
  %vm4412 = vcmp.gt.f32.partialorder %v4360, 0.0
  %vm4413 = vcmp.gt.f32.partialorder %v4361, 0.0
  %vm4414 = vcmp.gt.f32.partialorder %v4362, 0.0
  %vm4415 = vcmp.gt.f32.partialorder %v4363, 0.0
  %vm4416 = vcmp.gt.f32.partialorder %v4364, 0.0
  %vm4417 = vcmp.gt.f32.partialorder %v4365, 0.0
  %vm4418 = vcmp.gt.f32.partialorder %v4366, 0.0
  %vm4419 = vcmp.gt.f32.partialorder %v4367, 0.0
  %vm4420 = vcmp.gt.f32.partialorder %v4368, 0.0
  %vm4421 = vcmp.gt.f32.partialorder %v4369, 0.0
  %vm4422 = vcmp.gt.f32.partialorder %v4370, 0.0
  %vm4423 = vcmp.gt.f32.partialorder %v4371, 0.0
  %vm4424 = vcmp.gt.f32.partialorder %v4372, 0.0
  %vm4425 = vcmp.gt.f32.partialorder %v4373, 0.0
  %vm4426 = vcmp.gt.f32.partialorder %v4374, 0.0
  %vm4427 = vcmp.gt.f32.partialorder %v4375, 0.0
  %vm4428 = vcmp.gt.f32.partialorder %v4376, 0.0
  %vm4429 = vcmp.gt.f32.partialorder %v4377, 0.0
  %vm4430 = vcmp.gt.f32.partialorder %v4378, 0.0
  %vm4431 = vcmp.gt.f32.partialorder %v4379, 0.0
  %v4432 = vlaneseq
  %v4433 = vshrl.u32 %v4432, 7
  %v4434 = vsub.s32 3, %v4433
  %v4435 = vrot.slane %v3713, %v4434
  %v4436 = vlaneseq
  %v4437 = vshrl.u32 %v4436, 7
  %v4438 = vsub.s32 3, %v4437
  %v4439 = vrot.slane %v3714, %v4438
  %v4440 = vmul.f32 %v4435, %v4328
  %v4441 = vmul.f32 %v4439, %v4329
  %v4442 = vmul.f32 %v4435, %v4330
  %v4443 = vmul.f32 %v4439, %v4331
  %v4444 = vmul.f32 %v4435, %v4332
  %v4445 = vmul.f32 %v4439, %v4333
  %v4446 = vmul.f32 %v4435, %v4334
  %v4447 = vmul.f32 %v4439, %v4335
  %v4448 = vmul.f32 %v4435, %v4336
  %v4449 = vmul.f32 %v4439, %v4337
  %v4450 = vmul.f32 %v4435, %v4338
  %v4451 = vmul.f32 %v4439, %v4339
  %v4452 = vmul.f32 %v4435, %v4340
  %v4453 = vmul.f32 %v4439, %v4341
  %v4454 = vmul.f32 %v4435, %v4342
  %v4455 = vmul.f32 %v4439, %v4343
  %v4456 = vmul.f32 %v4435, %v4344
  %v4457 = vmul.f32 %v4439, %v4345
  %v4458 = vmul.f32 %v4435, %v4346
  %v4459 = vmul.f32 %v4439, %v4347
  %v4460 = vmul.f32 %v4435, %v4348
  %v4461 = vmul.f32 %v4439, %v4349
  %v4462 = vmul.f32 %v4435, %v4350
  %v4463 = vmul.f32 %v4439, %v4351
  %v4464 = vmul.f32 %v4435, %v4352
  %v4465 = vmul.f32 %v4439, %v4353
  %v4466 = vmul.f32 %v4435, %v4354
  %v4467 = vmul.f32 %v4439, %v4355
  %v4468 = vmul.f32 %v4435, %v4356
  %v4469 = vmul.f32 %v4439, %v4357
  %v4470 = vmul.f32 %v4435, %v4358
  %v4471 = vmul.f32 %v4439, %v4359
  %v4472 = vmul.f32 %v4435, %v4360
  %v4473 = vmul.f32 %v4439, %v4361
  %v4474 = vmul.f32 %v4435, %v4362
  %v4475 = vmul.f32 %v4439, %v4363
  %v4476 = vmul.f32 %v4435, %v4364
  %v4477 = vmul.f32 %v4439, %v4365
  %v4478 = vmul.f32 %v4435, %v4366
  %v4479 = vmul.f32 %v4439, %v4367
  %v4480 = vmul.f32 %v4435, %v4368
  %v4481 = vmul.f32 %v4439, %v4369
  %v4482 = vmul.f32 %v4435, %v4370
  %v4483 = vmul.f32 %v4439, %v4371
  %v4484 = vmul.f32 %v4435, %v4372
  %v4485 = vmul.f32 %v4439, %v4373
  %v4486 = vmul.f32 %v4435, %v4374
  %v4487 = vmul.f32 %v4439, %v4375
  %v4488 = vmul.f32 %v4435, %v4376
  %v4489 = vmul.f32 %v4439, %v4377
  %v4490 = vmul.f32 %v4435, %v4378
  %v4491 = vmul.f32 %v4439, %v4379
  %v4492 = vsel %vm4380, %v4328, %v4440
  %v4493 = vsel %vm4381, %v4329, %v4441
  %v4494 = vsel %vm4382, %v4330, %v4442
  %v4495 = vsel %vm4383, %v4331, %v4443
  %v4496 = vsel %vm4384, %v4332, %v4444
  %v4497 = vsel %vm4385, %v4333, %v4445
  %v4498 = vsel %vm4386, %v4334, %v4446
  %v4499 = vsel %vm4387, %v4335, %v4447
  %v4500 = vsel %vm4388, %v4336, %v4448
  %v4501 = vsel %vm4389, %v4337, %v4449
  %v4502 = vsel %vm4390, %v4338, %v4450
  %v4503 = vsel %vm4391, %v4339, %v4451
  %v4504 = vsel %vm4392, %v4340, %v4452
  %v4505 = vsel %vm4393, %v4341, %v4453
  %v4506 = vsel %vm4394, %v4342, %v4454
  %v4507 = vsel %vm4395, %v4343, %v4455
  %v4508 = vsel %vm4396, %v4344, %v4456
  %v4509 = vsel %vm4397, %v4345, %v4457
  %v4510 = vsel %vm4398, %v4346, %v4458
  %v4511 = vsel %vm4399, %v4347, %v4459
  %v4512 = vsel %vm4400, %v4348, %v4460
  %v4513 = vsel %vm4401, %v4349, %v4461
  %v4514 = vsel %vm4402, %v4350, %v4462
  %v4515 = vsel %vm4403, %v4351, %v4463
  %v4516 = vsel %vm4404, %v4352, %v4464
  %v4517 = vsel %vm4405, %v4353, %v4465
  %v4518 = vsel %vm4406, %v4354, %v4466
  %v4519 = vsel %vm4407, %v4355, %v4467
  %v4520 = vsel %vm4408, %v4356, %v4468
  %v4521 = vsel %vm4409, %v4357, %v4469
  %v4522 = vsel %vm4410, %v4358, %v4470
  %v4523 = vsel %vm4411, %v4359, %v4471
  %v4524 = vsel %vm4412, %v4360, %v4472
  %v4525 = vsel %vm4413, %v4361, %v4473
  %v4526 = vsel %vm4414, %v4362, %v4474
  %v4527 = vsel %vm4415, %v4363, %v4475
  %v4528 = vsel %vm4416, %v4364, %v4476
  %v4529 = vsel %vm4417, %v4365, %v4477
  %v4530 = vsel %vm4418, %v4366, %v4478
  %v4531 = vsel %vm4419, %v4367, %v4479
  %v4532 = vsel %vm4420, %v4368, %v4480
  %v4533 = vsel %vm4421, %v4369, %v4481
  %v4534 = vsel %vm4422, %v4370, %v4482
  %v4535 = vsel %vm4423, %v4371, %v4483
  %v4536 = vsel %vm4424, %v4372, %v4484
  %v4537 = vsel %vm4425, %v4373, %v4485
  %v4538 = vsel %vm4426, %v4374, %v4486
  %v4539 = vsel %vm4427, %v4375, %v4487
  %v4540 = vsel %vm4428, %v4376, %v4488
  %v4541 = vsel %vm4429, %v4377, %v4489
  %v4542 = vsel %vm4430, %v4378, %v4490
  %v4543 = vsel %vm4431, %v4379, %v4491
  %v4544 = vpack.c.bf16 %v4494, %v4492
  %v4545 = vpack.c.bf16 %v4495, %v4493
  %v4546 = vpack.c.bf16 %v4498, %v4496
  %v4547 = vpack.c.bf16 %v4499, %v4497
  %v4548 = vpack.c.bf16 %v4502, %v4500
  %v4549 = vpack.c.bf16 %v4503, %v4501
  %v4550 = vpack.c.bf16 %v4506, %v4504
  %v4551 = vpack.c.bf16 %v4507, %v4505
  %v4552 = vpack.c.bf16 %v4510, %v4508
  %v4553 = vpack.c.bf16 %v4511, %v4509
  %v4554 = vpack.c.bf16 %v4514, %v4512
  %v4555 = vpack.c.bf16 %v4515, %v4513
  %v4556 = vpack.c.bf16 %v4518, %v4516
  %v4557 = vpack.c.bf16 %v4519, %v4517
  %v4558 = vpack.c.bf16 %v4522, %v4520
  %v4559 = vpack.c.bf16 %v4523, %v4521
  %v4560 = vpack.c.bf16 %v4526, %v4524
  %v4561 = vpack.c.bf16 %v4527, %v4525
  %v4562 = vpack.c.bf16 %v4530, %v4528
  %v4563 = vpack.c.bf16 %v4531, %v4529
  %v4564 = vpack.c.bf16 %v4534, %v4532
  %v4565 = vpack.c.bf16 %v4535, %v4533
  %v4566 = vpack.c.bf16 %v4538, %v4536
  %v4567 = vpack.c.bf16 %v4539, %v4537
  %v4568 = vpack.c.bf16 %v4542, %v4540
  %v4569 = vpack.c.bf16 %v4543, %v4541
  %v4570 = vld [vmem:[%s4] sm:$0xf]
  %v4571 = vld [vmem:[%s4 + $0x4] sm:$0xf]
  %v4572 = vld [vmem:[%s4 + $0x8] sm:$0xf]
  %v4573 = vld [vmem:[%s4 + $0xc] sm:$0xf]
  %v4574 = vld [vmem:[%s4 + $0x10] sm:$0xf]
  %v4575 = vld [vmem:[%s4 + $0x14] sm:$0xf]
  %v4576 = vld [vmem:[%s4 + $0x18] sm:$0xf]
  %v4577 = vld [vmem:[%s4 + $0x1c] sm:$0xf]
  %v4578 = vld [vmem:[%s4 + $0x20] sm:$0xf]
  %v4579 = vld [vmem:[%s4 + $0x24] sm:$0xf]
  %v4580 = vld [vmem:[%s4 + $0x28] sm:$0xf]
  %v4581 = vld [vmem:[%s4 + $0x2c] sm:$0xf]
  %v4582 = vld [vmem:[%s4 + $0x30] sm:$0xf]
  %v4583 = vld [vmem:[%s4 + $0x34] sm:$0xf]
  %v4584 = vld [vmem:[%s4 + $0x38] sm:$0xf]
  %v4585 = vld [vmem:[%s4 + $0x3c] sm:$0xf]
  %v4586 = vld [vmem:[%s4 + $0x40] sm:$0xf]
  %v4587 = vld [vmem:[%s4 + $0x44] sm:$0xf]
  %v4588 = vld [vmem:[%s4 + $0x48] sm:$0xf]
  %v4589 = vld [vmem:[%s4 + $0x4c] sm:$0xf]
  %v4590 = vld [vmem:[%s4 + $0x50] sm:$0xf]
  %v4591 = vld [vmem:[%s4 + $0x54] sm:$0xf]
  %v4592 = vld [vmem:[%s4 + $0x58] sm:$0xf]
  %v4593 = vld [vmem:[%s4 + $0x5c] sm:$0xf]
  %v4594 = vld [vmem:[%s4 + $0x60] sm:$0xf]
  %v4595 = vld [vmem:[%s4 + $0x64] sm:$0xf]
  %v4596 = vld [vmem:[%s4 + $0x68] sm:$0xf]
  %v4597 = vld [vmem:[%s4 + $0x6c] sm:$0xf]
  %v4598 = vld [vmem:[%s4 + $0x70] sm:$0xf]
  %v4599 = vld [vmem:[%s4 + $0x74] sm:$0xf]
  %v4600 = vld [vmem:[%s4 + $0x78] sm:$0xf]
  %v4601 = vld [vmem:[%s4 + $0x7c] sm:$0xf]
  %v4602 = vlaneseq
  %v4603 = vshrl.u32 %v4602, 7
  %v4604 = vsub.s32 4, %v4603
  %v4605 = vrot.slane %v3713, %v4604
  %v4638 = vunpack.c.l.b16 %v4570
  %v4639 = vunpack.c.l.b16 %v4571
  %v4640 = vunpack.c.l.b16 %v4572
  %v4641 = vunpack.c.l.b16 %v4573
  %v4642 = vunpack.c.l.b16 %v4574
  %v4643 = vunpack.c.l.b16 %v4575
  %v4644 = vunpack.c.l.b16 %v4576
  %v4645 = vunpack.c.l.b16 %v4577
  %v4646 = vunpack.c.l.b16 %v4578
  %v4647 = vunpack.c.l.b16 %v4579
  %v4648 = vunpack.c.l.b16 %v4580
  %v4649 = vunpack.c.l.b16 %v4581
  %v4650 = vunpack.c.l.b16 %v4582
  %v4651 = vunpack.c.l.b16 %v4583
  %v4652 = vunpack.c.l.b16 %v4584
  %v4653 = vunpack.c.l.b16 %v4585
  %v4654 = vunpack.c.l.b16 %v4586
  %v4655 = vunpack.c.l.b16 %v4587
  %v4656 = vunpack.c.l.b16 %v4588
  %v4657 = vunpack.c.l.b16 %v4589
  %v4658 = vunpack.c.l.b16 %v4590
  %v4659 = vunpack.c.l.b16 %v4591
  %v4660 = vunpack.c.l.b16 %v4592
  %v4661 = vunpack.c.l.b16 %v4593
  %v4662 = vunpack.c.l.b16 %v4594
  %v4663 = vunpack.c.l.b16 %v4595
  %v4664 = vunpack.c.l.b16 %v4596
  %v4665 = vunpack.c.l.b16 %v4597
  %v4666 = vunpack.c.l.b16 %v4598
  %v4667 = vunpack.c.l.b16 %v4599
  %v4668 = vunpack.c.l.b16 %v4600
  %v4669 = vunpack.c.l.b16 %v4601
  %v4670 = vpack.c.b16 %v4639, %v4638
  %v4671 = vpack.c.b16 %v4641, %v4640
  %v4672 = vpack.c.b16 %v4643, %v4642
  %v4673 = vpack.c.b16 %v4645, %v4644
  %v4674 = vpack.c.b16 %v4647, %v4646
  %v4675 = vpack.c.b16 %v4649, %v4648
  %v4676 = vpack.c.b16 %v4651, %v4650
  %v4677 = vpack.c.b16 %v4653, %v4652
  %v4678 = vpack.c.b16 %v4655, %v4654
  %v4679 = vpack.c.b16 %v4657, %v4656
  %v4680 = vpack.c.b16 %v4659, %v4658
  %v4681 = vpack.c.b16 %v4661, %v4660
  %v4682 = vpack.c.b16 %v4663, %v4662
  %v4683 = vpack.c.b16 %v4665, %v4664
  %v4684 = vpack.c.b16 %v4667, %v4666
  %v4685 = vpack.c.b16 %v4669, %v4668
  %4702 = vmatprep.subr.bf16.mxu0 0
  %4703 = vmatpush1.bf16.msra.mxu0 %v4670
  %4704 = vmatprep.subr.bf16.mxu0 0
  %4705 = vmatpush1.bf16.msra.mxu0 %v4671
  %4706 = vmatprep.subr.bf16.mxu0 0
  %4707 = vmatpush1.bf16.msra.mxu0 %v4672
  %4708 = vmatprep.subr.bf16.mxu0 0
  %4709 = vmatpush1.bf16.msra.mxu0 %v4673
  %4710 = vmatprep.subr.bf16.mxu0 0
  %4711 = vmatpush1.bf16.msra.mxu0 %v4674
  %4712 = vmatprep.subr.bf16.mxu0 0
  %4713 = vmatpush1.bf16.msra.mxu0 %v4675
  %4714 = vmatprep.subr.bf16.mxu0 0
  %4715 = vmatpush1.bf16.msra.mxu0 %v4676
  %4716 = vmatprep.subr.bf16.mxu0 0
  %4717 = vmatpush1.bf16.msra.mxu0 %v4677
  %4718 = vmatprep.subr.bf16.mxu0 0
  %4719 = vmatpush1.bf16.msra.mxu0 %v4678
  %4720 = vmatprep.subr.bf16.mxu0 0
  %4721 = vmatpush1.bf16.msra.mxu0 %v4679
  %4722 = vmatprep.subr.bf16.mxu0 0
  %4723 = vmatpush1.bf16.msra.mxu0 %v4680
  %4724 = vmatprep.subr.bf16.mxu0 0
  %4725 = vmatpush1.bf16.msra.mxu0 %v4681
  %4726 = vmatprep.subr.bf16.mxu0 0
  %4727 = vmatpush1.bf16.msra.mxu0 %v4682
  %4728 = vmatprep.subr.bf16.mxu0 0
  %4729 = vmatpush1.bf16.msra.mxu0 %v4683
  %4730 = vmatprep.subr.bf16.mxu0 0
  %4731 = vmatpush1.bf16.msra.mxu0 %v4684
  %4732 = vmatprep.subr.bf16.mxu0 0
  %4733 = vmatpush1.bf16.msra.mxu0 %v4685
  %4734 = vmatprep.mubr.bf16.mxu0 %v4545
  %4735 = vmatmul.mubr.bf16.gmra.mrb[0].mxu0 %v4544
  %v4736 = vpop.f32.mrb[0].mxu0
  %v4737 = vadd.f32 %v4605, %v4736
  %v4738 = vpop.f32.mrb[0].mxu0
  %v4739 = vpop.f32.mrb[0].mxu0
  %v4740 = vadd.f32 %v4605, %v4739
  %v4741 = vpop.f32.mrb[0].mxu0
  %4742 = vmatprep.mubr.bf16.mxu0 %v4547
  %4743 = vmatmul.mubr.bf16.gmra.mrb[0].mxu0 %v4546
  %v4744 = vpop.f32.mrb[0].mxu0
  %v4745 = vadd.f32 %v4605, %v4744
  %v4746 = vpop.f32.mrb[0].mxu0
  %v4747 = vpop.f32.mrb[0].mxu0
  %v4748 = vadd.f32 %v4605, %v4747
  %v4749 = vpop.f32.mrb[0].mxu0
  %4750 = vmatprep.mubr.bf16.mxu0 %v4549
  %4751 = vmatmul.mubr.bf16.gmra.mrb[0].mxu0 %v4548
  %v4752 = vpop.f32.mrb[0].mxu0
  %v4753 = vadd.f32 %v4605, %v4752
  %v4754 = vpop.f32.mrb[0].mxu0
  %v4755 = vpop.f32.mrb[0].mxu0
  %v4756 = vadd.f32 %v4605, %v4755
  %v4757 = vpop.f32.mrb[0].mxu0
  %4758 = vmatprep.mubr.bf16.mxu0 %v4551
  %4759 = vmatmul.mubr.bf16.gmra.mrb[0].mxu0 %v4550
  %v4760 = vpop.f32.mrb[0].mxu0
  %v4761 = vadd.f32 %v4605, %v4760
  %v4762 = vpop.f32.mrb[0].mxu0
  %v4763 = vpop.f32.mrb[0].mxu0
  %v4764 = vadd.f32 %v4605, %v4763
  %v4765 = vpop.f32.mrb[0].mxu0
  %4766 = vmatprep.mubr.bf16.mxu0 %v4553
  %4767 = vmatmul.mubr.bf16.gmra.mrb[0].mxu0 %v4552
  %v4768 = vpop.f32.mrb[0].mxu0
  %v4769 = vadd.f32 %v4605, %v4768
  %v4770 = vpop.f32.mrb[0].mxu0
  %v4771 = vpop.f32.mrb[0].mxu0
  %v4772 = vadd.f32 %v4605, %v4771
  %v4773 = vpop.f32.mrb[0].mxu0
  %4774 = vmatprep.mubr.bf16.mxu0 %v4555
  %4775 = vmatmul.mubr.bf16.gmra.mrb[0].mxu0 %v4554
  %v4776 = vpop.f32.mrb[0].mxu0
  %v4777 = vadd.f32 %v4605, %v4776
  %v4778 = vpop.f32.mrb[0].mxu0
  %v4779 = vpop.f32.mrb[0].mxu0
  %v4780 = vadd.f32 %v4605, %v4779
  %v4781 = vpop.f32.mrb[0].mxu0
  %4782 = vmatprep.mubr.bf16.mxu0 %v4557
  %4783 = vmatmul.mubr.bf16.gmra.mrb[0].mxu0 %v4556
  %v4784 = vpop.f32.mrb[0].mxu0
  %v4785 = vadd.f32 %v4605, %v4784
  %v4786 = vpop.f32.mrb[0].mxu0
  %v4787 = vpop.f32.mrb[0].mxu0
  %v4788 = vadd.f32 %v4605, %v4787
  %v4789 = vpop.f32.mrb[0].mxu0
  %4790 = vmatprep.mubr.bf16.mxu0 %v4559
  %4791 = vmatmul.mubr.bf16.gmra.mrb[0].mxu0 %v4558
  %v4792 = vpop.f32.mrb[0].mxu0
  %v4793 = vadd.f32 %v4605, %v4792
  %v4794 = vpop.f32.mrb[0].mxu0
  %v4795 = vpop.f32.mrb[0].mxu0
  %v4796 = vadd.f32 %v4605, %v4795
  %v4797 = vpop.f32.mrb[0].mxu0
  %4798 = vmatprep.mubr.bf16.mxu0 %v4561
  %4799 = vmatmul.mubr.bf16.gmra.mrb[0].mxu0 %v4560
  %v4800 = vpop.f32.mrb[0].mxu0
  %v4801 = vadd.f32 %v4605, %v4800
  %v4802 = vpop.f32.mrb[0].mxu0
  %v4803 = vpop.f32.mrb[0].mxu0
  %v4804 = vadd.f32 %v4605, %v4803
  %v4805 = vpop.f32.mrb[0].mxu0
  %4806 = vmatprep.mubr.bf16.mxu0 %v4563
  %4807 = vmatmul.mubr.bf16.gmra.mrb[0].mxu0 %v4562
  %v4808 = vpop.f32.mrb[0].mxu0
  %v4809 = vadd.f32 %v4605, %v4808
  %v4810 = vpop.f32.mrb[0].mxu0
  %v4811 = vpop.f32.mrb[0].mxu0
  %v4812 = vadd.f32 %v4605, %v4811
  %v4813 = vpop.f32.mrb[0].mxu0
  %4814 = vmatprep.mubr.bf16.mxu0 %v4565
  %4815 = vmatmul.mubr.bf16.gmra.mrb[0].mxu0 %v4564
  %v4816 = vpop.f32.mrb[0].mxu0
  %v4817 = vadd.f32 %v4605, %v4816
  %v4818 = vpop.f32.mrb[0].mxu0
  %v4819 = vpop.f32.mrb[0].mxu0
  %v4820 = vadd.f32 %v4605, %v4819
  %v4821 = vpop.f32.mrb[0].mxu0
  %4822 = vmatprep.mubr.bf16.mxu0 %v4567
  %4823 = vmatmul.mubr.bf16.gmra.mrb[0].mxu0 %v4566
  %v4824 = vpop.f32.mrb[0].mxu0
  %v4825 = vadd.f32 %v4605, %v4824
  %v4826 = vpop.f32.mrb[0].mxu0
  %v4827 = vpop.f32.mrb[0].mxu0
  %v4828 = vadd.f32 %v4605, %v4827
  %v4829 = vpop.f32.mrb[0].mxu0
  %4830 = vmatprep.mubr.bf16.mxu0 %v4569
  %4831 = vmatmul.mubr.bf16.gmra.mrb[0].mxu0 %v4568
  %v4832 = vpop.f32.mrb[0].mxu0
  %v4833 = vadd.f32 %v4605, %v4832
  %v4834 = vpop.f32.mrb[0].mxu0
  %v4835 = vpop.f32.mrb[0].mxu0
  %v4836 = vadd.f32 %v4605, %v4835
  %v4837 = vpop.f32.mrb[0].mxu0
  %4838 = vdwg.mxu0
  %vm4839 = vcmask 31744
  %4840 = vst.msk [vmem:[%s6] sm:$0xff] %vm4839, %v4737
  %4841 = vst.msk [vmem:[%s6 + $0x8] sm:$0xff] %vm4839, %v4740
  %4842 = vst.msk [vmem:[%s6 + $0x10] sm:$0xff] %vm4839, %v4745
  %4843 = vst.msk [vmem:[%s6 + $0x18] sm:$0xff] %vm4839, %v4748
  %4844 = vst.msk [vmem:[%s6 + $0x20] sm:$0xff] %vm4839, %v4753
  %4845 = vst.msk [vmem:[%s6 + $0x28] sm:$0xff] %vm4839, %v4756
  %4846 = vst.msk [vmem:[%s6 + $0x30] sm:$0xff] %vm4839, %v4761
  %4847 = vst.msk [vmem:[%s6 + $0x38] sm:$0xff] %vm4839, %v4764
  %4848 = vst.msk [vmem:[%s6 + $0x40] sm:$0xff] %vm4839, %v4769
  %4849 = vst.msk [vmem:[%s6 + $0x48] sm:$0xff] %vm4839, %v4772
  %4850 = vst.msk [vmem:[%s6 + $0x50] sm:$0xff] %vm4839, %v4777
  %4851 = vst.msk [vmem:[%s6 + $0x58] sm:$0xff] %vm4839, %v4780
  %4852 = vst.msk [vmem:[%s6 + $0x60] sm:$0xff] %vm4839, %v4785
  %4853 = vst.msk [vmem:[%s6 + $0x68] sm:$0xff] %vm4839, %v4788
  %4854 = vst.msk [vmem:[%s6 + $0x70] sm:$0xff] %vm4839, %v4793
  %4855 = vst.msk [vmem:[%s6 + $0x78] sm:$0xff] %vm4839, %v4796
  %4856 = vst.msk [vmem:[%s6 + $0x80] sm:$0xff] %vm4839, %v4801
  %4857 = vst.msk [vmem:[%s6 + $0x88] sm:$0xff] %vm4839, %v4804
  %4858 = vst.msk [vmem:[%s6 + $0x90] sm:$0xff] %vm4839, %v4809
  %4859 = vst.msk [vmem:[%s6 + $0x98] sm:$0xff] %vm4839, %v4812
  %4860 = vst.msk [vmem:[%s6 + $0xa0] sm:$0xff] %vm4839, %v4817
  %4861 = vst.msk [vmem:[%s6 + $0xa8] sm:$0xff] %vm4839, %v4820
  %4862 = vst.msk [vmem:[%s6 + $0xb0] sm:$0xff] %vm4839, %v4825
  %4863 = vst.msk [vmem:[%s6 + $0xb8] sm:$0xff] %vm4839, %v4828
  %4864 = vst.msk [vmem:[%s6 + $0xc0] sm:$0xff] %vm4839, %v4833
  %4865 = vst.msk [vmem:[%s6 + $0xc8] sm:$0xff] %vm4839, %v4836
  // Predicated region
  $region26: #{res_classifier_forward.1} parent=0 // pred_check
    _
  $region27: #{res_classifier_forward.1} parent=0 // pred_check_branch
    %4867 = sbr.rel (0) target = $region29
  $region28: #{res_classifier_forward.1} parent=0 // pred_region
    _
  $region29: #{res_classifier_forward.1} parent=0 // pred_fallthru
    _
  // Predicated region
  $region30: #{res_classifier_forward.1} parent=0 // pred_check
    _
  $region31: #{res_classifier_forward.1} parent=0 // pred_check_branch
    %4869 = sbr.rel (0) target = $region33
  $region32: #{res_classifier_forward.1} parent=0 // pred_region
    _
  $region33: #{res_classifier_forward.1} parent=0 // pred_fallthru
    _

</llo_original>
